<compile_context>
chip_gen: v7x
topology: tpu7x:2x2x1
jax: 0.10.0
libtpu: 0.0.40
codegen_flags: <defaults>
</compile_context>

<pallas_src>
import jax
import jax.numpy as jnp
from jax.experimental import pallas as pl
from jax.experimental.pallas import tpu as pltpu


def _conv3x3_kernel(w_ref, p_ref, o_ref):
    """Exact-f32 VPU MAC convolution over a lane-dense im2col layout.

    w_ref: SMEM (Co, 9*Ci)     flattened filter, k = (kh*3 + kw)*Ci + ci
    p_ref: VMEM (N*9*Ci, H*W)  im2col patches, row = b*(9*Ci) + k, lanes = H*W
    o_ref: VMEM (N*Co, H*W)    output rows,    row = b*Co + o,     lanes = H*W
    """
    co, kk = w_ref.shape          # (4, 36)
    n = o_ref.shape[0] // co      # batch
    hw = o_ref.shape[1]           # lane-dense spatial extent (multiple of 128)

    for b in range(n):                                   # unrolled at trace time
        accs = [jnp.zeros((1, hw), jnp.float32) for _ in range(co)]
        for k in range(kk):
            r = b * kk + k
            row = p_ref[r:r + 1, :]                      # (1, H*W) static, lane-dense
            for o in range(co):
                # scalar (SMEM) weight broadcast * lane-dense row: pure VPU FMA
                accs[o] = accs[o] + w_ref[o, k] * row
        for o in range(co):
            ro = b * co + o
            o_ref[ro:ro + 1, :] = accs[o].astype(o_ref.dtype)


def conv3x3_forward(x, weight):
    """3x3 same-padding conv, stride 1, no bias.

    Args:
      x:      f32[N, C, H, W]   (PyTorch NCHW layout)
      weight: f32[Co, Ci, 3, 3] (PyTorch OIHW layout), Ci == C
    Returns:
      f32[N, Co, H, W]
    """
    n, c, h, w = x.shape
    co, ci, kh_, kw_ = weight.shape
    assert (kh_, kw_) == (3, 3) and ci == c
    hw = h * w
    kk = 9 * ci

    # Layout plumbing in the wrapper (cheap XLA pad / slice / reshape):
    #  * zero-pad spatially and extract the 9 shifted windows (im2col) so the
    #    kernel sees one lane-dense (rows, H*W) matrix,
    #  * flatten the filter to (Co, 9*Ci) with matching tap/channel order.
    xp = jnp.pad(x, ((0, 0), (0, 0), (1, 1), (1, 1)))            # (N, Ci, H+2, W+2)
    taps = [xp[:, :, kh:kh + h, kw:kw + w]                        # each (N, Ci, H, W)
            for kh in range(3) for kw in range(3)]
    patches = jnp.stack(taps, axis=1)                             # (N, 9, Ci, H, W)
    patches = patches.reshape(n * kk, hw)                         # (N*9*Ci, H*W)
    w_flat = jnp.transpose(weight, (0, 2, 3, 1)).reshape(co, kk)  # (Co, 9*Ci)

    out = pl.pallas_call(
        _conv3x3_kernel,
        out_shape=jax.ShapeDtypeStruct((n * co, hw), x.dtype),
        in_specs=[
            pl.BlockSpec(memory_space=pltpu.MemorySpace.SMEM),    # weights (scalars)
            pl.BlockSpec(memory_space=pltpu.MemorySpace.VMEM),    # im2col patches
        ],
        out_specs=pl.BlockSpec(memory_space=pltpu.MemorySpace.VMEM),
    )(w_flat, patches)

    # (N*Co, H*W) is already channel-major: a reshape recovers NCHW, no transpose.
    return out.reshape(n, co, h, w)


if __name__ == "__main__":
    key = jax.random.PRNGKey(0)
    kx, kw_key = jax.random.split(key)

    n_channels = 4
    x = jax.random.normal(kx, (2, n_channels, 16, 16), dtype=jnp.float32)
    # PyTorch-like kaiming-uniform init bound for a bias-free 3x3 conv.
    fan_in = n_channels * 3 * 3
    bound = 1.0 / (fan_in ** 0.5)
    weight = jax.random.uniform(kw_key, (n_channels, n_channels, 3, 3),
                                dtype=jnp.float32, minval=-bound, maxval=bound)

    out = jax.jit(conv3x3_forward)(x, weight)
    out = jax.block_until_ready(out)

    # Reference: XLA's conv with identical padding / layouts, exact precision.
    ref = jax.lax.conv_general_dilated(
        x, weight, window_strides=(1, 1), padding=((1, 1), (1, 1)),
        dimension_numbers=("NCHW", "OIHW", "NCHW"),
        precision=jax.lax.Precision.HIGHEST)

    assert out.shape == ref.shape and out.dtype == ref.dtype
    max_err = float(jnp.max(jnp.abs(out - ref)))
    assert max_err < 1e-4, f"max abs err {max_err}"

    print("KERNEL_OK")
</pallas_src>

<mosaic_0001>
module attributes {stable_mosaic.version = 11 : i64} {
  func.func @_conv3x3_kernel(%arg0: memref<4x36xf32, #tpu.memory_space<smem>>, %arg1: memref<72x256xf32, #tpu.memory_space<vmem>>, %arg2: memref<8x256xf32, #tpu.memory_space<vmem>>) attributes {dimension_semantics = [], scalar_prefetch = 0 : i64, scratch_operands = 0 : i64, tpu.core_type = #tpu.core_type<tc>} {
    %cst = arith.constant 0.000000e+00 : f32
    %0 = vector.broadcast %cst : f32 to vector<1x256xf32>
    %cst_0 = arith.constant 0.000000e+00 : f32
    %1 = vector.broadcast %cst_0 : f32 to vector<1x256xf32>
    %cst_1 = arith.constant 0.000000e+00 : f32
    %2 = vector.broadcast %cst_1 : f32 to vector<1x256xf32>
    %cst_2 = arith.constant 0.000000e+00 : f32
    %3 = vector.broadcast %cst_2 : f32 to vector<1x256xf32>
    %c0 = arith.constant 0 : index
    %c0_3 = arith.constant 0 : index
    %4 = vector.load %arg1[%c0, %c0_3] : memref<72x256xf32, #tpu.memory_space<vmem>>, vector<1x256xf32>
    %c0_4 = arith.constant 0 : index
    %c0_5 = arith.constant 0 : index
    %5 = memref.load %arg0[%c0_4, %c0_5] : memref<4x36xf32, #tpu.memory_space<smem>>
    %6 = vector.broadcast %5 : f32 to vector<1x256xf32>
    %7 = arith.mulf %6, %4 : vector<1x256xf32>
    %8 = arith.addf %0, %7 : vector<1x256xf32>
    %c1 = arith.constant 1 : index
    %c0_6 = arith.constant 0 : index
    %9 = memref.load %arg0[%c1, %c0_6] : memref<4x36xf32, #tpu.memory_space<smem>>
    %10 = vector.broadcast %9 : f32 to vector<1x256xf32>
    %11 = arith.mulf %10, %4 : vector<1x256xf32>
    %12 = arith.addf %1, %11 : vector<1x256xf32>
    %c2 = arith.constant 2 : index
    %c0_7 = arith.constant 0 : index
    %13 = memref.load %arg0[%c2, %c0_7] : memref<4x36xf32, #tpu.memory_space<smem>>
    %14 = vector.broadcast %13 : f32 to vector<1x256xf32>
    %15 = arith.mulf %14, %4 : vector<1x256xf32>
    %16 = arith.addf %2, %15 : vector<1x256xf32>
    %c3 = arith.constant 3 : index
    %c0_8 = arith.constant 0 : index
    %17 = memref.load %arg0[%c3, %c0_8] : memref<4x36xf32, #tpu.memory_space<smem>>
    %18 = vector.broadcast %17 : f32 to vector<1x256xf32>
    %19 = arith.mulf %18, %4 : vector<1x256xf32>
    %20 = arith.addf %3, %19 : vector<1x256xf32>
    %c1_9 = arith.constant 1 : index
    %c0_10 = arith.constant 0 : index
    %21 = vector.load %arg1[%c1_9, %c0_10] : memref<72x256xf32, #tpu.memory_space<vmem>>, vector<1x256xf32>
    %c0_11 = arith.constant 0 : index
    %c1_12 = arith.constant 1 : index
    %22 = memref.load %arg0[%c0_11, %c1_12] : memref<4x36xf32, #tpu.memory_space<smem>>
    %23 = vector.broadcast %22 : f32 to vector<1x256xf32>
    %24 = arith.mulf %23, %21 : vector<1x256xf32>
    %25 = arith.addf %8, %24 : vector<1x256xf32>
    %c1_13 = arith.constant 1 : index
    %c1_14 = arith.constant 1 : index
    %26 = memref.load %arg0[%c1_13, %c1_14] : memref<4x36xf32, #tpu.memory_space<smem>>
    %27 = vector.broadcast %26 : f32 to vector<1x256xf32>
    %28 = arith.mulf %27, %21 : vector<1x256xf32>
    %29 = arith.addf %12, %28 : vector<1x256xf32>
    %c2_15 = arith.constant 2 : index
    %c1_16 = arith.constant 1 : index
    %30 = memref.load %arg0[%c2_15, %c1_16] : memref<4x36xf32, #tpu.memory_space<smem>>
    %31 = vector.broadcast %30 : f32 to vector<1x256xf32>
    %32 = arith.mulf %31, %21 : vector<1x256xf32>
    %33 = arith.addf %16, %32 : vector<1x256xf32>
    %c3_17 = arith.constant 3 : index
    %c1_18 = arith.constant 1 : index
    %34 = memref.load %arg0[%c3_17, %c1_18] : memref<4x36xf32, #tpu.memory_space<smem>>
    %35 = vector.broadcast %34 : f32 to vector<1x256xf32>
    %36 = arith.mulf %35, %21 : vector<1x256xf32>
    %37 = arith.addf %20, %36 : vector<1x256xf32>
    %c2_19 = arith.constant 2 : index
    %c0_20 = arith.constant 0 : index
    %38 = vector.load %arg1[%c2_19, %c0_20] : memref<72x256xf32, #tpu.memory_space<vmem>>, vector<1x256xf32>
    %c0_21 = arith.constant 0 : index
    %c2_22 = arith.constant 2 : index
    %39 = memref.load %arg0[%c0_21, %c2_22] : memref<4x36xf32, #tpu.memory_space<smem>>
    %40 = vector.broadcast %39 : f32 to vector<1x256xf32>
    %41 = arith.mulf %40, %38 : vector<1x256xf32>
    %42 = arith.addf %25, %41 : vector<1x256xf32>
    %c1_23 = arith.constant 1 : index
    %c2_24 = arith.constant 2 : index
    %43 = memref.load %arg0[%c1_23, %c2_24] : memref<4x36xf32, #tpu.memory_space<smem>>
    %44 = vector.broadcast %43 : f32 to vector<1x256xf32>
    %45 = arith.mulf %44, %38 : vector<1x256xf32>
    %46 = arith.addf %29, %45 : vector<1x256xf32>
    %c2_25 = arith.constant 2 : index
    %c2_26 = arith.constant 2 : index
    %47 = memref.load %arg0[%c2_25, %c2_26] : memref<4x36xf32, #tpu.memory_space<smem>>
    %48 = vector.broadcast %47 : f32 to vector<1x256xf32>
    %49 = arith.mulf %48, %38 : vector<1x256xf32>
    %50 = arith.addf %33, %49 : vector<1x256xf32>
    %c3_27 = arith.constant 3 : index
    %c2_28 = arith.constant 2 : index
    %51 = memref.load %arg0[%c3_27, %c2_28] : memref<4x36xf32, #tpu.memory_space<smem>>
    %52 = vector.broadcast %51 : f32 to vector<1x256xf32>
    %53 = arith.mulf %52, %38 : vector<1x256xf32>
    %54 = arith.addf %37, %53 : vector<1x256xf32>
    %c3_29 = arith.constant 3 : index
    %c0_30 = arith.constant 0 : index
    %55 = vector.load %arg1[%c3_29, %c0_30] : memref<72x256xf32, #tpu.memory_space<vmem>>, vector<1x256xf32>
    %c0_31 = arith.constant 0 : index
    %c3_32 = arith.constant 3 : index
    %56 = memref.load %arg0[%c0_31, %c3_32] : memref<4x36xf32, #tpu.memory_space<smem>>
    %57 = vector.broadcast %56 : f32 to vector<1x256xf32>
    %58 = arith.mulf %57, %55 : vector<1x256xf32>
    %59 = arith.addf %42, %58 : vector<1x256xf32>
    %c1_33 = arith.constant 1 : index
    %c3_34 = arith.constant 3 : index
    %60 = memref.load %arg0[%c1_33, %c3_34] : memref<4x36xf32, #tpu.memory_space<smem>>
    %61 = vector.broadcast %60 : f32 to vector<1x256xf32>
    %62 = arith.mulf %61, %55 : vector<1x256xf32>
    %63 = arith.addf %46, %62 : vector<1x256xf32>
    %c2_35 = arith.constant 2 : index
    %c3_36 = arith.constant 3 : index
    %64 = memref.load %arg0[%c2_35, %c3_36] : memref<4x36xf32, #tpu.memory_space<smem>>
    %65 = vector.broadcast %64 : f32 to vector<1x256xf32>
    %66 = arith.mulf %65, %55 : vector<1x256xf32>
    %67 = arith.addf %50, %66 : vector<1x256xf32>
    %c3_37 = arith.constant 3 : index
    %c3_38 = arith.constant 3 : index
    %68 = memref.load %arg0[%c3_37, %c3_38] : memref<4x36xf32, #tpu.memory_space<smem>>
    %69 = vector.broadcast %68 : f32 to vector<1x256xf32>
    %70 = arith.mulf %69, %55 : vector<1x256xf32>
    %71 = arith.addf %54, %70 : vector<1x256xf32>
    %c4 = arith.constant 4 : index
    %c0_39 = arith.constant 0 : index
    %72 = vector.load %arg1[%c4, %c0_39] : memref<72x256xf32, #tpu.memory_space<vmem>>, vector<1x256xf32>
    %c0_40 = arith.constant 0 : index
    %c4_41 = arith.constant 4 : index
    %73 = memref.load %arg0[%c0_40, %c4_41] : memref<4x36xf32, #tpu.memory_space<smem>>
    %74 = vector.broadcast %73 : f32 to vector<1x256xf32>
    %75 = arith.mulf %74, %72 : vector<1x256xf32>
    %76 = arith.addf %59, %75 : vector<1x256xf32>
    %c1_42 = arith.constant 1 : index
    %c4_43 = arith.constant 4 : index
    %77 = memref.load %arg0[%c1_42, %c4_43] : memref<4x36xf32, #tpu.memory_space<smem>>
    %78 = vector.broadcast %77 : f32 to vector<1x256xf32>
    %79 = arith.mulf %78, %72 : vector<1x256xf32>
    %80 = arith.addf %63, %79 : vector<1x256xf32>
    %c2_44 = arith.constant 2 : index
    %c4_45 = arith.constant 4 : index
    %81 = memref.load %arg0[%c2_44, %c4_45] : memref<4x36xf32, #tpu.memory_space<smem>>
    %82 = vector.broadcast %81 : f32 to vector<1x256xf32>
    %83 = arith.mulf %82, %72 : vector<1x256xf32>
    %84 = arith.addf %67, %83 : vector<1x256xf32>
    %c3_46 = arith.constant 3 : index
    %c4_47 = arith.constant 4 : index
    %85 = memref.load %arg0[%c3_46, %c4_47] : memref<4x36xf32, #tpu.memory_space<smem>>
    %86 = vector.broadcast %85 : f32 to vector<1x256xf32>
    %87 = arith.mulf %86, %72 : vector<1x256xf32>
    %88 = arith.addf %71, %87 : vector<1x256xf32>
    %c5 = arith.constant 5 : index
    %c0_48 = arith.constant 0 : index
    %89 = vector.load %arg1[%c5, %c0_48] : memref<72x256xf32, #tpu.memory_space<vmem>>, vector<1x256xf32>
    %c0_49 = arith.constant 0 : index
    %c5_50 = arith.constant 5 : index
    %90 = memref.load %arg0[%c0_49, %c5_50] : memref<4x36xf32, #tpu.memory_space<smem>>
    %91 = vector.broadcast %90 : f32 to vector<1x256xf32>
    %92 = arith.mulf %91, %89 : vector<1x256xf32>
    %93 = arith.addf %76, %92 : vector<1x256xf32>
    %c1_51 = arith.constant 1 : index
    %c5_52 = arith.constant 5 : index
    %94 = memref.load %arg0[%c1_51, %c5_52] : memref<4x36xf32, #tpu.memory_space<smem>>
    %95 = vector.broadcast %94 : f32 to vector<1x256xf32>
    %96 = arith.mulf %95, %89 : vector<1x256xf32>
    %97 = arith.addf %80, %96 : vector<1x256xf32>
    %c2_53 = arith.constant 2 : index
    %c5_54 = arith.constant 5 : index
    %98 = memref.load %arg0[%c2_53, %c5_54] : memref<4x36xf32, #tpu.memory_space<smem>>
    %99 = vector.broadcast %98 : f32 to vector<1x256xf32>
    %100 = arith.mulf %99, %89 : vector<1x256xf32>
    %101 = arith.addf %84, %100 : vector<1x256xf32>
    %c3_55 = arith.constant 3 : index
    %c5_56 = arith.constant 5 : index
    %102 = memref.load %arg0[%c3_55, %c5_56] : memref<4x36xf32, #tpu.memory_space<smem>>
    %103 = vector.broadcast %102 : f32 to vector<1x256xf32>
    %104 = arith.mulf %103, %89 : vector<1x256xf32>
    %105 = arith.addf %88, %104 : vector<1x256xf32>
    %c6 = arith.constant 6 : index
    %c0_57 = arith.constant 0 : index
    %106 = vector.load %arg1[%c6, %c0_57] : memref<72x256xf32, #tpu.memory_space<vmem>>, vector<1x256xf32>
    %c0_58 = arith.constant 0 : index
    %c6_59 = arith.constant 6 : index
    %107 = memref.load %arg0[%c0_58, %c6_59] : memref<4x36xf32, #tpu.memory_space<smem>>
    %108 = vector.broadcast %107 : f32 to vector<1x256xf32>
    %109 = arith.mulf %108, %106 : vector<1x256xf32>
    %110 = arith.addf %93, %109 : vector<1x256xf32>
    %c1_60 = arith.constant 1 : index
    %c6_61 = arith.constant 6 : index
    %111 = memref.load %arg0[%c1_60, %c6_61] : memref<4x36xf32, #tpu.memory_space<smem>>
    %112 = vector.broadcast %111 : f32 to vector<1x256xf32>
    %113 = arith.mulf %112, %106 : vector<1x256xf32>
    %114 = arith.addf %97, %113 : vector<1x256xf32>
    %c2_62 = arith.constant 2 : index
    %c6_63 = arith.constant 6 : index
    %115 = memref.load %arg0[%c2_62, %c6_63] : memref<4x36xf32, #tpu.memory_space<smem>>
    %116 = vector.broadcast %115 : f32 to vector<1x256xf32>
    %117 = arith.mulf %116, %106 : vector<1x256xf32>
    %118 = arith.addf %101, %117 : vector<1x256xf32>
    %c3_64 = arith.constant 3 : index
    %c6_65 = arith.constant 6 : index
    %119 = memref.load %arg0[%c3_64, %c6_65] : memref<4x36xf32, #tpu.memory_space<smem>>
    %120 = vector.broadcast %119 : f32 to vector<1x256xf32>
    %121 = arith.mulf %120, %106 : vector<1x256xf32>
    %122 = arith.addf %105, %121 : vector<1x256xf32>
    %c7 = arith.constant 7 : index
    %c0_66 = arith.constant 0 : index
    %123 = vector.load %arg1[%c7, %c0_66] : memref<72x256xf32, #tpu.memory_space<vmem>>, vector<1x256xf32>
    %c0_67 = arith.constant 0 : index
    %c7_68 = arith.constant 7 : index
    %124 = memref.load %arg0[%c0_67, %c7_68] : memref<4x36xf32, #tpu.memory_space<smem>>
    %125 = vector.broadcast %124 : f32 to vector<1x256xf32>
    %126 = arith.mulf %125, %123 : vector<1x256xf32>
    %127 = arith.addf %110, %126 : vector<1x256xf32>
    %c1_69 = arith.constant 1 : index
    %c7_70 = arith.constant 7 : index
    %128 = memref.load %arg0[%c1_69, %c7_70] : memref<4x36xf32, #tpu.memory_space<smem>>
    %129 = vector.broadcast %128 : f32 to vector<1x256xf32>
    %130 = arith.mulf %129, %123 : vector<1x256xf32>
    %131 = arith.addf %114, %130 : vector<1x256xf32>
    %c2_71 = arith.constant 2 : index
    %c7_72 = arith.constant 7 : index
    %132 = memref.load %arg0[%c2_71, %c7_72] : memref<4x36xf32, #tpu.memory_space<smem>>
    %133 = vector.broadcast %132 : f32 to vector<1x256xf32>
    %134 = arith.mulf %133, %123 : vector<1x256xf32>
    %135 = arith.addf %118, %134 : vector<1x256xf32>
    %c3_73 = arith.constant 3 : index
    %c7_74 = arith.constant 7 : index
    %136 = memref.load %arg0[%c3_73, %c7_74] : memref<4x36xf32, #tpu.memory_space<smem>>
    %137 = vector.broadcast %136 : f32 to vector<1x256xf32>
    %138 = arith.mulf %137, %123 : vector<1x256xf32>
    %139 = arith.addf %122, %138 : vector<1x256xf32>
    %c8 = arith.constant 8 : index
    %c0_75 = arith.constant 0 : index
    %140 = vector.load %arg1[%c8, %c0_75] : memref<72x256xf32, #tpu.memory_space<vmem>>, vector<1x256xf32>
    %c0_76 = arith.constant 0 : index
    %c8_77 = arith.constant 8 : index
    %141 = memref.load %arg0[%c0_76, %c8_77] : memref<4x36xf32, #tpu.memory_space<smem>>
    %142 = vector.broadcast %141 : f32 to vector<1x256xf32>
    %143 = arith.mulf %142, %140 : vector<1x256xf32>
    %144 = arith.addf %127, %143 : vector<1x256xf32>
    %c1_78 = arith.constant 1 : index
    %c8_79 = arith.constant 8 : index
    %145 = memref.load %arg0[%c1_78, %c8_79] : memref<4x36xf32, #tpu.memory_space<smem>>
    %146 = vector.broadcast %145 : f32 to vector<1x256xf32>
    %147 = arith.mulf %146, %140 : vector<1x256xf32>
    %148 = arith.addf %131, %147 : vector<1x256xf32>
    %c2_80 = arith.constant 2 : index
    %c8_81 = arith.constant 8 : index
    %149 = memref.load %arg0[%c2_80, %c8_81] : memref<4x36xf32, #tpu.memory_space<smem>>
    %150 = vector.broadcast %149 : f32 to vector<1x256xf32>
    %151 = arith.mulf %150, %140 : vector<1x256xf32>
    %152 = arith.addf %135, %151 : vector<1x256xf32>
    %c3_82 = arith.constant 3 : index
    %c8_83 = arith.constant 8 : index
    %153 = memref.load %arg0[%c3_82, %c8_83] : memref<4x36xf32, #tpu.memory_space<smem>>
    %154 = vector.broadcast %153 : f32 to vector<1x256xf32>
    %155 = arith.mulf %154, %140 : vector<1x256xf32>
    %156 = arith.addf %139, %155 : vector<1x256xf32>
    %c9 = arith.constant 9 : index
    %c0_84 = arith.constant 0 : index
    %157 = vector.load %arg1[%c9, %c0_84] : memref<72x256xf32, #tpu.memory_space<vmem>>, vector<1x256xf32>
    %c0_85 = arith.constant 0 : index
    %c9_86 = arith.constant 9 : index
    %158 = memref.load %arg0[%c0_85, %c9_86] : memref<4x36xf32, #tpu.memory_space<smem>>
    %159 = vector.broadcast %158 : f32 to vector<1x256xf32>
    %160 = arith.mulf %159, %157 : vector<1x256xf32>
    %161 = arith.addf %144, %160 : vector<1x256xf32>
    %c1_87 = arith.constant 1 : index
    %c9_88 = arith.constant 9 : index
    %162 = memref.load %arg0[%c1_87, %c9_88] : memref<4x36xf32, #tpu.memory_space<smem>>
    %163 = vector.broadcast %162 : f32 to vector<1x256xf32>
    %164 = arith.mulf %163, %157 : vector<1x256xf32>
    %165 = arith.addf %148, %164 : vector<1x256xf32>
    %c2_89 = arith.constant 2 : index
    %c9_90 = arith.constant 9 : index
    %166 = memref.load %arg0[%c2_89, %c9_90] : memref<4x36xf32, #tpu.memory_space<smem>>
    %167 = vector.broadcast %166 : f32 to vector<1x256xf32>
    %168 = arith.mulf %167, %157 : vector<1x256xf32>
    %169 = arith.addf %152, %168 : vector<1x256xf32>
    %c3_91 = arith.constant 3 : index
    %c9_92 = arith.constant 9 : index
    %170 = memref.load %arg0[%c3_91, %c9_92] : memref<4x36xf32, #tpu.memory_space<smem>>
    %171 = vector.broadcast %170 : f32 to vector<1x256xf32>
    %172 = arith.mulf %171, %157 : vector<1x256xf32>
    %173 = arith.addf %156, %172 : vector<1x256xf32>
    %c10 = arith.constant 10 : index
    %c0_93 = arith.constant 0 : index
    %174 = vector.load %arg1[%c10, %c0_93] : memref<72x256xf32, #tpu.memory_space<vmem>>, vector<1x256xf32>
    %c0_94 = arith.constant 0 : index
    %c10_95 = arith.constant 10 : index
    %175 = memref.load %arg0[%c0_94, %c10_95] : memref<4x36xf32, #tpu.memory_space<smem>>
    %176 = vector.broadcast %175 : f32 to vector<1x256xf32>
    %177 = arith.mulf %176, %174 : vector<1x256xf32>
    %178 = arith.addf %161, %177 : vector<1x256xf32>
    %c1_96 = arith.constant 1 : index
    %c10_97 = arith.constant 10 : index
    %179 = memref.load %arg0[%c1_96, %c10_97] : memref<4x36xf32, #tpu.memory_space<smem>>
    %180 = vector.broadcast %179 : f32 to vector<1x256xf32>
    %181 = arith.mulf %180, %174 : vector<1x256xf32>
    %182 = arith.addf %165, %181 : vector<1x256xf32>
    %c2_98 = arith.constant 2 : index
    %c10_99 = arith.constant 10 : index
    %183 = memref.load %arg0[%c2_98, %c10_99] : memref<4x36xf32, #tpu.memory_space<smem>>
    %184 = vector.broadcast %183 : f32 to vector<1x256xf32>
    %185 = arith.mulf %184, %174 : vector<1x256xf32>
    %186 = arith.addf %169, %185 : vector<1x256xf32>
    %c3_100 = arith.constant 3 : index
    %c10_101 = arith.constant 10 : index
    %187 = memref.load %arg0[%c3_100, %c10_101] : memref<4x36xf32, #tpu.memory_space<smem>>
    %188 = vector.broadcast %187 : f32 to vector<1x256xf32>
    %189 = arith.mulf %188, %174 : vector<1x256xf32>
    %190 = arith.addf %173, %189 : vector<1x256xf32>
    %c11 = arith.constant 11 : index
    %c0_102 = arith.constant 0 : index
    %191 = vector.load %arg1[%c11, %c0_102] : memref<72x256xf32, #tpu.memory_space<vmem>>, vector<1x256xf32>
    %c0_103 = arith.constant 0 : index
    %c11_104 = arith.constant 11 : index
    %192 = memref.load %arg0[%c0_103, %c11_104] : memref<4x36xf32, #tpu.memory_space<smem>>
    %193 = vector.broadcast %192 : f32 to vector<1x256xf32>
    %194 = arith.mulf %193, %191 : vector<1x256xf32>
    %195 = arith.addf %178, %194 : vector<1x256xf32>
    %c1_105 = arith.constant 1 : index
    %c11_106 = arith.constant 11 : index
    %196 = memref.load %arg0[%c1_105, %c11_106] : memref<4x36xf32, #tpu.memory_space<smem>>
    %197 = vector.broadcast %196 : f32 to vector<1x256xf32>
    %198 = arith.mulf %197, %191 : vector<1x256xf32>
    %199 = arith.addf %182, %198 : vector<1x256xf32>
    %c2_107 = arith.constant 2 : index
    %c11_108 = arith.constant 11 : index
    %200 = memref.load %arg0[%c2_107, %c11_108] : memref<4x36xf32, #tpu.memory_space<smem>>
    %201 = vector.broadcast %200 : f32 to vector<1x256xf32>
    %202 = arith.mulf %201, %191 : vector<1x256xf32>
    %203 = arith.addf %186, %202 : vector<1x256xf32>
    %c3_109 = arith.constant 3 : index
    %c11_110 = arith.constant 11 : index
    %204 = memref.load %arg0[%c3_109, %c11_110] : memref<4x36xf32, #tpu.memory_space<smem>>
    %205 = vector.broadcast %204 : f32 to vector<1x256xf32>
    %206 = arith.mulf %205, %191 : vector<1x256xf32>
    %207 = arith.addf %190, %206 : vector<1x256xf32>
    %c12 = arith.constant 12 : index
    %c0_111 = arith.constant 0 : index
    %208 = vector.load %arg1[%c12, %c0_111] : memref<72x256xf32, #tpu.memory_space<vmem>>, vector<1x256xf32>
    %c0_112 = arith.constant 0 : index
    %c12_113 = arith.constant 12 : index
    %209 = memref.load %arg0[%c0_112, %c12_113] : memref<4x36xf32, #tpu.memory_space<smem>>
    %210 = vector.broadcast %209 : f32 to vector<1x256xf32>
    %211 = arith.mulf %210, %208 : vector<1x256xf32>
    %212 = arith.addf %195, %211 : vector<1x256xf32>
    %c1_114 = arith.constant 1 : index
    %c12_115 = arith.constant 12 : index
    %213 = memref.load %arg0[%c1_114, %c12_115] : memref<4x36xf32, #tpu.memory_space<smem>>
    %214 = vector.broadcast %213 : f32 to vector<1x256xf32>
    %215 = arith.mulf %214, %208 : vector<1x256xf32>
    %216 = arith.addf %199, %215 : vector<1x256xf32>
    %c2_116 = arith.constant 2 : index
    %c12_117 = arith.constant 12 : index
    %217 = memref.load %arg0[%c2_116, %c12_117] : memref<4x36xf32, #tpu.memory_space<smem>>
    %218 = vector.broadcast %217 : f32 to vector<1x256xf32>
    %219 = arith.mulf %218, %208 : vector<1x256xf32>
    %220 = arith.addf %203, %219 : vector<1x256xf32>
    %c3_118 = arith.constant 3 : index
    %c12_119 = arith.constant 12 : index
    %221 = memref.load %arg0[%c3_118, %c12_119] : memref<4x36xf32, #tpu.memory_space<smem>>
    %222 = vector.broadcast %221 : f32 to vector<1x256xf32>
    %223 = arith.mulf %222, %208 : vector<1x256xf32>
    %224 = arith.addf %207, %223 : vector<1x256xf32>
    %c13 = arith.constant 13 : index
    %c0_120 = arith.constant 0 : index
    %225 = vector.load %arg1[%c13, %c0_120] : memref<72x256xf32, #tpu.memory_space<vmem>>, vector<1x256xf32>
    %c0_121 = arith.constant 0 : index
    %c13_122 = arith.constant 13 : index
    %226 = memref.load %arg0[%c0_121, %c13_122] : memref<4x36xf32, #tpu.memory_space<smem>>
    %227 = vector.broadcast %226 : f32 to vector<1x256xf32>
    %228 = arith.mulf %227, %225 : vector<1x256xf32>
    %229 = arith.addf %212, %228 : vector<1x256xf32>
    %c1_123 = arith.constant 1 : index
    %c13_124 = arith.constant 13 : index
    %230 = memref.load %arg0[%c1_123, %c13_124] : memref<4x36xf32, #tpu.memory_space<smem>>
    %231 = vector.broadcast %230 : f32 to vector<1x256xf32>
    %232 = arith.mulf %231, %225 : vector<1x256xf32>
    %233 = arith.addf %216, %232 : vector<1x256xf32>
    %c2_125 = arith.constant 2 : index
    %c13_126 = arith.constant 13 : index
    %234 = memref.load %arg0[%c2_125, %c13_126] : memref<4x36xf32, #tpu.memory_space<smem>>
    %235 = vector.broadcast %234 : f32 to vector<1x256xf32>
    %236 = arith.mulf %235, %225 : vector<1x256xf32>
    %237 = arith.addf %220, %236 : vector<1x256xf32>
    %c3_127 = arith.constant 3 : index
    %c13_128 = arith.constant 13 : index
    %238 = memref.load %arg0[%c3_127, %c13_128] : memref<4x36xf32, #tpu.memory_space<smem>>
    %239 = vector.broadcast %238 : f32 to vector<1x256xf32>
    %240 = arith.mulf %239, %225 : vector<1x256xf32>
    %241 = arith.addf %224, %240 : vector<1x256xf32>
    %c14 = arith.constant 14 : index
    %c0_129 = arith.constant 0 : index
    %242 = vector.load %arg1[%c14, %c0_129] : memref<72x256xf32, #tpu.memory_space<vmem>>, vector<1x256xf32>
    %c0_130 = arith.constant 0 : index
    %c14_131 = arith.constant 14 : index
    %243 = memref.load %arg0[%c0_130, %c14_131] : memref<4x36xf32, #tpu.memory_space<smem>>
    %244 = vector.broadcast %243 : f32 to vector<1x256xf32>
    %245 = arith.mulf %244, %242 : vector<1x256xf32>
    %246 = arith.addf %229, %245 : vector<1x256xf32>
    %c1_132 = arith.constant 1 : index
    %c14_133 = arith.constant 14 : index
    %247 = memref.load %arg0[%c1_132, %c14_133] : memref<4x36xf32, #tpu.memory_space<smem>>
    %248 = vector.broadcast %247 : f32 to vector<1x256xf32>
    %249 = arith.mulf %248, %242 : vector<1x256xf32>
    %250 = arith.addf %233, %249 : vector<1x256xf32>
    %c2_134 = arith.constant 2 : index
    %c14_135 = arith.constant 14 : index
    %251 = memref.load %arg0[%c2_134, %c14_135] : memref<4x36xf32, #tpu.memory_space<smem>>
    %252 = vector.broadcast %251 : f32 to vector<1x256xf32>
    %253 = arith.mulf %252, %242 : vector<1x256xf32>
    %254 = arith.addf %237, %253 : vector<1x256xf32>
    %c3_136 = arith.constant 3 : index
    %c14_137 = arith.constant 14 : index
    %255 = memref.load %arg0[%c3_136, %c14_137] : memref<4x36xf32, #tpu.memory_space<smem>>
    %256 = vector.broadcast %255 : f32 to vector<1x256xf32>
    %257 = arith.mulf %256, %242 : vector<1x256xf32>
    %258 = arith.addf %241, %257 : vector<1x256xf32>
    %c15 = arith.constant 15 : index
    %c0_138 = arith.constant 0 : index
    %259 = vector.load %arg1[%c15, %c0_138] : memref<72x256xf32, #tpu.memory_space<vmem>>, vector<1x256xf32>
    %c0_139 = arith.constant 0 : index
    %c15_140 = arith.constant 15 : index
    %260 = memref.load %arg0[%c0_139, %c15_140] : memref<4x36xf32, #tpu.memory_space<smem>>
    %261 = vector.broadcast %260 : f32 to vector<1x256xf32>
    %262 = arith.mulf %261, %259 : vector<1x256xf32>
    %263 = arith.addf %246, %262 : vector<1x256xf32>
    %c1_141 = arith.constant 1 : index
    %c15_142 = arith.constant 15 : index
    %264 = memref.load %arg0[%c1_141, %c15_142] : memref<4x36xf32, #tpu.memory_space<smem>>
    %265 = vector.broadcast %264 : f32 to vector<1x256xf32>
    %266 = arith.mulf %265, %259 : vector<1x256xf32>
    %267 = arith.addf %250, %266 : vector<1x256xf32>
    %c2_143 = arith.constant 2 : index
    %c15_144 = arith.constant 15 : index
    %268 = memref.load %arg0[%c2_143, %c15_144] : memref<4x36xf32, #tpu.memory_space<smem>>
    %269 = vector.broadcast %268 : f32 to vector<1x256xf32>
    %270 = arith.mulf %269, %259 : vector<1x256xf32>
    %271 = arith.addf %254, %270 : vector<1x256xf32>
    %c3_145 = arith.constant 3 : index
    %c15_146 = arith.constant 15 : index
    %272 = memref.load %arg0[%c3_145, %c15_146] : memref<4x36xf32, #tpu.memory_space<smem>>
    %273 = vector.broadcast %272 : f32 to vector<1x256xf32>
    %274 = arith.mulf %273, %259 : vector<1x256xf32>
    %275 = arith.addf %258, %274 : vector<1x256xf32>
    %c16 = arith.constant 16 : index
    %c0_147 = arith.constant 0 : index
    %276 = vector.load %arg1[%c16, %c0_147] : memref<72x256xf32, #tpu.memory_space<vmem>>, vector<1x256xf32>
    %c0_148 = arith.constant 0 : index
    %c16_149 = arith.constant 16 : index
    %277 = memref.load %arg0[%c0_148, %c16_149] : memref<4x36xf32, #tpu.memory_space<smem>>
    %278 = vector.broadcast %277 : f32 to vector<1x256xf32>
    %279 = arith.mulf %278, %276 : vector<1x256xf32>
    %280 = arith.addf %263, %279 : vector<1x256xf32>
    %c1_150 = arith.constant 1 : index
    %c16_151 = arith.constant 16 : index
    %281 = memref.load %arg0[%c1_150, %c16_151] : memref<4x36xf32, #tpu.memory_space<smem>>
    %282 = vector.broadcast %281 : f32 to vector<1x256xf32>
    %283 = arith.mulf %282, %276 : vector<1x256xf32>
    %284 = arith.addf %267, %283 : vector<1x256xf32>
    %c2_152 = arith.constant 2 : index
    %c16_153 = arith.constant 16 : index
    %285 = memref.load %arg0[%c2_152, %c16_153] : memref<4x36xf32, #tpu.memory_space<smem>>
    %286 = vector.broadcast %285 : f32 to vector<1x256xf32>
    %287 = arith.mulf %286, %276 : vector<1x256xf32>
    %288 = arith.addf %271, %287 : vector<1x256xf32>
    %c3_154 = arith.constant 3 : index
    %c16_155 = arith.constant 16 : index
    %289 = memref.load %arg0[%c3_154, %c16_155] : memref<4x36xf32, #tpu.memory_space<smem>>
    %290 = vector.broadcast %289 : f32 to vector<1x256xf32>
    %291 = arith.mulf %290, %276 : vector<1x256xf32>
    %292 = arith.addf %275, %291 : vector<1x256xf32>
    %c17 = arith.constant 17 : index
    %c0_156 = arith.constant 0 : index
    %293 = vector.load %arg1[%c17, %c0_156] : memref<72x256xf32, #tpu.memory_space<vmem>>, vector<1x256xf32>
    %c0_157 = arith.constant 0 : index
    %c17_158 = arith.constant 17 : index
    %294 = memref.load %arg0[%c0_157, %c17_158] : memref<4x36xf32, #tpu.memory_space<smem>>
    %295 = vector.broadcast %294 : f32 to vector<1x256xf32>
    %296 = arith.mulf %295, %293 : vector<1x256xf32>
    %297 = arith.addf %280, %296 : vector<1x256xf32>
    %c1_159 = arith.constant 1 : index
    %c17_160 = arith.constant 17 : index
    %298 = memref.load %arg0[%c1_159, %c17_160] : memref<4x36xf32, #tpu.memory_space<smem>>
    %299 = vector.broadcast %298 : f32 to vector<1x256xf32>
    %300 = arith.mulf %299, %293 : vector<1x256xf32>
    %301 = arith.addf %284, %300 : vector<1x256xf32>
    %c2_161 = arith.constant 2 : index
    %c17_162 = arith.constant 17 : index
    %302 = memref.load %arg0[%c2_161, %c17_162] : memref<4x36xf32, #tpu.memory_space<smem>>
    %303 = vector.broadcast %302 : f32 to vector<1x256xf32>
    %304 = arith.mulf %303, %293 : vector<1x256xf32>
    %305 = arith.addf %288, %304 : vector<1x256xf32>
    %c3_163 = arith.constant 3 : index
    %c17_164 = arith.constant 17 : index
    %306 = memref.load %arg0[%c3_163, %c17_164] : memref<4x36xf32, #tpu.memory_space<smem>>
    %307 = vector.broadcast %306 : f32 to vector<1x256xf32>
    %308 = arith.mulf %307, %293 : vector<1x256xf32>
    %309 = arith.addf %292, %308 : vector<1x256xf32>
    %c18 = arith.constant 18 : index
    %c0_165 = arith.constant 0 : index
    %310 = vector.load %arg1[%c18, %c0_165] : memref<72x256xf32, #tpu.memory_space<vmem>>, vector<1x256xf32>
    %c0_166 = arith.constant 0 : index
    %c18_167 = arith.constant 18 : index
    %311 = memref.load %arg0[%c0_166, %c18_167] : memref<4x36xf32, #tpu.memory_space<smem>>
    %312 = vector.broadcast %311 : f32 to vector<1x256xf32>
    %313 = arith.mulf %312, %310 : vector<1x256xf32>
    %314 = arith.addf %297, %313 : vector<1x256xf32>
    %c1_168 = arith.constant 1 : index
    %c18_169 = arith.constant 18 : index
    %315 = memref.load %arg0[%c1_168, %c18_169] : memref<4x36xf32, #tpu.memory_space<smem>>
    %316 = vector.broadcast %315 : f32 to vector<1x256xf32>
    %317 = arith.mulf %316, %310 : vector<1x256xf32>
    %318 = arith.addf %301, %317 : vector<1x256xf32>
    %c2_170 = arith.constant 2 : index
    %c18_171 = arith.constant 18 : index
    %319 = memref.load %arg0[%c2_170, %c18_171] : memref<4x36xf32, #tpu.memory_space<smem>>
    %320 = vector.broadcast %319 : f32 to vector<1x256xf32>
    %321 = arith.mulf %320, %310 : vector<1x256xf32>
    %322 = arith.addf %305, %321 : vector<1x256xf32>
    %c3_172 = arith.constant 3 : index
    %c18_173 = arith.constant 18 : index
    %323 = memref.load %arg0[%c3_172, %c18_173] : memref<4x36xf32, #tpu.memory_space<smem>>
    %324 = vector.broadcast %323 : f32 to vector<1x256xf32>
    %325 = arith.mulf %324, %310 : vector<1x256xf32>
    %326 = arith.addf %309, %325 : vector<1x256xf32>
    %c19 = arith.constant 19 : index
    %c0_174 = arith.constant 0 : index
    %327 = vector.load %arg1[%c19, %c0_174] : memref<72x256xf32, #tpu.memory_space<vmem>>, vector<1x256xf32>
    %c0_175 = arith.constant 0 : index
    %c19_176 = arith.constant 19 : index
    %328 = memref.load %arg0[%c0_175, %c19_176] : memref<4x36xf32, #tpu.memory_space<smem>>
    %329 = vector.broadcast %328 : f32 to vector<1x256xf32>
    %330 = arith.mulf %329, %327 : vector<1x256xf32>
    %331 = arith.addf %314, %330 : vector<1x256xf32>
    %c1_177 = arith.constant 1 : index
    %c19_178 = arith.constant 19 : index
    %332 = memref.load %arg0[%c1_177, %c19_178] : memref<4x36xf32, #tpu.memory_space<smem>>
    %333 = vector.broadcast %332 : f32 to vector<1x256xf32>
    %334 = arith.mulf %333, %327 : vector<1x256xf32>
    %335 = arith.addf %318, %334 : vector<1x256xf32>
    %c2_179 = arith.constant 2 : index
    %c19_180 = arith.constant 19 : index
    %336 = memref.load %arg0[%c2_179, %c19_180] : memref<4x36xf32, #tpu.memory_space<smem>>
    %337 = vector.broadcast %336 : f32 to vector<1x256xf32>
    %338 = arith.mulf %337, %327 : vector<1x256xf32>
    %339 = arith.addf %322, %338 : vector<1x256xf32>
    %c3_181 = arith.constant 3 : index
    %c19_182 = arith.constant 19 : index
    %340 = memref.load %arg0[%c3_181, %c19_182] : memref<4x36xf32, #tpu.memory_space<smem>>
    %341 = vector.broadcast %340 : f32 to vector<1x256xf32>
    %342 = arith.mulf %341, %327 : vector<1x256xf32>
    %343 = arith.addf %326, %342 : vector<1x256xf32>
    %c20 = arith.constant 20 : index
    %c0_183 = arith.constant 0 : index
    %344 = vector.load %arg1[%c20, %c0_183] : memref<72x256xf32, #tpu.memory_space<vmem>>, vector<1x256xf32>
    %c0_184 = arith.constant 0 : index
    %c20_185 = arith.constant 20 : index
    %345 = memref.load %arg0[%c0_184, %c20_185] : memref<4x36xf32, #tpu.memory_space<smem>>
    %346 = vector.broadcast %345 : f32 to vector<1x256xf32>
    %347 = arith.mulf %346, %344 : vector<1x256xf32>
    %348 = arith.addf %331, %347 : vector<1x256xf32>
    %c1_186 = arith.constant 1 : index
    %c20_187 = arith.constant 20 : index
    %349 = memref.load %arg0[%c1_186, %c20_187] : memref<4x36xf32, #tpu.memory_space<smem>>
    %350 = vector.broadcast %349 : f32 to vector<1x256xf32>
    %351 = arith.mulf %350, %344 : vector<1x256xf32>
    %352 = arith.addf %335, %351 : vector<1x256xf32>
    %c2_188 = arith.constant 2 : index
    %c20_189 = arith.constant 20 : index
    %353 = memref.load %arg0[%c2_188, %c20_189] : memref<4x36xf32, #tpu.memory_space<smem>>
    %354 = vector.broadcast %353 : f32 to vector<1x256xf32>
    %355 = arith.mulf %354, %344 : vector<1x256xf32>
    %356 = arith.addf %339, %355 : vector<1x256xf32>
    %c3_190 = arith.constant 3 : index
    %c20_191 = arith.constant 20 : index
    %357 = memref.load %arg0[%c3_190, %c20_191] : memref<4x36xf32, #tpu.memory_space<smem>>
    %358 = vector.broadcast %357 : f32 to vector<1x256xf32>
    %359 = arith.mulf %358, %344 : vector<1x256xf32>
    %360 = arith.addf %343, %359 : vector<1x256xf32>
    %c21 = arith.constant 21 : index
    %c0_192 = arith.constant 0 : index
    %361 = vector.load %arg1[%c21, %c0_192] : memref<72x256xf32, #tpu.memory_space<vmem>>, vector<1x256xf32>
    %c0_193 = arith.constant 0 : index
    %c21_194 = arith.constant 21 : index
    %362 = memref.load %arg0[%c0_193, %c21_194] : memref<4x36xf32, #tpu.memory_space<smem>>
    %363 = vector.broadcast %362 : f32 to vector<1x256xf32>
    %364 = arith.mulf %363, %361 : vector<1x256xf32>
    %365 = arith.addf %348, %364 : vector<1x256xf32>
    %c1_195 = arith.constant 1 : index
    %c21_196 = arith.constant 21 : index
    %366 = memref.load %arg0[%c1_195, %c21_196] : memref<4x36xf32, #tpu.memory_space<smem>>
    %367 = vector.broadcast %366 : f32 to vector<1x256xf32>
    %368 = arith.mulf %367, %361 : vector<1x256xf32>
    %369 = arith.addf %352, %368 : vector<1x256xf32>
    %c2_197 = arith.constant 2 : index
    %c21_198 = arith.constant 21 : index
    %370 = memref.load %arg0[%c2_197, %c21_198] : memref<4x36xf32, #tpu.memory_space<smem>>
    %371 = vector.broadcast %370 : f32 to vector<1x256xf32>
    %372 = arith.mulf %371, %361 : vector<1x256xf32>
    %373 = arith.addf %356, %372 : vector<1x256xf32>
    %c3_199 = arith.constant 3 : index
    %c21_200 = arith.constant 21 : index
    %374 = memref.load %arg0[%c3_199, %c21_200] : memref<4x36xf32, #tpu.memory_space<smem>>
    %375 = vector.broadcast %374 : f32 to vector<1x256xf32>
    %376 = arith.mulf %375, %361 : vector<1x256xf32>
    %377 = arith.addf %360, %376 : vector<1x256xf32>
    %c22 = arith.constant 22 : index
    %c0_201 = arith.constant 0 : index
    %378 = vector.load %arg1[%c22, %c0_201] : memref<72x256xf32, #tpu.memory_space<vmem>>, vector<1x256xf32>
    %c0_202 = arith.constant 0 : index
    %c22_203 = arith.constant 22 : index
    %379 = memref.load %arg0[%c0_202, %c22_203] : memref<4x36xf32, #tpu.memory_space<smem>>
    %380 = vector.broadcast %379 : f32 to vector<1x256xf32>
    %381 = arith.mulf %380, %378 : vector<1x256xf32>
    %382 = arith.addf %365, %381 : vector<1x256xf32>
    %c1_204 = arith.constant 1 : index
    %c22_205 = arith.constant 22 : index
    %383 = memref.load %arg0[%c1_204, %c22_205] : memref<4x36xf32, #tpu.memory_space<smem>>
    %384 = vector.broadcast %383 : f32 to vector<1x256xf32>
    %385 = arith.mulf %384, %378 : vector<1x256xf32>
    %386 = arith.addf %369, %385 : vector<1x256xf32>
    %c2_206 = arith.constant 2 : index
    %c22_207 = arith.constant 22 : index
    %387 = memref.load %arg0[%c2_206, %c22_207] : memref<4x36xf32, #tpu.memory_space<smem>>
    %388 = vector.broadcast %387 : f32 to vector<1x256xf32>
    %389 = arith.mulf %388, %378 : vector<1x256xf32>
    %390 = arith.addf %373, %389 : vector<1x256xf32>
    %c3_208 = arith.constant 3 : index
    %c22_209 = arith.constant 22 : index
    %391 = memref.load %arg0[%c3_208, %c22_209] : memref<4x36xf32, #tpu.memory_space<smem>>
    %392 = vector.broadcast %391 : f32 to vector<1x256xf32>
    %393 = arith.mulf %392, %378 : vector<1x256xf32>
    %394 = arith.addf %377, %393 : vector<1x256xf32>
    %c23 = arith.constant 23 : index
    %c0_210 = arith.constant 0 : index
    %395 = vector.load %arg1[%c23, %c0_210] : memref<72x256xf32, #tpu.memory_space<vmem>>, vector<1x256xf32>
    %c0_211 = arith.constant 0 : index
    %c23_212 = arith.constant 23 : index
    %396 = memref.load %arg0[%c0_211, %c23_212] : memref<4x36xf32, #tpu.memory_space<smem>>
    %397 = vector.broadcast %396 : f32 to vector<1x256xf32>
    %398 = arith.mulf %397, %395 : vector<1x256xf32>
    %399 = arith.addf %382, %398 : vector<1x256xf32>
    %c1_213 = arith.constant 1 : index
    %c23_214 = arith.constant 23 : index
    %400 = memref.load %arg0[%c1_213, %c23_214] : memref<4x36xf32, #tpu.memory_space<smem>>
    %401 = vector.broadcast %400 : f32 to vector<1x256xf32>
    %402 = arith.mulf %401, %395 : vector<1x256xf32>
    %403 = arith.addf %386, %402 : vector<1x256xf32>
    %c2_215 = arith.constant 2 : index
    %c23_216 = arith.constant 23 : index
    %404 = memref.load %arg0[%c2_215, %c23_216] : memref<4x36xf32, #tpu.memory_space<smem>>
    %405 = vector.broadcast %404 : f32 to vector<1x256xf32>
    %406 = arith.mulf %405, %395 : vector<1x256xf32>
    %407 = arith.addf %390, %406 : vector<1x256xf32>
    %c3_217 = arith.constant 3 : index
    %c23_218 = arith.constant 23 : index
    %408 = memref.load %arg0[%c3_217, %c23_218] : memref<4x36xf32, #tpu.memory_space<smem>>
    %409 = vector.broadcast %408 : f32 to vector<1x256xf32>
    %410 = arith.mulf %409, %395 : vector<1x256xf32>
    %411 = arith.addf %394, %410 : vector<1x256xf32>
    %c24 = arith.constant 24 : index
    %c0_219 = arith.constant 0 : index
    %412 = vector.load %arg1[%c24, %c0_219] : memref<72x256xf32, #tpu.memory_space<vmem>>, vector<1x256xf32>
    %c0_220 = arith.constant 0 : index
    %c24_221 = arith.constant 24 : index
    %413 = memref.load %arg0[%c0_220, %c24_221] : memref<4x36xf32, #tpu.memory_space<smem>>
    %414 = vector.broadcast %413 : f32 to vector<1x256xf32>
    %415 = arith.mulf %414, %412 : vector<1x256xf32>
    %416 = arith.addf %399, %415 : vector<1x256xf32>
    %c1_222 = arith.constant 1 : index
    %c24_223 = arith.constant 24 : index
    %417 = memref.load %arg0[%c1_222, %c24_223] : memref<4x36xf32, #tpu.memory_space<smem>>
    %418 = vector.broadcast %417 : f32 to vector<1x256xf32>
    %419 = arith.mulf %418, %412 : vector<1x256xf32>
    %420 = arith.addf %403, %419 : vector<1x256xf32>
    %c2_224 = arith.constant 2 : index
    %c24_225 = arith.constant 24 : index
    %421 = memref.load %arg0[%c2_224, %c24_225] : memref<4x36xf32, #tpu.memory_space<smem>>
    %422 = vector.broadcast %421 : f32 to vector<1x256xf32>
    %423 = arith.mulf %422, %412 : vector<1x256xf32>
    %424 = arith.addf %407, %423 : vector<1x256xf32>
    %c3_226 = arith.constant 3 : index
    %c24_227 = arith.constant 24 : index
    %425 = memref.load %arg0[%c3_226, %c24_227] : memref<4x36xf32, #tpu.memory_space<smem>>
    %426 = vector.broadcast %425 : f32 to vector<1x256xf32>
    %427 = arith.mulf %426, %412 : vector<1x256xf32>
    %428 = arith.addf %411, %427 : vector<1x256xf32>
    %c25 = arith.constant 25 : index
    %c0_228 = arith.constant 0 : index
    %429 = vector.load %arg1[%c25, %c0_228] : memref<72x256xf32, #tpu.memory_space<vmem>>, vector<1x256xf32>
    %c0_229 = arith.constant 0 : index
    %c25_230 = arith.constant 25 : index
    %430 = memref.load %arg0[%c0_229, %c25_230] : memref<4x36xf32, #tpu.memory_space<smem>>
    %431 = vector.broadcast %430 : f32 to vector<1x256xf32>
    %432 = arith.mulf %431, %429 : vector<1x256xf32>
    %433 = arith.addf %416, %432 : vector<1x256xf32>
    %c1_231 = arith.constant 1 : index
    %c25_232 = arith.constant 25 : index
    %434 = memref.load %arg0[%c1_231, %c25_232] : memref<4x36xf32, #tpu.memory_space<smem>>
    %435 = vector.broadcast %434 : f32 to vector<1x256xf32>
    %436 = arith.mulf %435, %429 : vector<1x256xf32>
    %437 = arith.addf %420, %436 : vector<1x256xf32>
    %c2_233 = arith.constant 2 : index
    %c25_234 = arith.constant 25 : index
    %438 = memref.load %arg0[%c2_233, %c25_234] : memref<4x36xf32, #tpu.memory_space<smem>>
    %439 = vector.broadcast %438 : f32 to vector<1x256xf32>
    %440 = arith.mulf %439, %429 : vector<1x256xf32>
    %441 = arith.addf %424, %440 : vector<1x256xf32>
    %c3_235 = arith.constant 3 : index
    %c25_236 = arith.constant 25 : index
    %442 = memref.load %arg0[%c3_235, %c25_236] : memref<4x36xf32, #tpu.memory_space<smem>>
    %443 = vector.broadcast %442 : f32 to vector<1x256xf32>
    %444 = arith.mulf %443, %429 : vector<1x256xf32>
    %445 = arith.addf %428, %444 : vector<1x256xf32>
    %c26 = arith.constant 26 : index
    %c0_237 = arith.constant 0 : index
    %446 = vector.load %arg1[%c26, %c0_237] : memref<72x256xf32, #tpu.memory_space<vmem>>, vector<1x256xf32>
    %c0_238 = arith.constant 0 : index
    %c26_239 = arith.constant 26 : index
    %447 = memref.load %arg0[%c0_238, %c26_239] : memref<4x36xf32, #tpu.memory_space<smem>>
    %448 = vector.broadcast %447 : f32 to vector<1x256xf32>
    %449 = arith.mulf %448, %446 : vector<1x256xf32>
    %450 = arith.addf %433, %449 : vector<1x256xf32>
    %c1_240 = arith.constant 1 : index
    %c26_241 = arith.constant 26 : index
    %451 = memref.load %arg0[%c1_240, %c26_241] : memref<4x36xf32, #tpu.memory_space<smem>>
    %452 = vector.broadcast %451 : f32 to vector<1x256xf32>
    %453 = arith.mulf %452, %446 : vector<1x256xf32>
    %454 = arith.addf %437, %453 : vector<1x256xf32>
    %c2_242 = arith.constant 2 : index
    %c26_243 = arith.constant 26 : index
    %455 = memref.load %arg0[%c2_242, %c26_243] : memref<4x36xf32, #tpu.memory_space<smem>>
    %456 = vector.broadcast %455 : f32 to vector<1x256xf32>
    %457 = arith.mulf %456, %446 : vector<1x256xf32>
    %458 = arith.addf %441, %457 : vector<1x256xf32>
    %c3_244 = arith.constant 3 : index
    %c26_245 = arith.constant 26 : index
    %459 = memref.load %arg0[%c3_244, %c26_245] : memref<4x36xf32, #tpu.memory_space<smem>>
    %460 = vector.broadcast %459 : f32 to vector<1x256xf32>
    %461 = arith.mulf %460, %446 : vector<1x256xf32>
    %462 = arith.addf %445, %461 : vector<1x256xf32>
    %c27 = arith.constant 27 : index
    %c0_246 = arith.constant 0 : index
    %463 = vector.load %arg1[%c27, %c0_246] : memref<72x256xf32, #tpu.memory_space<vmem>>, vector<1x256xf32>
    %c0_247 = arith.constant 0 : index
    %c27_248 = arith.constant 27 : index
    %464 = memref.load %arg0[%c0_247, %c27_248] : memref<4x36xf32, #tpu.memory_space<smem>>
    %465 = vector.broadcast %464 : f32 to vector<1x256xf32>
    %466 = arith.mulf %465, %463 : vector<1x256xf32>
    %467 = arith.addf %450, %466 : vector<1x256xf32>
    %c1_249 = arith.constant 1 : index
    %c27_250 = arith.constant 27 : index
    %468 = memref.load %arg0[%c1_249, %c27_250] : memref<4x36xf32, #tpu.memory_space<smem>>
    %469 = vector.broadcast %468 : f32 to vector<1x256xf32>
    %470 = arith.mulf %469, %463 : vector<1x256xf32>
    %471 = arith.addf %454, %470 : vector<1x256xf32>
    %c2_251 = arith.constant 2 : index
    %c27_252 = arith.constant 27 : index
    %472 = memref.load %arg0[%c2_251, %c27_252] : memref<4x36xf32, #tpu.memory_space<smem>>
    %473 = vector.broadcast %472 : f32 to vector<1x256xf32>
    %474 = arith.mulf %473, %463 : vector<1x256xf32>
    %475 = arith.addf %458, %474 : vector<1x256xf32>
    %c3_253 = arith.constant 3 : index
    %c27_254 = arith.constant 27 : index
    %476 = memref.load %arg0[%c3_253, %c27_254] : memref<4x36xf32, #tpu.memory_space<smem>>
    %477 = vector.broadcast %476 : f32 to vector<1x256xf32>
    %478 = arith.mulf %477, %463 : vector<1x256xf32>
    %479 = arith.addf %462, %478 : vector<1x256xf32>
    %c28 = arith.constant 28 : index
    %c0_255 = arith.constant 0 : index
    %480 = vector.load %arg1[%c28, %c0_255] : memref<72x256xf32, #tpu.memory_space<vmem>>, vector<1x256xf32>
    %c0_256 = arith.constant 0 : index
    %c28_257 = arith.constant 28 : index
    %481 = memref.load %arg0[%c0_256, %c28_257] : memref<4x36xf32, #tpu.memory_space<smem>>
    %482 = vector.broadcast %481 : f32 to vector<1x256xf32>
    %483 = arith.mulf %482, %480 : vector<1x256xf32>
    %484 = arith.addf %467, %483 : vector<1x256xf32>
    %c1_258 = arith.constant 1 : index
    %c28_259 = arith.constant 28 : index
    %485 = memref.load %arg0[%c1_258, %c28_259] : memref<4x36xf32, #tpu.memory_space<smem>>
    %486 = vector.broadcast %485 : f32 to vector<1x256xf32>
    %487 = arith.mulf %486, %480 : vector<1x256xf32>
    %488 = arith.addf %471, %487 : vector<1x256xf32>
    %c2_260 = arith.constant 2 : index
    %c28_261 = arith.constant 28 : index
    %489 = memref.load %arg0[%c2_260, %c28_261] : memref<4x36xf32, #tpu.memory_space<smem>>
    %490 = vector.broadcast %489 : f32 to vector<1x256xf32>
    %491 = arith.mulf %490, %480 : vector<1x256xf32>
    %492 = arith.addf %475, %491 : vector<1x256xf32>
    %c3_262 = arith.constant 3 : index
    %c28_263 = arith.constant 28 : index
    %493 = memref.load %arg0[%c3_262, %c28_263] : memref<4x36xf32, #tpu.memory_space<smem>>
    %494 = vector.broadcast %493 : f32 to vector<1x256xf32>
    %495 = arith.mulf %494, %480 : vector<1x256xf32>
    %496 = arith.addf %479, %495 : vector<1x256xf32>
    %c29 = arith.constant 29 : index
    %c0_264 = arith.constant 0 : index
    %497 = vector.load %arg1[%c29, %c0_264] : memref<72x256xf32, #tpu.memory_space<vmem>>, vector<1x256xf32>
    %c0_265 = arith.constant 0 : index
    %c29_266 = arith.constant 29 : index
    %498 = memref.load %arg0[%c0_265, %c29_266] : memref<4x36xf32, #tpu.memory_space<smem>>
    %499 = vector.broadcast %498 : f32 to vector<1x256xf32>
    %500 = arith.mulf %499, %497 : vector<1x256xf32>
    %501 = arith.addf %484, %500 : vector<1x256xf32>
    %c1_267 = arith.constant 1 : index
    %c29_268 = arith.constant 29 : index
    %502 = memref.load %arg0[%c1_267, %c29_268] : memref<4x36xf32, #tpu.memory_space<smem>>
    %503 = vector.broadcast %502 : f32 to vector<1x256xf32>
    %504 = arith.mulf %503, %497 : vector<1x256xf32>
    %505 = arith.addf %488, %504 : vector<1x256xf32>
    %c2_269 = arith.constant 2 : index
    %c29_270 = arith.constant 29 : index
    %506 = memref.load %arg0[%c2_269, %c29_270] : memref<4x36xf32, #tpu.memory_space<smem>>
    %507 = vector.broadcast %506 : f32 to vector<1x256xf32>
    %508 = arith.mulf %507, %497 : vector<1x256xf32>
    %509 = arith.addf %492, %508 : vector<1x256xf32>
    %c3_271 = arith.constant 3 : index
    %c29_272 = arith.constant 29 : index
    %510 = memref.load %arg0[%c3_271, %c29_272] : memref<4x36xf32, #tpu.memory_space<smem>>
    %511 = vector.broadcast %510 : f32 to vector<1x256xf32>
    %512 = arith.mulf %511, %497 : vector<1x256xf32>
    %513 = arith.addf %496, %512 : vector<1x256xf32>
    %c30 = arith.constant 30 : index
    %c0_273 = arith.constant 0 : index
    %514 = vector.load %arg1[%c30, %c0_273] : memref<72x256xf32, #tpu.memory_space<vmem>>, vector<1x256xf32>
    %c0_274 = arith.constant 0 : index
    %c30_275 = arith.constant 30 : index
    %515 = memref.load %arg0[%c0_274, %c30_275] : memref<4x36xf32, #tpu.memory_space<smem>>
    %516 = vector.broadcast %515 : f32 to vector<1x256xf32>
    %517 = arith.mulf %516, %514 : vector<1x256xf32>
    %518 = arith.addf %501, %517 : vector<1x256xf32>
    %c1_276 = arith.constant 1 : index
    %c30_277 = arith.constant 30 : index
    %519 = memref.load %arg0[%c1_276, %c30_277] : memref<4x36xf32, #tpu.memory_space<smem>>
    %520 = vector.broadcast %519 : f32 to vector<1x256xf32>
    %521 = arith.mulf %520, %514 : vector<1x256xf32>
    %522 = arith.addf %505, %521 : vector<1x256xf32>
    %c2_278 = arith.constant 2 : index
    %c30_279 = arith.constant 30 : index
    %523 = memref.load %arg0[%c2_278, %c30_279] : memref<4x36xf32, #tpu.memory_space<smem>>
    %524 = vector.broadcast %523 : f32 to vector<1x256xf32>
    %525 = arith.mulf %524, %514 : vector<1x256xf32>
    %526 = arith.addf %509, %525 : vector<1x256xf32>
    %c3_280 = arith.constant 3 : index
    %c30_281 = arith.constant 30 : index
    %527 = memref.load %arg0[%c3_280, %c30_281] : memref<4x36xf32, #tpu.memory_space<smem>>
    %528 = vector.broadcast %527 : f32 to vector<1x256xf32>
    %529 = arith.mulf %528, %514 : vector<1x256xf32>
    %530 = arith.addf %513, %529 : vector<1x256xf32>
    %c31 = arith.constant 31 : index
    %c0_282 = arith.constant 0 : index
    %531 = vector.load %arg1[%c31, %c0_282] : memref<72x256xf32, #tpu.memory_space<vmem>>, vector<1x256xf32>
    %c0_283 = arith.constant 0 : index
    %c31_284 = arith.constant 31 : index
    %532 = memref.load %arg0[%c0_283, %c31_284] : memref<4x36xf32, #tpu.memory_space<smem>>
    %533 = vector.broadcast %532 : f32 to vector<1x256xf32>
    %534 = arith.mulf %533, %531 : vector<1x256xf32>
    %535 = arith.addf %518, %534 : vector<1x256xf32>
    %c1_285 = arith.constant 1 : index
    %c31_286 = arith.constant 31 : index
    %536 = memref.load %arg0[%c1_285, %c31_286] : memref<4x36xf32, #tpu.memory_space<smem>>
    %537 = vector.broadcast %536 : f32 to vector<1x256xf32>
    %538 = arith.mulf %537, %531 : vector<1x256xf32>
    %539 = arith.addf %522, %538 : vector<1x256xf32>
    %c2_287 = arith.constant 2 : index
    %c31_288 = arith.constant 31 : index
    %540 = memref.load %arg0[%c2_287, %c31_288] : memref<4x36xf32, #tpu.memory_space<smem>>
    %541 = vector.broadcast %540 : f32 to vector<1x256xf32>
    %542 = arith.mulf %541, %531 : vector<1x256xf32>
    %543 = arith.addf %526, %542 : vector<1x256xf32>
    %c3_289 = arith.constant 3 : index
    %c31_290 = arith.constant 31 : index
    %544 = memref.load %arg0[%c3_289, %c31_290] : memref<4x36xf32, #tpu.memory_space<smem>>
    %545 = vector.broadcast %544 : f32 to vector<1x256xf32>
    %546 = arith.mulf %545, %531 : vector<1x256xf32>
    %547 = arith.addf %530, %546 : vector<1x256xf32>
    %c32 = arith.constant 32 : index
    %c0_291 = arith.constant 0 : index
    %548 = vector.load %arg1[%c32, %c0_291] : memref<72x256xf32, #tpu.memory_space<vmem>>, vector<1x256xf32>
    %c0_292 = arith.constant 0 : index
    %c32_293 = arith.constant 32 : index
    %549 = memref.load %arg0[%c0_292, %c32_293] : memref<4x36xf32, #tpu.memory_space<smem>>
    %550 = vector.broadcast %549 : f32 to vector<1x256xf32>
    %551 = arith.mulf %550, %548 : vector<1x256xf32>
    %552 = arith.addf %535, %551 : vector<1x256xf32>
    %c1_294 = arith.constant 1 : index
    %c32_295 = arith.constant 32 : index
    %553 = memref.load %arg0[%c1_294, %c32_295] : memref<4x36xf32, #tpu.memory_space<smem>>
    %554 = vector.broadcast %553 : f32 to vector<1x256xf32>
    %555 = arith.mulf %554, %548 : vector<1x256xf32>
    %556 = arith.addf %539, %555 : vector<1x256xf32>
    %c2_296 = arith.constant 2 : index
    %c32_297 = arith.constant 32 : index
    %557 = memref.load %arg0[%c2_296, %c32_297] : memref<4x36xf32, #tpu.memory_space<smem>>
    %558 = vector.broadcast %557 : f32 to vector<1x256xf32>
    %559 = arith.mulf %558, %548 : vector<1x256xf32>
    %560 = arith.addf %543, %559 : vector<1x256xf32>
    %c3_298 = arith.constant 3 : index
    %c32_299 = arith.constant 32 : index
    %561 = memref.load %arg0[%c3_298, %c32_299] : memref<4x36xf32, #tpu.memory_space<smem>>
    %562 = vector.broadcast %561 : f32 to vector<1x256xf32>
    %563 = arith.mulf %562, %548 : vector<1x256xf32>
    %564 = arith.addf %547, %563 : vector<1x256xf32>
    %c33 = arith.constant 33 : index
    %c0_300 = arith.constant 0 : index
    %565 = vector.load %arg1[%c33, %c0_300] : memref<72x256xf32, #tpu.memory_space<vmem>>, vector<1x256xf32>
    %c0_301 = arith.constant 0 : index
    %c33_302 = arith.constant 33 : index
    %566 = memref.load %arg0[%c0_301, %c33_302] : memref<4x36xf32, #tpu.memory_space<smem>>
    %567 = vector.broadcast %566 : f32 to vector<1x256xf32>
    %568 = arith.mulf %567, %565 : vector<1x256xf32>
    %569 = arith.addf %552, %568 : vector<1x256xf32>
    %c1_303 = arith.constant 1 : index
    %c33_304 = arith.constant 33 : index
    %570 = memref.load %arg0[%c1_303, %c33_304] : memref<4x36xf32, #tpu.memory_space<smem>>
    %571 = vector.broadcast %570 : f32 to vector<1x256xf32>
    %572 = arith.mulf %571, %565 : vector<1x256xf32>
    %573 = arith.addf %556, %572 : vector<1x256xf32>
    %c2_305 = arith.constant 2 : index
    %c33_306 = arith.constant 33 : index
    %574 = memref.load %arg0[%c2_305, %c33_306] : memref<4x36xf32, #tpu.memory_space<smem>>
    %575 = vector.broadcast %574 : f32 to vector<1x256xf32>
    %576 = arith.mulf %575, %565 : vector<1x256xf32>
    %577 = arith.addf %560, %576 : vector<1x256xf32>
    %c3_307 = arith.constant 3 : index
    %c33_308 = arith.constant 33 : index
    %578 = memref.load %arg0[%c3_307, %c33_308] : memref<4x36xf32, #tpu.memory_space<smem>>
    %579 = vector.broadcast %578 : f32 to vector<1x256xf32>
    %580 = arith.mulf %579, %565 : vector<1x256xf32>
    %581 = arith.addf %564, %580 : vector<1x256xf32>
    %c34 = arith.constant 34 : index
    %c0_309 = arith.constant 0 : index
    %582 = vector.load %arg1[%c34, %c0_309] : memref<72x256xf32, #tpu.memory_space<vmem>>, vector<1x256xf32>
    %c0_310 = arith.constant 0 : index
    %c34_311 = arith.constant 34 : index
    %583 = memref.load %arg0[%c0_310, %c34_311] : memref<4x36xf32, #tpu.memory_space<smem>>
    %584 = vector.broadcast %583 : f32 to vector<1x256xf32>
    %585 = arith.mulf %584, %582 : vector<1x256xf32>
    %586 = arith.addf %569, %585 : vector<1x256xf32>
    %c1_312 = arith.constant 1 : index
    %c34_313 = arith.constant 34 : index
    %587 = memref.load %arg0[%c1_312, %c34_313] : memref<4x36xf32, #tpu.memory_space<smem>>
    %588 = vector.broadcast %587 : f32 to vector<1x256xf32>
    %589 = arith.mulf %588, %582 : vector<1x256xf32>
    %590 = arith.addf %573, %589 : vector<1x256xf32>
    %c2_314 = arith.constant 2 : index
    %c34_315 = arith.constant 34 : index
    %591 = memref.load %arg0[%c2_314, %c34_315] : memref<4x36xf32, #tpu.memory_space<smem>>
    %592 = vector.broadcast %591 : f32 to vector<1x256xf32>
    %593 = arith.mulf %592, %582 : vector<1x256xf32>
    %594 = arith.addf %577, %593 : vector<1x256xf32>
    %c3_316 = arith.constant 3 : index
    %c34_317 = arith.constant 34 : index
    %595 = memref.load %arg0[%c3_316, %c34_317] : memref<4x36xf32, #tpu.memory_space<smem>>
    %596 = vector.broadcast %595 : f32 to vector<1x256xf32>
    %597 = arith.mulf %596, %582 : vector<1x256xf32>
    %598 = arith.addf %581, %597 : vector<1x256xf32>
    %c35 = arith.constant 35 : index
    %c0_318 = arith.constant 0 : index
    %599 = vector.load %arg1[%c35, %c0_318] : memref<72x256xf32, #tpu.memory_space<vmem>>, vector<1x256xf32>
    %c0_319 = arith.constant 0 : index
    %c35_320 = arith.constant 35 : index
    %600 = memref.load %arg0[%c0_319, %c35_320] : memref<4x36xf32, #tpu.memory_space<smem>>
    %601 = vector.broadcast %600 : f32 to vector<1x256xf32>
    %602 = arith.mulf %601, %599 : vector<1x256xf32>
    %603 = arith.addf %586, %602 : vector<1x256xf32>
    %c1_321 = arith.constant 1 : index
    %c35_322 = arith.constant 35 : index
    %604 = memref.load %arg0[%c1_321, %c35_322] : memref<4x36xf32, #tpu.memory_space<smem>>
    %605 = vector.broadcast %604 : f32 to vector<1x256xf32>
    %606 = arith.mulf %605, %599 : vector<1x256xf32>
    %607 = arith.addf %590, %606 : vector<1x256xf32>
    %c2_323 = arith.constant 2 : index
    %c35_324 = arith.constant 35 : index
    %608 = memref.load %arg0[%c2_323, %c35_324] : memref<4x36xf32, #tpu.memory_space<smem>>
    %609 = vector.broadcast %608 : f32 to vector<1x256xf32>
    %610 = arith.mulf %609, %599 : vector<1x256xf32>
    %611 = arith.addf %594, %610 : vector<1x256xf32>
    %c3_325 = arith.constant 3 : index
    %c35_326 = arith.constant 35 : index
    %612 = memref.load %arg0[%c3_325, %c35_326] : memref<4x36xf32, #tpu.memory_space<smem>>
    %613 = vector.broadcast %612 : f32 to vector<1x256xf32>
    %614 = arith.mulf %613, %599 : vector<1x256xf32>
    %615 = arith.addf %598, %614 : vector<1x256xf32>
    %c0_327 = arith.constant 0 : index
    %c0_328 = arith.constant 0 : index
    %616 = vector.load %arg2[%c0_327, %c0_328] : memref<8x256xf32, #tpu.memory_space<vmem>>, vector<1x256xf32>
    tpu.vector_store %arg2[%c0_327, %c0_328], %603 {strides = array<i32>} : memref<8x256xf32, #tpu.memory_space<vmem>>, vector<1x256xf32>,
    %c1_329 = arith.constant 1 : index
    %c0_330 = arith.constant 0 : index
    %617 = vector.load %arg2[%c1_329, %c0_330] : memref<8x256xf32, #tpu.memory_space<vmem>>, vector<1x256xf32>
    tpu.vector_store %arg2[%c1_329, %c0_330], %607 {strides = array<i32>} : memref<8x256xf32, #tpu.memory_space<vmem>>, vector<1x256xf32>,
    %c2_331 = arith.constant 2 : index
    %c0_332 = arith.constant 0 : index
    %618 = vector.load %arg2[%c2_331, %c0_332] : memref<8x256xf32, #tpu.memory_space<vmem>>, vector<1x256xf32>
    tpu.vector_store %arg2[%c2_331, %c0_332], %611 {strides = array<i32>} : memref<8x256xf32, #tpu.memory_space<vmem>>, vector<1x256xf32>,
    %c3_333 = arith.constant 3 : index
    %c0_334 = arith.constant 0 : index
    %619 = vector.load %arg2[%c3_333, %c0_334] : memref<8x256xf32, #tpu.memory_space<vmem>>, vector<1x256xf32>
    tpu.vector_store %arg2[%c3_333, %c0_334], %615 {strides = array<i32>} : memref<8x256xf32, #tpu.memory_space<vmem>>, vector<1x256xf32>,
    %cst_335 = arith.constant 0.000000e+00 : f32
    %620 = vector.broadcast %cst_335 : f32 to vector<1x256xf32>
    %cst_336 = arith.constant 0.000000e+00 : f32
    %621 = vector.broadcast %cst_336 : f32 to vector<1x256xf32>
    %cst_337 = arith.constant 0.000000e+00 : f32
    %622 = vector.broadcast %cst_337 : f32 to vector<1x256xf32>
    %cst_338 = arith.constant 0.000000e+00 : f32
    %623 = vector.broadcast %cst_338 : f32 to vector<1x256xf32>
    %c36 = arith.constant 36 : index
    %c0_339 = arith.constant 0 : index
    %624 = vector.load %arg1[%c36, %c0_339] : memref<72x256xf32, #tpu.memory_space<vmem>>, vector<1x256xf32>
    %c0_340 = arith.constant 0 : index
    %c0_341 = arith.constant 0 : index
    %625 = memref.load %arg0[%c0_340, %c0_341] : memref<4x36xf32, #tpu.memory_space<smem>>
    %626 = vector.broadcast %625 : f32 to vector<1x256xf32>
    %627 = arith.mulf %626, %624 : vector<1x256xf32>
    %628 = arith.addf %620, %627 : vector<1x256xf32>
    %c1_342 = arith.constant 1 : index
    %c0_343 = arith.constant 0 : index
    %629 = memref.load %arg0[%c1_342, %c0_343] : memref<4x36xf32, #tpu.memory_space<smem>>
    %630 = vector.broadcast %629 : f32 to vector<1x256xf32>
    %631 = arith.mulf %630, %624 : vector<1x256xf32>
    %632 = arith.addf %621, %631 : vector<1x256xf32>
    %c2_344 = arith.constant 2 : index
    %c0_345 = arith.constant 0 : index
    %633 = memref.load %arg0[%c2_344, %c0_345] : memref<4x36xf32, #tpu.memory_space<smem>>
    %634 = vector.broadcast %633 : f32 to vector<1x256xf32>
    %635 = arith.mulf %634, %624 : vector<1x256xf32>
    %636 = arith.addf %622, %635 : vector<1x256xf32>
    %c3_346 = arith.constant 3 : index
    %c0_347 = arith.constant 0 : index
    %637 = memref.load %arg0[%c3_346, %c0_347] : memref<4x36xf32, #tpu.memory_space<smem>>
    %638 = vector.broadcast %637 : f32 to vector<1x256xf32>
    %639 = arith.mulf %638, %624 : vector<1x256xf32>
    %640 = arith.addf %623, %639 : vector<1x256xf32>
    %c37 = arith.constant 37 : index
    %c0_348 = arith.constant 0 : index
    %641 = vector.load %arg1[%c37, %c0_348] : memref<72x256xf32, #tpu.memory_space<vmem>>, vector<1x256xf32>
    %c0_349 = arith.constant 0 : index
    %c1_350 = arith.constant 1 : index
    %642 = memref.load %arg0[%c0_349, %c1_350] : memref<4x36xf32, #tpu.memory_space<smem>>
    %643 = vector.broadcast %642 : f32 to vector<1x256xf32>
    %644 = arith.mulf %643, %641 : vector<1x256xf32>
    %645 = arith.addf %628, %644 : vector<1x256xf32>
    %c1_351 = arith.constant 1 : index
    %c1_352 = arith.constant 1 : index
    %646 = memref.load %arg0[%c1_351, %c1_352] : memref<4x36xf32, #tpu.memory_space<smem>>
    %647 = vector.broadcast %646 : f32 to vector<1x256xf32>
    %648 = arith.mulf %647, %641 : vector<1x256xf32>
    %649 = arith.addf %632, %648 : vector<1x256xf32>
    %c2_353 = arith.constant 2 : index
    %c1_354 = arith.constant 1 : index
    %650 = memref.load %arg0[%c2_353, %c1_354] : memref<4x36xf32, #tpu.memory_space<smem>>
    %651 = vector.broadcast %650 : f32 to vector<1x256xf32>
    %652 = arith.mulf %651, %641 : vector<1x256xf32>
    %653 = arith.addf %636, %652 : vector<1x256xf32>
    %c3_355 = arith.constant 3 : index
    %c1_356 = arith.constant 1 : index
    %654 = memref.load %arg0[%c3_355, %c1_356] : memref<4x36xf32, #tpu.memory_space<smem>>
    %655 = vector.broadcast %654 : f32 to vector<1x256xf32>
    %656 = arith.mulf %655, %641 : vector<1x256xf32>
    %657 = arith.addf %640, %656 : vector<1x256xf32>
    %c38 = arith.constant 38 : index
    %c0_357 = arith.constant 0 : index
    %658 = vector.load %arg1[%c38, %c0_357] : memref<72x256xf32, #tpu.memory_space<vmem>>, vector<1x256xf32>
    %c0_358 = arith.constant 0 : index
    %c2_359 = arith.constant 2 : index
    %659 = memref.load %arg0[%c0_358, %c2_359] : memref<4x36xf32, #tpu.memory_space<smem>>
    %660 = vector.broadcast %659 : f32 to vector<1x256xf32>
    %661 = arith.mulf %660, %658 : vector<1x256xf32>
    %662 = arith.addf %645, %661 : vector<1x256xf32>
    %c1_360 = arith.constant 1 : index
    %c2_361 = arith.constant 2 : index
    %663 = memref.load %arg0[%c1_360, %c2_361] : memref<4x36xf32, #tpu.memory_space<smem>>
    %664 = vector.broadcast %663 : f32 to vector<1x256xf32>
    %665 = arith.mulf %664, %658 : vector<1x256xf32>
    %666 = arith.addf %649, %665 : vector<1x256xf32>
    %c2_362 = arith.constant 2 : index
    %c2_363 = arith.constant 2 : index
    %667 = memref.load %arg0[%c2_362, %c2_363] : memref<4x36xf32, #tpu.memory_space<smem>>
    %668 = vector.broadcast %667 : f32 to vector<1x256xf32>
    %669 = arith.mulf %668, %658 : vector<1x256xf32>
    %670 = arith.addf %653, %669 : vector<1x256xf32>
    %c3_364 = arith.constant 3 : index
    %c2_365 = arith.constant 2 : index
    %671 = memref.load %arg0[%c3_364, %c2_365] : memref<4x36xf32, #tpu.memory_space<smem>>
    %672 = vector.broadcast %671 : f32 to vector<1x256xf32>
    %673 = arith.mulf %672, %658 : vector<1x256xf32>
    %674 = arith.addf %657, %673 : vector<1x256xf32>
    %c39 = arith.constant 39 : index
    %c0_366 = arith.constant 0 : index
    %675 = vector.load %arg1[%c39, %c0_366] : memref<72x256xf32, #tpu.memory_space<vmem>>, vector<1x256xf32>
    %c0_367 = arith.constant 0 : index
    %c3_368 = arith.constant 3 : index
    %676 = memref.load %arg0[%c0_367, %c3_368] : memref<4x36xf32, #tpu.memory_space<smem>>
    %677 = vector.broadcast %676 : f32 to vector<1x256xf32>
    %678 = arith.mulf %677, %675 : vector<1x256xf32>
    %679 = arith.addf %662, %678 : vector<1x256xf32>
    %c1_369 = arith.constant 1 : index
    %c3_370 = arith.constant 3 : index
    %680 = memref.load %arg0[%c1_369, %c3_370] : memref<4x36xf32, #tpu.memory_space<smem>>
    %681 = vector.broadcast %680 : f32 to vector<1x256xf32>
    %682 = arith.mulf %681, %675 : vector<1x256xf32>
    %683 = arith.addf %666, %682 : vector<1x256xf32>
    %c2_371 = arith.constant 2 : index
    %c3_372 = arith.constant 3 : index
    %684 = memref.load %arg0[%c2_371, %c3_372] : memref<4x36xf32, #tpu.memory_space<smem>>
    %685 = vector.broadcast %684 : f32 to vector<1x256xf32>
    %686 = arith.mulf %685, %675 : vector<1x256xf32>
    %687 = arith.addf %670, %686 : vector<1x256xf32>
    %c3_373 = arith.constant 3 : index
    %c3_374 = arith.constant 3 : index
    %688 = memref.load %arg0[%c3_373, %c3_374] : memref<4x36xf32, #tpu.memory_space<smem>>
    %689 = vector.broadcast %688 : f32 to vector<1x256xf32>
    %690 = arith.mulf %689, %675 : vector<1x256xf32>
    %691 = arith.addf %674, %690 : vector<1x256xf32>
    %c40 = arith.constant 40 : index
    %c0_375 = arith.constant 0 : index
    %692 = vector.load %arg1[%c40, %c0_375] : memref<72x256xf32, #tpu.memory_space<vmem>>, vector<1x256xf32>
    %c0_376 = arith.constant 0 : index
    %c4_377 = arith.constant 4 : index
    %693 = memref.load %arg0[%c0_376, %c4_377] : memref<4x36xf32, #tpu.memory_space<smem>>
    %694 = vector.broadcast %693 : f32 to vector<1x256xf32>
    %695 = arith.mulf %694, %692 : vector<1x256xf32>
    %696 = arith.addf %679, %695 : vector<1x256xf32>
    %c1_378 = arith.constant 1 : index
    %c4_379 = arith.constant 4 : index
    %697 = memref.load %arg0[%c1_378, %c4_379] : memref<4x36xf32, #tpu.memory_space<smem>>
    %698 = vector.broadcast %697 : f32 to vector<1x256xf32>
    %699 = arith.mulf %698, %692 : vector<1x256xf32>
    %700 = arith.addf %683, %699 : vector<1x256xf32>
    %c2_380 = arith.constant 2 : index
    %c4_381 = arith.constant 4 : index
    %701 = memref.load %arg0[%c2_380, %c4_381] : memref<4x36xf32, #tpu.memory_space<smem>>
    %702 = vector.broadcast %701 : f32 to vector<1x256xf32>
    %703 = arith.mulf %702, %692 : vector<1x256xf32>
    %704 = arith.addf %687, %703 : vector<1x256xf32>
    %c3_382 = arith.constant 3 : index
    %c4_383 = arith.constant 4 : index
    %705 = memref.load %arg0[%c3_382, %c4_383] : memref<4x36xf32, #tpu.memory_space<smem>>
    %706 = vector.broadcast %705 : f32 to vector<1x256xf32>
    %707 = arith.mulf %706, %692 : vector<1x256xf32>
    %708 = arith.addf %691, %707 : vector<1x256xf32>
    %c41 = arith.constant 41 : index
    %c0_384 = arith.constant 0 : index
    %709 = vector.load %arg1[%c41, %c0_384] : memref<72x256xf32, #tpu.memory_space<vmem>>, vector<1x256xf32>
    %c0_385 = arith.constant 0 : index
    %c5_386 = arith.constant 5 : index
    %710 = memref.load %arg0[%c0_385, %c5_386] : memref<4x36xf32, #tpu.memory_space<smem>>
    %711 = vector.broadcast %710 : f32 to vector<1x256xf32>
    %712 = arith.mulf %711, %709 : vector<1x256xf32>
    %713 = arith.addf %696, %712 : vector<1x256xf32>
    %c1_387 = arith.constant 1 : index
    %c5_388 = arith.constant 5 : index
    %714 = memref.load %arg0[%c1_387, %c5_388] : memref<4x36xf32, #tpu.memory_space<smem>>
    %715 = vector.broadcast %714 : f32 to vector<1x256xf32>
    %716 = arith.mulf %715, %709 : vector<1x256xf32>
    %717 = arith.addf %700, %716 : vector<1x256xf32>
    %c2_389 = arith.constant 2 : index
    %c5_390 = arith.constant 5 : index
    %718 = memref.load %arg0[%c2_389, %c5_390] : memref<4x36xf32, #tpu.memory_space<smem>>
    %719 = vector.broadcast %718 : f32 to vector<1x256xf32>
    %720 = arith.mulf %719, %709 : vector<1x256xf32>
    %721 = arith.addf %704, %720 : vector<1x256xf32>
    %c3_391 = arith.constant 3 : index
    %c5_392 = arith.constant 5 : index
    %722 = memref.load %arg0[%c3_391, %c5_392] : memref<4x36xf32, #tpu.memory_space<smem>>
    %723 = vector.broadcast %722 : f32 to vector<1x256xf32>
    %724 = arith.mulf %723, %709 : vector<1x256xf32>
    %725 = arith.addf %708, %724 : vector<1x256xf32>
    %c42 = arith.constant 42 : index
    %c0_393 = arith.constant 0 : index
    %726 = vector.load %arg1[%c42, %c0_393] : memref<72x256xf32, #tpu.memory_space<vmem>>, vector<1x256xf32>
    %c0_394 = arith.constant 0 : index
    %c6_395 = arith.constant 6 : index
    %727 = memref.load %arg0[%c0_394, %c6_395] : memref<4x36xf32, #tpu.memory_space<smem>>
    %728 = vector.broadcast %727 : f32 to vector<1x256xf32>
    %729 = arith.mulf %728, %726 : vector<1x256xf32>
    %730 = arith.addf %713, %729 : vector<1x256xf32>
    %c1_396 = arith.constant 1 : index
    %c6_397 = arith.constant 6 : index
    %731 = memref.load %arg0[%c1_396, %c6_397] : memref<4x36xf32, #tpu.memory_space<smem>>
    %732 = vector.broadcast %731 : f32 to vector<1x256xf32>
    %733 = arith.mulf %732, %726 : vector<1x256xf32>
    %734 = arith.addf %717, %733 : vector<1x256xf32>
    %c2_398 = arith.constant 2 : index
    %c6_399 = arith.constant 6 : index
    %735 = memref.load %arg0[%c2_398, %c6_399] : memref<4x36xf32, #tpu.memory_space<smem>>
    %736 = vector.broadcast %735 : f32 to vector<1x256xf32>
    %737 = arith.mulf %736, %726 : vector<1x256xf32>
    %738 = arith.addf %721, %737 : vector<1x256xf32>
    %c3_400 = arith.constant 3 : index
    %c6_401 = arith.constant 6 : index
    %739 = memref.load %arg0[%c3_400, %c6_401] : memref<4x36xf32, #tpu.memory_space<smem>>
    %740 = vector.broadcast %739 : f32 to vector<1x256xf32>
    %741 = arith.mulf %740, %726 : vector<1x256xf32>
    %742 = arith.addf %725, %741 : vector<1x256xf32>
    %c43 = arith.constant 43 : index
    %c0_402 = arith.constant 0 : index
    %743 = vector.load %arg1[%c43, %c0_402] : memref<72x256xf32, #tpu.memory_space<vmem>>, vector<1x256xf32>
    %c0_403 = arith.constant 0 : index
    %c7_404 = arith.constant 7 : index
    %744 = memref.load %arg0[%c0_403, %c7_404] : memref<4x36xf32, #tpu.memory_space<smem>>
    %745 = vector.broadcast %744 : f32 to vector<1x256xf32>
    %746 = arith.mulf %745, %743 : vector<1x256xf32>
    %747 = arith.addf %730, %746 : vector<1x256xf32>
    %c1_405 = arith.constant 1 : index
    %c7_406 = arith.constant 7 : index
    %748 = memref.load %arg0[%c1_405, %c7_406] : memref<4x36xf32, #tpu.memory_space<smem>>
    %749 = vector.broadcast %748 : f32 to vector<1x256xf32>
    %750 = arith.mulf %749, %743 : vector<1x256xf32>
    %751 = arith.addf %734, %750 : vector<1x256xf32>
    %c2_407 = arith.constant 2 : index
    %c7_408 = arith.constant 7 : index
    %752 = memref.load %arg0[%c2_407, %c7_408] : memref<4x36xf32, #tpu.memory_space<smem>>
    %753 = vector.broadcast %752 : f32 to vector<1x256xf32>
    %754 = arith.mulf %753, %743 : vector<1x256xf32>
    %755 = arith.addf %738, %754 : vector<1x256xf32>
    %c3_409 = arith.constant 3 : index
    %c7_410 = arith.constant 7 : index
    %756 = memref.load %arg0[%c3_409, %c7_410] : memref<4x36xf32, #tpu.memory_space<smem>>
    %757 = vector.broadcast %756 : f32 to vector<1x256xf32>
    %758 = arith.mulf %757, %743 : vector<1x256xf32>
    %759 = arith.addf %742, %758 : vector<1x256xf32>
    %c44 = arith.constant 44 : index
    %c0_411 = arith.constant 0 : index
    %760 = vector.load %arg1[%c44, %c0_411] : memref<72x256xf32, #tpu.memory_space<vmem>>, vector<1x256xf32>
    %c0_412 = arith.constant 0 : index
    %c8_413 = arith.constant 8 : index
    %761 = memref.load %arg0[%c0_412, %c8_413] : memref<4x36xf32, #tpu.memory_space<smem>>
    %762 = vector.broadcast %761 : f32 to vector<1x256xf32>
    %763 = arith.mulf %762, %760 : vector<1x256xf32>
    %764 = arith.addf %747, %763 : vector<1x256xf32>
    %c1_414 = arith.constant 1 : index
    %c8_415 = arith.constant 8 : index
    %765 = memref.load %arg0[%c1_414, %c8_415] : memref<4x36xf32, #tpu.memory_space<smem>>
    %766 = vector.broadcast %765 : f32 to vector<1x256xf32>
    %767 = arith.mulf %766, %760 : vector<1x256xf32>
    %768 = arith.addf %751, %767 : vector<1x256xf32>
    %c2_416 = arith.constant 2 : index
    %c8_417 = arith.constant 8 : index
    %769 = memref.load %arg0[%c2_416, %c8_417] : memref<4x36xf32, #tpu.memory_space<smem>>
    %770 = vector.broadcast %769 : f32 to vector<1x256xf32>
    %771 = arith.mulf %770, %760 : vector<1x256xf32>
    %772 = arith.addf %755, %771 : vector<1x256xf32>
    %c3_418 = arith.constant 3 : index
    %c8_419 = arith.constant 8 : index
    %773 = memref.load %arg0[%c3_418, %c8_419] : memref<4x36xf32, #tpu.memory_space<smem>>
    %774 = vector.broadcast %773 : f32 to vector<1x256xf32>
    %775 = arith.mulf %774, %760 : vector<1x256xf32>
    %776 = arith.addf %759, %775 : vector<1x256xf32>
    %c45 = arith.constant 45 : index
    %c0_420 = arith.constant 0 : index
    %777 = vector.load %arg1[%c45, %c0_420] : memref<72x256xf32, #tpu.memory_space<vmem>>, vector<1x256xf32>
    %c0_421 = arith.constant 0 : index
    %c9_422 = arith.constant 9 : index
    %778 = memref.load %arg0[%c0_421, %c9_422] : memref<4x36xf32, #tpu.memory_space<smem>>
    %779 = vector.broadcast %778 : f32 to vector<1x256xf32>
    %780 = arith.mulf %779, %777 : vector<1x256xf32>
    %781 = arith.addf %764, %780 : vector<1x256xf32>
    %c1_423 = arith.constant 1 : index
    %c9_424 = arith.constant 9 : index
    %782 = memref.load %arg0[%c1_423, %c9_424] : memref<4x36xf32, #tpu.memory_space<smem>>
    %783 = vector.broadcast %782 : f32 to vector<1x256xf32>
    %784 = arith.mulf %783, %777 : vector<1x256xf32>
    %785 = arith.addf %768, %784 : vector<1x256xf32>
    %c2_425 = arith.constant 2 : index
    %c9_426 = arith.constant 9 : index
    %786 = memref.load %arg0[%c2_425, %c9_426] : memref<4x36xf32, #tpu.memory_space<smem>>
    %787 = vector.broadcast %786 : f32 to vector<1x256xf32>
    %788 = arith.mulf %787, %777 : vector<1x256xf32>
    %789 = arith.addf %772, %788 : vector<1x256xf32>
    %c3_427 = arith.constant 3 : index
    %c9_428 = arith.constant 9 : index
    %790 = memref.load %arg0[%c3_427, %c9_428] : memref<4x36xf32, #tpu.memory_space<smem>>
    %791 = vector.broadcast %790 : f32 to vector<1x256xf32>
    %792 = arith.mulf %791, %777 : vector<1x256xf32>
    %793 = arith.addf %776, %792 : vector<1x256xf32>
    %c46 = arith.constant 46 : index
    %c0_429 = arith.constant 0 : index
    %794 = vector.load %arg1[%c46, %c0_429] : memref<72x256xf32, #tpu.memory_space<vmem>>, vector<1x256xf32>
    %c0_430 = arith.constant 0 : index
    %c10_431 = arith.constant 10 : index
    %795 = memref.load %arg0[%c0_430, %c10_431] : memref<4x36xf32, #tpu.memory_space<smem>>
    %796 = vector.broadcast %795 : f32 to vector<1x256xf32>
    %797 = arith.mulf %796, %794 : vector<1x256xf32>
    %798 = arith.addf %781, %797 : vector<1x256xf32>
    %c1_432 = arith.constant 1 : index
    %c10_433 = arith.constant 10 : index
    %799 = memref.load %arg0[%c1_432, %c10_433] : memref<4x36xf32, #tpu.memory_space<smem>>
    %800 = vector.broadcast %799 : f32 to vector<1x256xf32>
    %801 = arith.mulf %800, %794 : vector<1x256xf32>
    %802 = arith.addf %785, %801 : vector<1x256xf32>
    %c2_434 = arith.constant 2 : index
    %c10_435 = arith.constant 10 : index
    %803 = memref.load %arg0[%c2_434, %c10_435] : memref<4x36xf32, #tpu.memory_space<smem>>
    %804 = vector.broadcast %803 : f32 to vector<1x256xf32>
    %805 = arith.mulf %804, %794 : vector<1x256xf32>
    %806 = arith.addf %789, %805 : vector<1x256xf32>
    %c3_436 = arith.constant 3 : index
    %c10_437 = arith.constant 10 : index
    %807 = memref.load %arg0[%c3_436, %c10_437] : memref<4x36xf32, #tpu.memory_space<smem>>
    %808 = vector.broadcast %807 : f32 to vector<1x256xf32>
    %809 = arith.mulf %808, %794 : vector<1x256xf32>
    %810 = arith.addf %793, %809 : vector<1x256xf32>
    %c47 = arith.constant 47 : index
    %c0_438 = arith.constant 0 : index
    %811 = vector.load %arg1[%c47, %c0_438] : memref<72x256xf32, #tpu.memory_space<vmem>>, vector<1x256xf32>
    %c0_439 = arith.constant 0 : index
    %c11_440 = arith.constant 11 : index
    %812 = memref.load %arg0[%c0_439, %c11_440] : memref<4x36xf32, #tpu.memory_space<smem>>
    %813 = vector.broadcast %812 : f32 to vector<1x256xf32>
    %814 = arith.mulf %813, %811 : vector<1x256xf32>
    %815 = arith.addf %798, %814 : vector<1x256xf32>
    %c1_441 = arith.constant 1 : index
    %c11_442 = arith.constant 11 : index
    %816 = memref.load %arg0[%c1_441, %c11_442] : memref<4x36xf32, #tpu.memory_space<smem>>
    %817 = vector.broadcast %816 : f32 to vector<1x256xf32>
    %818 = arith.mulf %817, %811 : vector<1x256xf32>
    %819 = arith.addf %802, %818 : vector<1x256xf32>
    %c2_443 = arith.constant 2 : index
    %c11_444 = arith.constant 11 : index
    %820 = memref.load %arg0[%c2_443, %c11_444] : memref<4x36xf32, #tpu.memory_space<smem>>
    %821 = vector.broadcast %820 : f32 to vector<1x256xf32>
    %822 = arith.mulf %821, %811 : vector<1x256xf32>
    %823 = arith.addf %806, %822 : vector<1x256xf32>
    %c3_445 = arith.constant 3 : index
    %c11_446 = arith.constant 11 : index
    %824 = memref.load %arg0[%c3_445, %c11_446] : memref<4x36xf32, #tpu.memory_space<smem>>
    %825 = vector.broadcast %824 : f32 to vector<1x256xf32>
    %826 = arith.mulf %825, %811 : vector<1x256xf32>
    %827 = arith.addf %810, %826 : vector<1x256xf32>
    %c48 = arith.constant 48 : index
    %c0_447 = arith.constant 0 : index
    %828 = vector.load %arg1[%c48, %c0_447] : memref<72x256xf32, #tpu.memory_space<vmem>>, vector<1x256xf32>
    %c0_448 = arith.constant 0 : index
    %c12_449 = arith.constant 12 : index
    %829 = memref.load %arg0[%c0_448, %c12_449] : memref<4x36xf32, #tpu.memory_space<smem>>
    %830 = vector.broadcast %829 : f32 to vector<1x256xf32>
    %831 = arith.mulf %830, %828 : vector<1x256xf32>
    %832 = arith.addf %815, %831 : vector<1x256xf32>
    %c1_450 = arith.constant 1 : index
    %c12_451 = arith.constant 12 : index
    %833 = memref.load %arg0[%c1_450, %c12_451] : memref<4x36xf32, #tpu.memory_space<smem>>
    %834 = vector.broadcast %833 : f32 to vector<1x256xf32>
    %835 = arith.mulf %834, %828 : vector<1x256xf32>
    %836 = arith.addf %819, %835 : vector<1x256xf32>
    %c2_452 = arith.constant 2 : index
    %c12_453 = arith.constant 12 : index
    %837 = memref.load %arg0[%c2_452, %c12_453] : memref<4x36xf32, #tpu.memory_space<smem>>
    %838 = vector.broadcast %837 : f32 to vector<1x256xf32>
    %839 = arith.mulf %838, %828 : vector<1x256xf32>
    %840 = arith.addf %823, %839 : vector<1x256xf32>
    %c3_454 = arith.constant 3 : index
    %c12_455 = arith.constant 12 : index
    %841 = memref.load %arg0[%c3_454, %c12_455] : memref<4x36xf32, #tpu.memory_space<smem>>
    %842 = vector.broadcast %841 : f32 to vector<1x256xf32>
    %843 = arith.mulf %842, %828 : vector<1x256xf32>
    %844 = arith.addf %827, %843 : vector<1x256xf32>
    %c49 = arith.constant 49 : index
    %c0_456 = arith.constant 0 : index
    %845 = vector.load %arg1[%c49, %c0_456] : memref<72x256xf32, #tpu.memory_space<vmem>>, vector<1x256xf32>
    %c0_457 = arith.constant 0 : index
    %c13_458 = arith.constant 13 : index
    %846 = memref.load %arg0[%c0_457, %c13_458] : memref<4x36xf32, #tpu.memory_space<smem>>
    %847 = vector.broadcast %846 : f32 to vector<1x256xf32>
    %848 = arith.mulf %847, %845 : vector<1x256xf32>
    %849 = arith.addf %832, %848 : vector<1x256xf32>
    %c1_459 = arith.constant 1 : index
    %c13_460 = arith.constant 13 : index
    %850 = memref.load %arg0[%c1_459, %c13_460] : memref<4x36xf32, #tpu.memory_space<smem>>
    %851 = vector.broadcast %850 : f32 to vector<1x256xf32>
    %852 = arith.mulf %851, %845 : vector<1x256xf32>
    %853 = arith.addf %836, %852 : vector<1x256xf32>
    %c2_461 = arith.constant 2 : index
    %c13_462 = arith.constant 13 : index
    %854 = memref.load %arg0[%c2_461, %c13_462] : memref<4x36xf32, #tpu.memory_space<smem>>
    %855 = vector.broadcast %854 : f32 to vector<1x256xf32>
    %856 = arith.mulf %855, %845 : vector<1x256xf32>
    %857 = arith.addf %840, %856 : vector<1x256xf32>
    %c3_463 = arith.constant 3 : index
    %c13_464 = arith.constant 13 : index
    %858 = memref.load %arg0[%c3_463, %c13_464] : memref<4x36xf32, #tpu.memory_space<smem>>
    %859 = vector.broadcast %858 : f32 to vector<1x256xf32>
    %860 = arith.mulf %859, %845 : vector<1x256xf32>
    %861 = arith.addf %844, %860 : vector<1x256xf32>
    %c50 = arith.constant 50 : index
    %c0_465 = arith.constant 0 : index
    %862 = vector.load %arg1[%c50, %c0_465] : memref<72x256xf32, #tpu.memory_space<vmem>>, vector<1x256xf32>
    %c0_466 = arith.constant 0 : index
    %c14_467 = arith.constant 14 : index
    %863 = memref.load %arg0[%c0_466, %c14_467] : memref<4x36xf32, #tpu.memory_space<smem>>
    %864 = vector.broadcast %863 : f32 to vector<1x256xf32>
    %865 = arith.mulf %864, %862 : vector<1x256xf32>
    %866 = arith.addf %849, %865 : vector<1x256xf32>
    %c1_468 = arith.constant 1 : index
    %c14_469 = arith.constant 14 : index
    %867 = memref.load %arg0[%c1_468, %c14_469] : memref<4x36xf32, #tpu.memory_space<smem>>
    %868 = vector.broadcast %867 : f32 to vector<1x256xf32>
    %869 = arith.mulf %868, %862 : vector<1x256xf32>
    %870 = arith.addf %853, %869 : vector<1x256xf32>
    %c2_470 = arith.constant 2 : index
    %c14_471 = arith.constant 14 : index
    %871 = memref.load %arg0[%c2_470, %c14_471] : memref<4x36xf32, #tpu.memory_space<smem>>
    %872 = vector.broadcast %871 : f32 to vector<1x256xf32>
    %873 = arith.mulf %872, %862 : vector<1x256xf32>
    %874 = arith.addf %857, %873 : vector<1x256xf32>
    %c3_472 = arith.constant 3 : index
    %c14_473 = arith.constant 14 : index
    %875 = memref.load %arg0[%c3_472, %c14_473] : memref<4x36xf32, #tpu.memory_space<smem>>
    %876 = vector.broadcast %875 : f32 to vector<1x256xf32>
    %877 = arith.mulf %876, %862 : vector<1x256xf32>
    %878 = arith.addf %861, %877 : vector<1x256xf32>
    %c51 = arith.constant 51 : index
    %c0_474 = arith.constant 0 : index
    %879 = vector.load %arg1[%c51, %c0_474] : memref<72x256xf32, #tpu.memory_space<vmem>>, vector<1x256xf32>
    %c0_475 = arith.constant 0 : index
    %c15_476 = arith.constant 15 : index
    %880 = memref.load %arg0[%c0_475, %c15_476] : memref<4x36xf32, #tpu.memory_space<smem>>
    %881 = vector.broadcast %880 : f32 to vector<1x256xf32>
    %882 = arith.mulf %881, %879 : vector<1x256xf32>
    %883 = arith.addf %866, %882 : vector<1x256xf32>
    %c1_477 = arith.constant 1 : index
    %c15_478 = arith.constant 15 : index
    %884 = memref.load %arg0[%c1_477, %c15_478] : memref<4x36xf32, #tpu.memory_space<smem>>
    %885 = vector.broadcast %884 : f32 to vector<1x256xf32>
    %886 = arith.mulf %885, %879 : vector<1x256xf32>
    %887 = arith.addf %870, %886 : vector<1x256xf32>
    %c2_479 = arith.constant 2 : index
    %c15_480 = arith.constant 15 : index
    %888 = memref.load %arg0[%c2_479, %c15_480] : memref<4x36xf32, #tpu.memory_space<smem>>
    %889 = vector.broadcast %888 : f32 to vector<1x256xf32>
    %890 = arith.mulf %889, %879 : vector<1x256xf32>
    %891 = arith.addf %874, %890 : vector<1x256xf32>
    %c3_481 = arith.constant 3 : index
    %c15_482 = arith.constant 15 : index
    %892 = memref.load %arg0[%c3_481, %c15_482] : memref<4x36xf32, #tpu.memory_space<smem>>
    %893 = vector.broadcast %892 : f32 to vector<1x256xf32>
    %894 = arith.mulf %893, %879 : vector<1x256xf32>
    %895 = arith.addf %878, %894 : vector<1x256xf32>
    %c52 = arith.constant 52 : index
    %c0_483 = arith.constant 0 : index
    %896 = vector.load %arg1[%c52, %c0_483] : memref<72x256xf32, #tpu.memory_space<vmem>>, vector<1x256xf32>
    %c0_484 = arith.constant 0 : index
    %c16_485 = arith.constant 16 : index
    %897 = memref.load %arg0[%c0_484, %c16_485] : memref<4x36xf32, #tpu.memory_space<smem>>
    %898 = vector.broadcast %897 : f32 to vector<1x256xf32>
    %899 = arith.mulf %898, %896 : vector<1x256xf32>
    %900 = arith.addf %883, %899 : vector<1x256xf32>
    %c1_486 = arith.constant 1 : index
    %c16_487 = arith.constant 16 : index
    %901 = memref.load %arg0[%c1_486, %c16_487] : memref<4x36xf32, #tpu.memory_space<smem>>
    %902 = vector.broadcast %901 : f32 to vector<1x256xf32>
    %903 = arith.mulf %902, %896 : vector<1x256xf32>
    %904 = arith.addf %887, %903 : vector<1x256xf32>
    %c2_488 = arith.constant 2 : index
    %c16_489 = arith.constant 16 : index
    %905 = memref.load %arg0[%c2_488, %c16_489] : memref<4x36xf32, #tpu.memory_space<smem>>
    %906 = vector.broadcast %905 : f32 to vector<1x256xf32>
    %907 = arith.mulf %906, %896 : vector<1x256xf32>
    %908 = arith.addf %891, %907 : vector<1x256xf32>
    %c3_490 = arith.constant 3 : index
    %c16_491 = arith.constant 16 : index
    %909 = memref.load %arg0[%c3_490, %c16_491] : memref<4x36xf32, #tpu.memory_space<smem>>
    %910 = vector.broadcast %909 : f32 to vector<1x256xf32>
    %911 = arith.mulf %910, %896 : vector<1x256xf32>
    %912 = arith.addf %895, %911 : vector<1x256xf32>
    %c53 = arith.constant 53 : index
    %c0_492 = arith.constant 0 : index
    %913 = vector.load %arg1[%c53, %c0_492] : memref<72x256xf32, #tpu.memory_space<vmem>>, vector<1x256xf32>
    %c0_493 = arith.constant 0 : index
    %c17_494 = arith.constant 17 : index
    %914 = memref.load %arg0[%c0_493, %c17_494] : memref<4x36xf32, #tpu.memory_space<smem>>
    %915 = vector.broadcast %914 : f32 to vector<1x256xf32>
    %916 = arith.mulf %915, %913 : vector<1x256xf32>
    %917 = arith.addf %900, %916 : vector<1x256xf32>
    %c1_495 = arith.constant 1 : index
    %c17_496 = arith.constant 17 : index
    %918 = memref.load %arg0[%c1_495, %c17_496] : memref<4x36xf32, #tpu.memory_space<smem>>
    %919 = vector.broadcast %918 : f32 to vector<1x256xf32>
    %920 = arith.mulf %919, %913 : vector<1x256xf32>
    %921 = arith.addf %904, %920 : vector<1x256xf32>
    %c2_497 = arith.constant 2 : index
    %c17_498 = arith.constant 17 : index
    %922 = memref.load %arg0[%c2_497, %c17_498] : memref<4x36xf32, #tpu.memory_space<smem>>
    %923 = vector.broadcast %922 : f32 to vector<1x256xf32>
    %924 = arith.mulf %923, %913 : vector<1x256xf32>
    %925 = arith.addf %908, %924 : vector<1x256xf32>
    %c3_499 = arith.constant 3 : index
    %c17_500 = arith.constant 17 : index
    %926 = memref.load %arg0[%c3_499, %c17_500] : memref<4x36xf32, #tpu.memory_space<smem>>
    %927 = vector.broadcast %926 : f32 to vector<1x256xf32>
    %928 = arith.mulf %927, %913 : vector<1x256xf32>
    %929 = arith.addf %912, %928 : vector<1x256xf32>
    %c54 = arith.constant 54 : index
    %c0_501 = arith.constant 0 : index
    %930 = vector.load %arg1[%c54, %c0_501] : memref<72x256xf32, #tpu.memory_space<vmem>>, vector<1x256xf32>
    %c0_502 = arith.constant 0 : index
    %c18_503 = arith.constant 18 : index
    %931 = memref.load %arg0[%c0_502, %c18_503] : memref<4x36xf32, #tpu.memory_space<smem>>
    %932 = vector.broadcast %931 : f32 to vector<1x256xf32>
    %933 = arith.mulf %932, %930 : vector<1x256xf32>
    %934 = arith.addf %917, %933 : vector<1x256xf32>
    %c1_504 = arith.constant 1 : index
    %c18_505 = arith.constant 18 : index
    %935 = memref.load %arg0[%c1_504, %c18_505] : memref<4x36xf32, #tpu.memory_space<smem>>
    %936 = vector.broadcast %935 : f32 to vector<1x256xf32>
    %937 = arith.mulf %936, %930 : vector<1x256xf32>
    %938 = arith.addf %921, %937 : vector<1x256xf32>
    %c2_506 = arith.constant 2 : index
    %c18_507 = arith.constant 18 : index
    %939 = memref.load %arg0[%c2_506, %c18_507] : memref<4x36xf32, #tpu.memory_space<smem>>
    %940 = vector.broadcast %939 : f32 to vector<1x256xf32>
    %941 = arith.mulf %940, %930 : vector<1x256xf32>
    %942 = arith.addf %925, %941 : vector<1x256xf32>
    %c3_508 = arith.constant 3 : index
    %c18_509 = arith.constant 18 : index
    %943 = memref.load %arg0[%c3_508, %c18_509] : memref<4x36xf32, #tpu.memory_space<smem>>
    %944 = vector.broadcast %943 : f32 to vector<1x256xf32>
    %945 = arith.mulf %944, %930 : vector<1x256xf32>
    %946 = arith.addf %929, %945 : vector<1x256xf32>
    %c55 = arith.constant 55 : index
    %c0_510 = arith.constant 0 : index
    %947 = vector.load %arg1[%c55, %c0_510] : memref<72x256xf32, #tpu.memory_space<vmem>>, vector<1x256xf32>
    %c0_511 = arith.constant 0 : index
    %c19_512 = arith.constant 19 : index
    %948 = memref.load %arg0[%c0_511, %c19_512] : memref<4x36xf32, #tpu.memory_space<smem>>
    %949 = vector.broadcast %948 : f32 to vector<1x256xf32>
    %950 = arith.mulf %949, %947 : vector<1x256xf32>
    %951 = arith.addf %934, %950 : vector<1x256xf32>
    %c1_513 = arith.constant 1 : index
    %c19_514 = arith.constant 19 : index
    %952 = memref.load %arg0[%c1_513, %c19_514] : memref<4x36xf32, #tpu.memory_space<smem>>
    %953 = vector.broadcast %952 : f32 to vector<1x256xf32>
    %954 = arith.mulf %953, %947 : vector<1x256xf32>
    %955 = arith.addf %938, %954 : vector<1x256xf32>
    %c2_515 = arith.constant 2 : index
    %c19_516 = arith.constant 19 : index
    %956 = memref.load %arg0[%c2_515, %c19_516] : memref<4x36xf32, #tpu.memory_space<smem>>
    %957 = vector.broadcast %956 : f32 to vector<1x256xf32>
    %958 = arith.mulf %957, %947 : vector<1x256xf32>
    %959 = arith.addf %942, %958 : vector<1x256xf32>
    %c3_517 = arith.constant 3 : index
    %c19_518 = arith.constant 19 : index
    %960 = memref.load %arg0[%c3_517, %c19_518] : memref<4x36xf32, #tpu.memory_space<smem>>
    %961 = vector.broadcast %960 : f32 to vector<1x256xf32>
    %962 = arith.mulf %961, %947 : vector<1x256xf32>
    %963 = arith.addf %946, %962 : vector<1x256xf32>
    %c56 = arith.constant 56 : index
    %c0_519 = arith.constant 0 : index
    %964 = vector.load %arg1[%c56, %c0_519] : memref<72x256xf32, #tpu.memory_space<vmem>>, vector<1x256xf32>
    %c0_520 = arith.constant 0 : index
    %c20_521 = arith.constant 20 : index
    %965 = memref.load %arg0[%c0_520, %c20_521] : memref<4x36xf32, #tpu.memory_space<smem>>
    %966 = vector.broadcast %965 : f32 to vector<1x256xf32>
    %967 = arith.mulf %966, %964 : vector<1x256xf32>
    %968 = arith.addf %951, %967 : vector<1x256xf32>
    %c1_522 = arith.constant 1 : index
    %c20_523 = arith.constant 20 : index
    %969 = memref.load %arg0[%c1_522, %c20_523] : memref<4x36xf32, #tpu.memory_space<smem>>
    %970 = vector.broadcast %969 : f32 to vector<1x256xf32>
    %971 = arith.mulf %970, %964 : vector<1x256xf32>
    %972 = arith.addf %955, %971 : vector<1x256xf32>
    %c2_524 = arith.constant 2 : index
    %c20_525 = arith.constant 20 : index
    %973 = memref.load %arg0[%c2_524, %c20_525] : memref<4x36xf32, #tpu.memory_space<smem>>
    %974 = vector.broadcast %973 : f32 to vector<1x256xf32>
    %975 = arith.mulf %974, %964 : vector<1x256xf32>
    %976 = arith.addf %959, %975 : vector<1x256xf32>
    %c3_526 = arith.constant 3 : index
    %c20_527 = arith.constant 20 : index
    %977 = memref.load %arg0[%c3_526, %c20_527] : memref<4x36xf32, #tpu.memory_space<smem>>
    %978 = vector.broadcast %977 : f32 to vector<1x256xf32>
    %979 = arith.mulf %978, %964 : vector<1x256xf32>
    %980 = arith.addf %963, %979 : vector<1x256xf32>
    %c57 = arith.constant 57 : index
    %c0_528 = arith.constant 0 : index
    %981 = vector.load %arg1[%c57, %c0_528] : memref<72x256xf32, #tpu.memory_space<vmem>>, vector<1x256xf32>
    %c0_529 = arith.constant 0 : index
    %c21_530 = arith.constant 21 : index
    %982 = memref.load %arg0[%c0_529, %c21_530] : memref<4x36xf32, #tpu.memory_space<smem>>
    %983 = vector.broadcast %982 : f32 to vector<1x256xf32>
    %984 = arith.mulf %983, %981 : vector<1x256xf32>
    %985 = arith.addf %968, %984 : vector<1x256xf32>
    %c1_531 = arith.constant 1 : index
    %c21_532 = arith.constant 21 : index
    %986 = memref.load %arg0[%c1_531, %c21_532] : memref<4x36xf32, #tpu.memory_space<smem>>
    %987 = vector.broadcast %986 : f32 to vector<1x256xf32>
    %988 = arith.mulf %987, %981 : vector<1x256xf32>
    %989 = arith.addf %972, %988 : vector<1x256xf32>
    %c2_533 = arith.constant 2 : index
    %c21_534 = arith.constant 21 : index
    %990 = memref.load %arg0[%c2_533, %c21_534] : memref<4x36xf32, #tpu.memory_space<smem>>
    %991 = vector.broadcast %990 : f32 to vector<1x256xf32>
    %992 = arith.mulf %991, %981 : vector<1x256xf32>
    %993 = arith.addf %976, %992 : vector<1x256xf32>
    %c3_535 = arith.constant 3 : index
    %c21_536 = arith.constant 21 : index
    %994 = memref.load %arg0[%c3_535, %c21_536] : memref<4x36xf32, #tpu.memory_space<smem>>
    %995 = vector.broadcast %994 : f32 to vector<1x256xf32>
    %996 = arith.mulf %995, %981 : vector<1x256xf32>
    %997 = arith.addf %980, %996 : vector<1x256xf32>
    %c58 = arith.constant 58 : index
    %c0_537 = arith.constant 0 : index
    %998 = vector.load %arg1[%c58, %c0_537] : memref<72x256xf32, #tpu.memory_space<vmem>>, vector<1x256xf32>
    %c0_538 = arith.constant 0 : index
    %c22_539 = arith.constant 22 : index
    %999 = memref.load %arg0[%c0_538, %c22_539] : memref<4x36xf32, #tpu.memory_space<smem>>
    %1000 = vector.broadcast %999 : f32 to vector<1x256xf32>
    %1001 = arith.mulf %1000, %998 : vector<1x256xf32>
    %1002 = arith.addf %985, %1001 : vector<1x256xf32>
    %c1_540 = arith.constant 1 : index
    %c22_541 = arith.constant 22 : index
    %1003 = memref.load %arg0[%c1_540, %c22_541] : memref<4x36xf32, #tpu.memory_space<smem>>
    %1004 = vector.broadcast %1003 : f32 to vector<1x256xf32>
    %1005 = arith.mulf %1004, %998 : vector<1x256xf32>
    %1006 = arith.addf %989, %1005 : vector<1x256xf32>
    %c2_542 = arith.constant 2 : index
    %c22_543 = arith.constant 22 : index
    %1007 = memref.load %arg0[%c2_542, %c22_543] : memref<4x36xf32, #tpu.memory_space<smem>>
    %1008 = vector.broadcast %1007 : f32 to vector<1x256xf32>
    %1009 = arith.mulf %1008, %998 : vector<1x256xf32>
    %1010 = arith.addf %993, %1009 : vector<1x256xf32>
    %c3_544 = arith.constant 3 : index
    %c22_545 = arith.constant 22 : index
    %1011 = memref.load %arg0[%c3_544, %c22_545] : memref<4x36xf32, #tpu.memory_space<smem>>
    %1012 = vector.broadcast %1011 : f32 to vector<1x256xf32>
    %1013 = arith.mulf %1012, %998 : vector<1x256xf32>
    %1014 = arith.addf %997, %1013 : vector<1x256xf32>
    %c59 = arith.constant 59 : index
    %c0_546 = arith.constant 0 : index
    %1015 = vector.load %arg1[%c59, %c0_546] : memref<72x256xf32, #tpu.memory_space<vmem>>, vector<1x256xf32>
    %c0_547 = arith.constant 0 : index
    %c23_548 = arith.constant 23 : index
    %1016 = memref.load %arg0[%c0_547, %c23_548] : memref<4x36xf32, #tpu.memory_space<smem>>
    %1017 = vector.broadcast %1016 : f32 to vector<1x256xf32>
    %1018 = arith.mulf %1017, %1015 : vector<1x256xf32>
    %1019 = arith.addf %1002, %1018 : vector<1x256xf32>
    %c1_549 = arith.constant 1 : index
    %c23_550 = arith.constant 23 : index
    %1020 = memref.load %arg0[%c1_549, %c23_550] : memref<4x36xf32, #tpu.memory_space<smem>>
    %1021 = vector.broadcast %1020 : f32 to vector<1x256xf32>
    %1022 = arith.mulf %1021, %1015 : vector<1x256xf32>
    %1023 = arith.addf %1006, %1022 : vector<1x256xf32>
    %c2_551 = arith.constant 2 : index
    %c23_552 = arith.constant 23 : index
    %1024 = memref.load %arg0[%c2_551, %c23_552] : memref<4x36xf32, #tpu.memory_space<smem>>
    %1025 = vector.broadcast %1024 : f32 to vector<1x256xf32>
    %1026 = arith.mulf %1025, %1015 : vector<1x256xf32>
    %1027 = arith.addf %1010, %1026 : vector<1x256xf32>
    %c3_553 = arith.constant 3 : index
    %c23_554 = arith.constant 23 : index
    %1028 = memref.load %arg0[%c3_553, %c23_554] : memref<4x36xf32, #tpu.memory_space<smem>>
    %1029 = vector.broadcast %1028 : f32 to vector<1x256xf32>
    %1030 = arith.mulf %1029, %1015 : vector<1x256xf32>
    %1031 = arith.addf %1014, %1030 : vector<1x256xf32>
    %c60 = arith.constant 60 : index
    %c0_555 = arith.constant 0 : index
    %1032 = vector.load %arg1[%c60, %c0_555] : memref<72x256xf32, #tpu.memory_space<vmem>>, vector<1x256xf32>
    %c0_556 = arith.constant 0 : index
    %c24_557 = arith.constant 24 : index
    %1033 = memref.load %arg0[%c0_556, %c24_557] : memref<4x36xf32, #tpu.memory_space<smem>>
    %1034 = vector.broadcast %1033 : f32 to vector<1x256xf32>
    %1035 = arith.mulf %1034, %1032 : vector<1x256xf32>
    %1036 = arith.addf %1019, %1035 : vector<1x256xf32>
    %c1_558 = arith.constant 1 : index
    %c24_559 = arith.constant 24 : index
    %1037 = memref.load %arg0[%c1_558, %c24_559] : memref<4x36xf32, #tpu.memory_space<smem>>
    %1038 = vector.broadcast %1037 : f32 to vector<1x256xf32>
    %1039 = arith.mulf %1038, %1032 : vector<1x256xf32>
    %1040 = arith.addf %1023, %1039 : vector<1x256xf32>
    %c2_560 = arith.constant 2 : index
    %c24_561 = arith.constant 24 : index
    %1041 = memref.load %arg0[%c2_560, %c24_561] : memref<4x36xf32, #tpu.memory_space<smem>>
    %1042 = vector.broadcast %1041 : f32 to vector<1x256xf32>
    %1043 = arith.mulf %1042, %1032 : vector<1x256xf32>
    %1044 = arith.addf %1027, %1043 : vector<1x256xf32>
    %c3_562 = arith.constant 3 : index
    %c24_563 = arith.constant 24 : index
    %1045 = memref.load %arg0[%c3_562, %c24_563] : memref<4x36xf32, #tpu.memory_space<smem>>
    %1046 = vector.broadcast %1045 : f32 to vector<1x256xf32>
    %1047 = arith.mulf %1046, %1032 : vector<1x256xf32>
    %1048 = arith.addf %1031, %1047 : vector<1x256xf32>
    %c61 = arith.constant 61 : index
    %c0_564 = arith.constant 0 : index
    %1049 = vector.load %arg1[%c61, %c0_564] : memref<72x256xf32, #tpu.memory_space<vmem>>, vector<1x256xf32>
    %c0_565 = arith.constant 0 : index
    %c25_566 = arith.constant 25 : index
    %1050 = memref.load %arg0[%c0_565, %c25_566] : memref<4x36xf32, #tpu.memory_space<smem>>
    %1051 = vector.broadcast %1050 : f32 to vector<1x256xf32>
    %1052 = arith.mulf %1051, %1049 : vector<1x256xf32>
    %1053 = arith.addf %1036, %1052 : vector<1x256xf32>
    %c1_567 = arith.constant 1 : index
    %c25_568 = arith.constant 25 : index
    %1054 = memref.load %arg0[%c1_567, %c25_568] : memref<4x36xf32, #tpu.memory_space<smem>>
    %1055 = vector.broadcast %1054 : f32 to vector<1x256xf32>
    %1056 = arith.mulf %1055, %1049 : vector<1x256xf32>
    %1057 = arith.addf %1040, %1056 : vector<1x256xf32>
    %c2_569 = arith.constant 2 : index
    %c25_570 = arith.constant 25 : index
    %1058 = memref.load %arg0[%c2_569, %c25_570] : memref<4x36xf32, #tpu.memory_space<smem>>
    %1059 = vector.broadcast %1058 : f32 to vector<1x256xf32>
    %1060 = arith.mulf %1059, %1049 : vector<1x256xf32>
    %1061 = arith.addf %1044, %1060 : vector<1x256xf32>
    %c3_571 = arith.constant 3 : index
    %c25_572 = arith.constant 25 : index
    %1062 = memref.load %arg0[%c3_571, %c25_572] : memref<4x36xf32, #tpu.memory_space<smem>>
    %1063 = vector.broadcast %1062 : f32 to vector<1x256xf32>
    %1064 = arith.mulf %1063, %1049 : vector<1x256xf32>
    %1065 = arith.addf %1048, %1064 : vector<1x256xf32>
    %c62 = arith.constant 62 : index
    %c0_573 = arith.constant 0 : index
    %1066 = vector.load %arg1[%c62, %c0_573] : memref<72x256xf32, #tpu.memory_space<vmem>>, vector<1x256xf32>
    %c0_574 = arith.constant 0 : index
    %c26_575 = arith.constant 26 : index
    %1067 = memref.load %arg0[%c0_574, %c26_575] : memref<4x36xf32, #tpu.memory_space<smem>>
    %1068 = vector.broadcast %1067 : f32 to vector<1x256xf32>
    %1069 = arith.mulf %1068, %1066 : vector<1x256xf32>
    %1070 = arith.addf %1053, %1069 : vector<1x256xf32>
    %c1_576 = arith.constant 1 : index
    %c26_577 = arith.constant 26 : index
    %1071 = memref.load %arg0[%c1_576, %c26_577] : memref<4x36xf32, #tpu.memory_space<smem>>
    %1072 = vector.broadcast %1071 : f32 to vector<1x256xf32>
    %1073 = arith.mulf %1072, %1066 : vector<1x256xf32>
    %1074 = arith.addf %1057, %1073 : vector<1x256xf32>
    %c2_578 = arith.constant 2 : index
    %c26_579 = arith.constant 26 : index
    %1075 = memref.load %arg0[%c2_578, %c26_579] : memref<4x36xf32, #tpu.memory_space<smem>>
    %1076 = vector.broadcast %1075 : f32 to vector<1x256xf32>
    %1077 = arith.mulf %1076, %1066 : vector<1x256xf32>
    %1078 = arith.addf %1061, %1077 : vector<1x256xf32>
    %c3_580 = arith.constant 3 : index
    %c26_581 = arith.constant 26 : index
    %1079 = memref.load %arg0[%c3_580, %c26_581] : memref<4x36xf32, #tpu.memory_space<smem>>
    %1080 = vector.broadcast %1079 : f32 to vector<1x256xf32>
    %1081 = arith.mulf %1080, %1066 : vector<1x256xf32>
    %1082 = arith.addf %1065, %1081 : vector<1x256xf32>
    %c63 = arith.constant 63 : index
    %c0_582 = arith.constant 0 : index
    %1083 = vector.load %arg1[%c63, %c0_582] : memref<72x256xf32, #tpu.memory_space<vmem>>, vector<1x256xf32>
    %c0_583 = arith.constant 0 : index
    %c27_584 = arith.constant 27 : index
    %1084 = memref.load %arg0[%c0_583, %c27_584] : memref<4x36xf32, #tpu.memory_space<smem>>
    %1085 = vector.broadcast %1084 : f32 to vector<1x256xf32>
    %1086 = arith.mulf %1085, %1083 : vector<1x256xf32>
    %1087 = arith.addf %1070, %1086 : vector<1x256xf32>
    %c1_585 = arith.constant 1 : index
    %c27_586 = arith.constant 27 : index
    %1088 = memref.load %arg0[%c1_585, %c27_586] : memref<4x36xf32, #tpu.memory_space<smem>>
    %1089 = vector.broadcast %1088 : f32 to vector<1x256xf32>
    %1090 = arith.mulf %1089, %1083 : vector<1x256xf32>
    %1091 = arith.addf %1074, %1090 : vector<1x256xf32>
    %c2_587 = arith.constant 2 : index
    %c27_588 = arith.constant 27 : index
    %1092 = memref.load %arg0[%c2_587, %c27_588] : memref<4x36xf32, #tpu.memory_space<smem>>
    %1093 = vector.broadcast %1092 : f32 to vector<1x256xf32>
    %1094 = arith.mulf %1093, %1083 : vector<1x256xf32>
    %1095 = arith.addf %1078, %1094 : vector<1x256xf32>
    %c3_589 = arith.constant 3 : index
    %c27_590 = arith.constant 27 : index
    %1096 = memref.load %arg0[%c3_589, %c27_590] : memref<4x36xf32, #tpu.memory_space<smem>>
    %1097 = vector.broadcast %1096 : f32 to vector<1x256xf32>
    %1098 = arith.mulf %1097, %1083 : vector<1x256xf32>
    %1099 = arith.addf %1082, %1098 : vector<1x256xf32>
    %c64 = arith.constant 64 : index
    %c0_591 = arith.constant 0 : index
    %1100 = vector.load %arg1[%c64, %c0_591] : memref<72x256xf32, #tpu.memory_space<vmem>>, vector<1x256xf32>
    %c0_592 = arith.constant 0 : index
    %c28_593 = arith.constant 28 : index
    %1101 = memref.load %arg0[%c0_592, %c28_593] : memref<4x36xf32, #tpu.memory_space<smem>>
    %1102 = vector.broadcast %1101 : f32 to vector<1x256xf32>
    %1103 = arith.mulf %1102, %1100 : vector<1x256xf32>
    %1104 = arith.addf %1087, %1103 : vector<1x256xf32>
    %c1_594 = arith.constant 1 : index
    %c28_595 = arith.constant 28 : index
    %1105 = memref.load %arg0[%c1_594, %c28_595] : memref<4x36xf32, #tpu.memory_space<smem>>
    %1106 = vector.broadcast %1105 : f32 to vector<1x256xf32>
    %1107 = arith.mulf %1106, %1100 : vector<1x256xf32>
    %1108 = arith.addf %1091, %1107 : vector<1x256xf32>
    %c2_596 = arith.constant 2 : index
    %c28_597 = arith.constant 28 : index
    %1109 = memref.load %arg0[%c2_596, %c28_597] : memref<4x36xf32, #tpu.memory_space<smem>>
    %1110 = vector.broadcast %1109 : f32 to vector<1x256xf32>
    %1111 = arith.mulf %1110, %1100 : vector<1x256xf32>
    %1112 = arith.addf %1095, %1111 : vector<1x256xf32>
    %c3_598 = arith.constant 3 : index
    %c28_599 = arith.constant 28 : index
    %1113 = memref.load %arg0[%c3_598, %c28_599] : memref<4x36xf32, #tpu.memory_space<smem>>
    %1114 = vector.broadcast %1113 : f32 to vector<1x256xf32>
    %1115 = arith.mulf %1114, %1100 : vector<1x256xf32>
    %1116 = arith.addf %1099, %1115 : vector<1x256xf32>
    %c65 = arith.constant 65 : index
    %c0_600 = arith.constant 0 : index
    %1117 = vector.load %arg1[%c65, %c0_600] : memref<72x256xf32, #tpu.memory_space<vmem>>, vector<1x256xf32>
    %c0_601 = arith.constant 0 : index
    %c29_602 = arith.constant 29 : index
    %1118 = memref.load %arg0[%c0_601, %c29_602] : memref<4x36xf32, #tpu.memory_space<smem>>
    %1119 = vector.broadcast %1118 : f32 to vector<1x256xf32>
    %1120 = arith.mulf %1119, %1117 : vector<1x256xf32>
    %1121 = arith.addf %1104, %1120 : vector<1x256xf32>
    %c1_603 = arith.constant 1 : index
    %c29_604 = arith.constant 29 : index
    %1122 = memref.load %arg0[%c1_603, %c29_604] : memref<4x36xf32, #tpu.memory_space<smem>>
    %1123 = vector.broadcast %1122 : f32 to vector<1x256xf32>
    %1124 = arith.mulf %1123, %1117 : vector<1x256xf32>
    %1125 = arith.addf %1108, %1124 : vector<1x256xf32>
    %c2_605 = arith.constant 2 : index
    %c29_606 = arith.constant 29 : index
    %1126 = memref.load %arg0[%c2_605, %c29_606] : memref<4x36xf32, #tpu.memory_space<smem>>
    %1127 = vector.broadcast %1126 : f32 to vector<1x256xf32>
    %1128 = arith.mulf %1127, %1117 : vector<1x256xf32>
    %1129 = arith.addf %1112, %1128 : vector<1x256xf32>
    %c3_607 = arith.constant 3 : index
    %c29_608 = arith.constant 29 : index
    %1130 = memref.load %arg0[%c3_607, %c29_608] : memref<4x36xf32, #tpu.memory_space<smem>>
    %1131 = vector.broadcast %1130 : f32 to vector<1x256xf32>
    %1132 = arith.mulf %1131, %1117 : vector<1x256xf32>
    %1133 = arith.addf %1116, %1132 : vector<1x256xf32>
    %c66 = arith.constant 66 : index
    %c0_609 = arith.constant 0 : index
    %1134 = vector.load %arg1[%c66, %c0_609] : memref<72x256xf32, #tpu.memory_space<vmem>>, vector<1x256xf32>
    %c0_610 = arith.constant 0 : index
    %c30_611 = arith.constant 30 : index
    %1135 = memref.load %arg0[%c0_610, %c30_611] : memref<4x36xf32, #tpu.memory_space<smem>>
    %1136 = vector.broadcast %1135 : f32 to vector<1x256xf32>
    %1137 = arith.mulf %1136, %1134 : vector<1x256xf32>
    %1138 = arith.addf %1121, %1137 : vector<1x256xf32>
    %c1_612 = arith.constant 1 : index
    %c30_613 = arith.constant 30 : index
    %1139 = memref.load %arg0[%c1_612, %c30_613] : memref<4x36xf32, #tpu.memory_space<smem>>
    %1140 = vector.broadcast %1139 : f32 to vector<1x256xf32>
    %1141 = arith.mulf %1140, %1134 : vector<1x256xf32>
    %1142 = arith.addf %1125, %1141 : vector<1x256xf32>
    %c2_614 = arith.constant 2 : index
    %c30_615 = arith.constant 30 : index
    %1143 = memref.load %arg0[%c2_614, %c30_615] : memref<4x36xf32, #tpu.memory_space<smem>>
    %1144 = vector.broadcast %1143 : f32 to vector<1x256xf32>
    %1145 = arith.mulf %1144, %1134 : vector<1x256xf32>
    %1146 = arith.addf %1129, %1145 : vector<1x256xf32>
    %c3_616 = arith.constant 3 : index
    %c30_617 = arith.constant 30 : index
    %1147 = memref.load %arg0[%c3_616, %c30_617] : memref<4x36xf32, #tpu.memory_space<smem>>
    %1148 = vector.broadcast %1147 : f32 to vector<1x256xf32>
    %1149 = arith.mulf %1148, %1134 : vector<1x256xf32>
    %1150 = arith.addf %1133, %1149 : vector<1x256xf32>
    %c67 = arith.constant 67 : index
    %c0_618 = arith.constant 0 : index
    %1151 = vector.load %arg1[%c67, %c0_618] : memref<72x256xf32, #tpu.memory_space<vmem>>, vector<1x256xf32>
    %c0_619 = arith.constant 0 : index
    %c31_620 = arith.constant 31 : index
    %1152 = memref.load %arg0[%c0_619, %c31_620] : memref<4x36xf32, #tpu.memory_space<smem>>
    %1153 = vector.broadcast %1152 : f32 to vector<1x256xf32>
    %1154 = arith.mulf %1153, %1151 : vector<1x256xf32>
    %1155 = arith.addf %1138, %1154 : vector<1x256xf32>
    %c1_621 = arith.constant 1 : index
    %c31_622 = arith.constant 31 : index
    %1156 = memref.load %arg0[%c1_621, %c31_622] : memref<4x36xf32, #tpu.memory_space<smem>>
    %1157 = vector.broadcast %1156 : f32 to vector<1x256xf32>
    %1158 = arith.mulf %1157, %1151 : vector<1x256xf32>
    %1159 = arith.addf %1142, %1158 : vector<1x256xf32>
    %c2_623 = arith.constant 2 : index
    %c31_624 = arith.constant 31 : index
    %1160 = memref.load %arg0[%c2_623, %c31_624] : memref<4x36xf32, #tpu.memory_space<smem>>
    %1161 = vector.broadcast %1160 : f32 to vector<1x256xf32>
    %1162 = arith.mulf %1161, %1151 : vector<1x256xf32>
    %1163 = arith.addf %1146, %1162 : vector<1x256xf32>
    %c3_625 = arith.constant 3 : index
    %c31_626 = arith.constant 31 : index
    %1164 = memref.load %arg0[%c3_625, %c31_626] : memref<4x36xf32, #tpu.memory_space<smem>>
    %1165 = vector.broadcast %1164 : f32 to vector<1x256xf32>
    %1166 = arith.mulf %1165, %1151 : vector<1x256xf32>
    %1167 = arith.addf %1150, %1166 : vector<1x256xf32>
    %c68 = arith.constant 68 : index
    %c0_627 = arith.constant 0 : index
    %1168 = vector.load %arg1[%c68, %c0_627] : memref<72x256xf32, #tpu.memory_space<vmem>>, vector<1x256xf32>
    %c0_628 = arith.constant 0 : index
    %c32_629 = arith.constant 32 : index
    %1169 = memref.load %arg0[%c0_628, %c32_629] : memref<4x36xf32, #tpu.memory_space<smem>>
    %1170 = vector.broadcast %1169 : f32 to vector<1x256xf32>
    %1171 = arith.mulf %1170, %1168 : vector<1x256xf32>
    %1172 = arith.addf %1155, %1171 : vector<1x256xf32>
    %c1_630 = arith.constant 1 : index
    %c32_631 = arith.constant 32 : index
    %1173 = memref.load %arg0[%c1_630, %c32_631] : memref<4x36xf32, #tpu.memory_space<smem>>
    %1174 = vector.broadcast %1173 : f32 to vector<1x256xf32>
    %1175 = arith.mulf %1174, %1168 : vector<1x256xf32>
    %1176 = arith.addf %1159, %1175 : vector<1x256xf32>
    %c2_632 = arith.constant 2 : index
    %c32_633 = arith.constant 32 : index
    %1177 = memref.load %arg0[%c2_632, %c32_633] : memref<4x36xf32, #tpu.memory_space<smem>>
    %1178 = vector.broadcast %1177 : f32 to vector<1x256xf32>
    %1179 = arith.mulf %1178, %1168 : vector<1x256xf32>
    %1180 = arith.addf %1163, %1179 : vector<1x256xf32>
    %c3_634 = arith.constant 3 : index
    %c32_635 = arith.constant 32 : index
    %1181 = memref.load %arg0[%c3_634, %c32_635] : memref<4x36xf32, #tpu.memory_space<smem>>
    %1182 = vector.broadcast %1181 : f32 to vector<1x256xf32>
    %1183 = arith.mulf %1182, %1168 : vector<1x256xf32>
    %1184 = arith.addf %1167, %1183 : vector<1x256xf32>
    %c69 = arith.constant 69 : index
    %c0_636 = arith.constant 0 : index
    %1185 = vector.load %arg1[%c69, %c0_636] : memref<72x256xf32, #tpu.memory_space<vmem>>, vector<1x256xf32>
    %c0_637 = arith.constant 0 : index
    %c33_638 = arith.constant 33 : index
    %1186 = memref.load %arg0[%c0_637, %c33_638] : memref<4x36xf32, #tpu.memory_space<smem>>
    %1187 = vector.broadcast %1186 : f32 to vector<1x256xf32>
    %1188 = arith.mulf %1187, %1185 : vector<1x256xf32>
    %1189 = arith.addf %1172, %1188 : vector<1x256xf32>
    %c1_639 = arith.constant 1 : index
    %c33_640 = arith.constant 33 : index
    %1190 = memref.load %arg0[%c1_639, %c33_640] : memref<4x36xf32, #tpu.memory_space<smem>>
    %1191 = vector.broadcast %1190 : f32 to vector<1x256xf32>
    %1192 = arith.mulf %1191, %1185 : vector<1x256xf32>
    %1193 = arith.addf %1176, %1192 : vector<1x256xf32>
    %c2_641 = arith.constant 2 : index
    %c33_642 = arith.constant 33 : index
    %1194 = memref.load %arg0[%c2_641, %c33_642] : memref<4x36xf32, #tpu.memory_space<smem>>
    %1195 = vector.broadcast %1194 : f32 to vector<1x256xf32>
    %1196 = arith.mulf %1195, %1185 : vector<1x256xf32>
    %1197 = arith.addf %1180, %1196 : vector<1x256xf32>
    %c3_643 = arith.constant 3 : index
    %c33_644 = arith.constant 33 : index
    %1198 = memref.load %arg0[%c3_643, %c33_644] : memref<4x36xf32, #tpu.memory_space<smem>>
    %1199 = vector.broadcast %1198 : f32 to vector<1x256xf32>
    %1200 = arith.mulf %1199, %1185 : vector<1x256xf32>
    %1201 = arith.addf %1184, %1200 : vector<1x256xf32>
    %c70 = arith.constant 70 : index
    %c0_645 = arith.constant 0 : index
    %1202 = vector.load %arg1[%c70, %c0_645] : memref<72x256xf32, #tpu.memory_space<vmem>>, vector<1x256xf32>
    %c0_646 = arith.constant 0 : index
    %c34_647 = arith.constant 34 : index
    %1203 = memref.load %arg0[%c0_646, %c34_647] : memref<4x36xf32, #tpu.memory_space<smem>>
    %1204 = vector.broadcast %1203 : f32 to vector<1x256xf32>
    %1205 = arith.mulf %1204, %1202 : vector<1x256xf32>
    %1206 = arith.addf %1189, %1205 : vector<1x256xf32>
    %c1_648 = arith.constant 1 : index
    %c34_649 = arith.constant 34 : index
    %1207 = memref.load %arg0[%c1_648, %c34_649] : memref<4x36xf32, #tpu.memory_space<smem>>
    %1208 = vector.broadcast %1207 : f32 to vector<1x256xf32>
    %1209 = arith.mulf %1208, %1202 : vector<1x256xf32>
    %1210 = arith.addf %1193, %1209 : vector<1x256xf32>
    %c2_650 = arith.constant 2 : index
    %c34_651 = arith.constant 34 : index
    %1211 = memref.load %arg0[%c2_650, %c34_651] : memref<4x36xf32, #tpu.memory_space<smem>>
    %1212 = vector.broadcast %1211 : f32 to vector<1x256xf32>
    %1213 = arith.mulf %1212, %1202 : vector<1x256xf32>
    %1214 = arith.addf %1197, %1213 : vector<1x256xf32>
    %c3_652 = arith.constant 3 : index
    %c34_653 = arith.constant 34 : index
    %1215 = memref.load %arg0[%c3_652, %c34_653] : memref<4x36xf32, #tpu.memory_space<smem>>
    %1216 = vector.broadcast %1215 : f32 to vector<1x256xf32>
    %1217 = arith.mulf %1216, %1202 : vector<1x256xf32>
    %1218 = arith.addf %1201, %1217 : vector<1x256xf32>
    %c71 = arith.constant 71 : index
    %c0_654 = arith.constant 0 : index
    %1219 = vector.load %arg1[%c71, %c0_654] : memref<72x256xf32, #tpu.memory_space<vmem>>, vector<1x256xf32>
    %c0_655 = arith.constant 0 : index
    %c35_656 = arith.constant 35 : index
    %1220 = memref.load %arg0[%c0_655, %c35_656] : memref<4x36xf32, #tpu.memory_space<smem>>
    %1221 = vector.broadcast %1220 : f32 to vector<1x256xf32>
    %1222 = arith.mulf %1221, %1219 : vector<1x256xf32>
    %1223 = arith.addf %1206, %1222 : vector<1x256xf32>
    %c1_657 = arith.constant 1 : index
    %c35_658 = arith.constant 35 : index
    %1224 = memref.load %arg0[%c1_657, %c35_658] : memref<4x36xf32, #tpu.memory_space<smem>>
    %1225 = vector.broadcast %1224 : f32 to vector<1x256xf32>
    %1226 = arith.mulf %1225, %1219 : vector<1x256xf32>
    %1227 = arith.addf %1210, %1226 : vector<1x256xf32>
    %c2_659 = arith.constant 2 : index
    %c35_660 = arith.constant 35 : index
    %1228 = memref.load %arg0[%c2_659, %c35_660] : memref<4x36xf32, #tpu.memory_space<smem>>
    %1229 = vector.broadcast %1228 : f32 to vector<1x256xf32>
    %1230 = arith.mulf %1229, %1219 : vector<1x256xf32>
    %1231 = arith.addf %1214, %1230 : vector<1x256xf32>
    %c3_661 = arith.constant 3 : index
    %c35_662 = arith.constant 35 : index
    %1232 = memref.load %arg0[%c3_661, %c35_662] : memref<4x36xf32, #tpu.memory_space<smem>>
    %1233 = vector.broadcast %1232 : f32 to vector<1x256xf32>
    %1234 = arith.mulf %1233, %1219 : vector<1x256xf32>
    %1235 = arith.addf %1218, %1234 : vector<1x256xf32>
    %c4_663 = arith.constant 4 : index
    %c0_664 = arith.constant 0 : index
    %1236 = vector.load %arg2[%c4_663, %c0_664] : memref<8x256xf32, #tpu.memory_space<vmem>>, vector<1x256xf32>
    tpu.vector_store %arg2[%c4_663, %c0_664], %1223 {strides = array<i32>} : memref<8x256xf32, #tpu.memory_space<vmem>>, vector<1x256xf32>,
    %c5_665 = arith.constant 5 : index
    %c0_666 = arith.constant 0 : index
    %1237 = vector.load %arg2[%c5_665, %c0_666] : memref<8x256xf32, #tpu.memory_space<vmem>>, vector<1x256xf32>
    tpu.vector_store %arg2[%c5_665, %c0_666], %1227 {strides = array<i32>} : memref<8x256xf32, #tpu.memory_space<vmem>>, vector<1x256xf32>,
    %c6_667 = arith.constant 6 : index
    %c0_668 = arith.constant 0 : index
    %1238 = vector.load %arg2[%c6_667, %c0_668] : memref<8x256xf32, #tpu.memory_space<vmem>>, vector<1x256xf32>
    tpu.vector_store %arg2[%c6_667, %c0_668], %1231 {strides = array<i32>} : memref<8x256xf32, #tpu.memory_space<vmem>>, vector<1x256xf32>,
    %c7_669 = arith.constant 7 : index
    %c0_670 = arith.constant 0 : index
    %1239 = vector.load %arg2[%c7_669, %c0_670] : memref<8x256xf32, #tpu.memory_space<vmem>>, vector<1x256xf32>
    tpu.vector_store %arg2[%c7_669, %c0_670], %1235 {strides = array<i32>} : memref<8x256xf32, #tpu.memory_space<vmem>>, vector<1x256xf32>,
    return
  }
}

</mosaic_0001>

<llo_original>
// kernel: conv3x3_forward.1
$region0: #{conv3x3_forward.1}
  #allocation0 [shape = 'u32[]', space=smem, size = 0x4, offset = 0x4, fixed_abs, tag = 'smem constant byte address 0x4 - core index']
  #allocation1 [shape = 'u32[144,128]{1,0:T(1,128)}', space=vmem, size = 0x12000, scoped, tag = 'internal scratch']
  %s0 = inlined_call_operand.vmem [shape: f32[4,36], index: 0, kind: input, shape index: {}]
  %s1 = inlined_call_operand.vmem [shape: f32[72,256], index: 1, kind: input, shape index: {}]
  %s2 = inlined_call_operand.vmem [shape: f32[8,256], index: 2, kind: output, shape index: {}]
  %s3 = sld [smem:[#allocation0]]
  $region22: #{conv3x3_forward.1} parent=0
    _
  %s5 = ssub.s32 1, %s3
  %s6 = scalar_select 0, %s5, %s3
  $region1: #{conv3x3_forward.1} parent=0
    #allocation2 [shape = 'u8[2048]{0}', space=smem, size = 0x800, scoped, tag = 'input window, operand 0, single buffered']
    #allocation3 [shape = 's32[1]{0}', space=sflag, size = 0x4, scoped, tag = 'scoped memory for conv3x3_forward.1']
    %7 = vsyncpa [#allocation3], 0
    // Predicated region
    $region2: #{conv3x3_forward.1} parent=1 // pred_check
      _
    $region3: #{conv3x3_forward.1} parent=1 // pred_check_branch
      %9 = sbr.rel (0) target = $region5
    $region4: #{conv3x3_forward.1} parent=1 // pred_region
      %s11 = ssub.s32 64, 64
      %12 = vsyncadd [#allocation3], %s11
      %s14 = sshll.u32 %s0, 4
      %s15 = int_to_ptr.vmem [resolvable:$true] %s14
      %17 = dma.vmem_to_smem %s15, 64, [#allocation2], [#allocation3]
    $region5: #{conv3x3_forward.1} parent=1 // pred_fallthru
      _
    // Predicated region
    $region6: #{conv3x3_forward.1} parent=1 // pred_check
      _
    $region7: #{conv3x3_forward.1} parent=1 // pred_check_branch
      %19 = sbr.rel (0) target = $region9
    $region8: #{conv3x3_forward.1} parent=1 // pred_region
      _
    $region9: #{conv3x3_forward.1} parent=1 // pred_fallthru
      _
    // Predicated region
    $region10: #{conv3x3_forward.1} parent=1 // pred_check
      _
    $region11: #{conv3x3_forward.1} parent=1 // pred_check_branch
      %21 = sbr.rel (0) target = $region13
    $region12: #{conv3x3_forward.1} parent=1 // pred_region
      %22 = dma.done [#allocation3], 64
    $region13: #{conv3x3_forward.1} parent=1 // pred_fallthru
      _
    %23 = sfence
    %v24 = vld [vmem:[%s1] ss:$8 sm:$0x3]
    %s25 = sld [smem:[#allocation2]]
    %v26 = vstv %s25
    %v27 = vmul.f32 %v26, %v24
    %v28 = vadd.f32 %v27, 0.0
    %s29 = sld [smem:[#allocation2 + $0x80]]
    %v30 = vstv %s29
    %v31 = vmul.f32 %v30, %v24
    %v32 = vadd.f32 %v31, 0.0
    %s33 = sld [smem:[#allocation2 + $0x100]]
    %v34 = vstv %s33
    %v35 = vmul.f32 %v34, %v24
    %v36 = vadd.f32 %v35, 0.0
    %s37 = sld [smem:[#allocation2 + $0x180]]
    %v38 = vstv %s37
    %v39 = vmul.f32 %v38, %v24
    %v40 = vadd.f32 %v39, 0.0
    %s41 = scalar_lea.vmem %s1, 1
    %v42 = vld [vmem:[%s41] ss:$8 sm:$0x3]
    %s43 = sld [smem:[#allocation2 + $0x1]]
    %v44 = vstv %s43
    %v45 = vmul.f32 %v44, %v42
    %v46 = vadd.f32 %v28, %v45
    %s47 = sld [smem:[#allocation2 + $0x81]]
    %v48 = vstv %s47
    %v49 = vmul.f32 %v48, %v42
    %v50 = vadd.f32 %v32, %v49
    %s51 = sld [smem:[#allocation2 + $0x101]]
    %v52 = vstv %s51
    %v53 = vmul.f32 %v52, %v42
    %v54 = vadd.f32 %v36, %v53
    %s55 = sld [smem:[#allocation2 + $0x181]]
    %v56 = vstv %s55
    %v57 = vmul.f32 %v56, %v42
    %v58 = vadd.f32 %v40, %v57
    %s59 = scalar_lea.vmem %s1, 2
    %v60 = vld [vmem:[%s59] ss:$8 sm:$0x3]
    %s61 = sld [smem:[#allocation2 + $0x2]]
    %v62 = vstv %s61
    %v63 = vmul.f32 %v62, %v60
    %v64 = vadd.f32 %v46, %v63
    %s65 = sld [smem:[#allocation2 + $0x82]]
    %v66 = vstv %s65
    %v67 = vmul.f32 %v66, %v60
    %v68 = vadd.f32 %v50, %v67
    %s69 = sld [smem:[#allocation2 + $0x102]]
    %v70 = vstv %s69
    %v71 = vmul.f32 %v70, %v60
    %v72 = vadd.f32 %v54, %v71
    %s73 = sld [smem:[#allocation2 + $0x182]]
    %v74 = vstv %s73
    %v75 = vmul.f32 %v74, %v60
    %v76 = vadd.f32 %v58, %v75
    %s77 = scalar_lea.vmem %s1, 3
    %v78 = vld [vmem:[%s77] ss:$8 sm:$0x3]
    %s79 = sld [smem:[#allocation2 + $0x3]]
    %v80 = vstv %s79
    %v81 = vmul.f32 %v80, %v78
    %v82 = vadd.f32 %v64, %v81
    %s83 = sld [smem:[#allocation2 + $0x83]]
    %v84 = vstv %s83
    %v85 = vmul.f32 %v84, %v78
    %v86 = vadd.f32 %v68, %v85
    %s87 = sld [smem:[#allocation2 + $0x103]]
    %v88 = vstv %s87
    %v89 = vmul.f32 %v88, %v78
    %v90 = vadd.f32 %v72, %v89
    %s91 = sld [smem:[#allocation2 + $0x183]]
    %v92 = vstv %s91
    %v93 = vmul.f32 %v92, %v78
    %v94 = vadd.f32 %v76, %v93
    %s95 = scalar_lea.vmem %s1, 4
    %v96 = vld [vmem:[%s95] ss:$8 sm:$0x3]
    %s97 = sld [smem:[#allocation2 + $0x4]]
    %v98 = vstv %s97
    %v99 = vmul.f32 %v98, %v96
    %v100 = vadd.f32 %v82, %v99
    %s101 = sld [smem:[#allocation2 + $0x84]]
    %v102 = vstv %s101
    %v103 = vmul.f32 %v102, %v96
    %v104 = vadd.f32 %v86, %v103
    %s105 = sld [smem:[#allocation2 + $0x104]]
    %v106 = vstv %s105
    %v107 = vmul.f32 %v106, %v96
    %v108 = vadd.f32 %v90, %v107
    %s109 = sld [smem:[#allocation2 + $0x184]]
    %v110 = vstv %s109
    %v111 = vmul.f32 %v110, %v96
    %v112 = vadd.f32 %v94, %v111
    %s113 = scalar_lea.vmem %s1, 5
    %v114 = vld [vmem:[%s113] ss:$8 sm:$0x3]
    %s115 = sld [smem:[#allocation2 + $0x5]]
    %v116 = vstv %s115
    %v117 = vmul.f32 %v116, %v114
    %v118 = vadd.f32 %v100, %v117
    %s119 = sld [smem:[#allocation2 + $0x85]]
    %v120 = vstv %s119
    %v121 = vmul.f32 %v120, %v114
    %v122 = vadd.f32 %v104, %v121
    %s123 = sld [smem:[#allocation2 + $0x105]]
    %v124 = vstv %s123
    %v125 = vmul.f32 %v124, %v114
    %v126 = vadd.f32 %v108, %v125
    %s127 = sld [smem:[#allocation2 + $0x185]]
    %v128 = vstv %s127
    %v129 = vmul.f32 %v128, %v114
    %v130 = vadd.f32 %v112, %v129
    %s131 = scalar_lea.vmem %s1, 6
    %v132 = vld [vmem:[%s131] ss:$8 sm:$0x3]
    %s133 = sld [smem:[#allocation2 + $0x6]]
    %v134 = vstv %s133
    %v135 = vmul.f32 %v134, %v132
    %v136 = vadd.f32 %v118, %v135
    %s137 = sld [smem:[#allocation2 + $0x86]]
    %v138 = vstv %s137
    %v139 = vmul.f32 %v138, %v132
    %v140 = vadd.f32 %v122, %v139
    %s141 = sld [smem:[#allocation2 + $0x106]]
    %v142 = vstv %s141
    %v143 = vmul.f32 %v142, %v132
    %v144 = vadd.f32 %v126, %v143
    %s145 = sld [smem:[#allocation2 + $0x186]]
    %v146 = vstv %s145
    %v147 = vmul.f32 %v146, %v132
    %v148 = vadd.f32 %v130, %v147
    %s149 = scalar_lea.vmem %s1, 7
    %v150 = vld [vmem:[%s149] ss:$8 sm:$0x3]
    %s151 = sld [smem:[#allocation2 + $0x7]]
    %v152 = vstv %s151
    %v153 = vmul.f32 %v152, %v150
    %v154 = vadd.f32 %v136, %v153
    %s155 = sld [smem:[#allocation2 + $0x87]]
    %v156 = vstv %s155
    %v157 = vmul.f32 %v156, %v150
    %v158 = vadd.f32 %v140, %v157
    %s159 = sld [smem:[#allocation2 + $0x107]]
    %v160 = vstv %s159
    %v161 = vmul.f32 %v160, %v150
    %v162 = vadd.f32 %v144, %v161
    %s163 = sld [smem:[#allocation2 + $0x187]]
    %v164 = vstv %s163
    %v165 = vmul.f32 %v164, %v150
    %v166 = vadd.f32 %v148, %v165
    %s167 = scalar_lea.vmem %s1, 16
    %v168 = vld [vmem:[%s167] ss:$8 sm:$0x3]
    %s169 = sld [smem:[#allocation2 + $0x8]]
    %v170 = vstv %s169
    %v171 = vmul.f32 %v170, %v168
    %v172 = vadd.f32 %v154, %v171
    %s173 = sld [smem:[#allocation2 + $0x88]]
    %v174 = vstv %s173
    %v175 = vmul.f32 %v174, %v168
    %v176 = vadd.f32 %v158, %v175
    %s177 = sld [smem:[#allocation2 + $0x108]]
    %v178 = vstv %s177
    %v179 = vmul.f32 %v178, %v168
    %v180 = vadd.f32 %v162, %v179
    %s181 = sld [smem:[#allocation2 + $0x188]]
    %v182 = vstv %s181
    %v183 = vmul.f32 %v182, %v168
    %v184 = vadd.f32 %v166, %v183
    %s185 = scalar_lea.vmem %s1, 17
    %v186 = vld [vmem:[%s185] ss:$8 sm:$0x3]
    %s187 = sld [smem:[#allocation2 + $0x9]]
    %v188 = vstv %s187
    %v189 = vmul.f32 %v188, %v186
    %v190 = vadd.f32 %v172, %v189
    %s191 = sld [smem:[#allocation2 + $0x89]]
    %v192 = vstv %s191
    %v193 = vmul.f32 %v192, %v186
    %v194 = vadd.f32 %v176, %v193
    %s195 = sld [smem:[#allocation2 + $0x109]]
    %v196 = vstv %s195
    %v197 = vmul.f32 %v196, %v186
    %v198 = vadd.f32 %v180, %v197
    %s199 = sld [smem:[#allocation2 + $0x189]]
    %v200 = vstv %s199
    %v201 = vmul.f32 %v200, %v186
    %v202 = vadd.f32 %v184, %v201
    %s203 = scalar_lea.vmem %s1, 18
    %v204 = vld [vmem:[%s203] ss:$8 sm:$0x3]
    %s205 = sld [smem:[#allocation2 + $0xa]]
    %v206 = vstv %s205
    %v207 = vmul.f32 %v206, %v204
    %v208 = vadd.f32 %v190, %v207
    %s209 = sld [smem:[#allocation2 + $0x8a]]
    %v210 = vstv %s209
    %v211 = vmul.f32 %v210, %v204
    %v212 = vadd.f32 %v194, %v211
    %s213 = sld [smem:[#allocation2 + $0x10a]]
    %v214 = vstv %s213
    %v215 = vmul.f32 %v214, %v204
    %v216 = vadd.f32 %v198, %v215
    %s217 = sld [smem:[#allocation2 + $0x18a]]
    %v218 = vstv %s217
    %v219 = vmul.f32 %v218, %v204
    %v220 = vadd.f32 %v202, %v219
    %s221 = scalar_lea.vmem %s1, 19
    %v222 = vld [vmem:[%s221] ss:$8 sm:$0x3]
    %s223 = sld [smem:[#allocation2 + $0xb]]
    %v224 = vstv %s223
    %v225 = vmul.f32 %v224, %v222
    %v226 = vadd.f32 %v208, %v225
    %s227 = sld [smem:[#allocation2 + $0x8b]]
    %v228 = vstv %s227
    %v229 = vmul.f32 %v228, %v222
    %v230 = vadd.f32 %v212, %v229
    %s231 = sld [smem:[#allocation2 + $0x10b]]
    %v232 = vstv %s231
    %v233 = vmul.f32 %v232, %v222
    %v234 = vadd.f32 %v216, %v233
    %s235 = sld [smem:[#allocation2 + $0x18b]]
    %v236 = vstv %s235
    %v237 = vmul.f32 %v236, %v222
    %v238 = vadd.f32 %v220, %v237
    %s239 = scalar_lea.vmem %s1, 20
    %v240 = vld [vmem:[%s239] ss:$8 sm:$0x3]
    %s241 = sld [smem:[#allocation2 + $0xc]]
    %v242 = vstv %s241
    %v243 = vmul.f32 %v242, %v240
    %v244 = vadd.f32 %v226, %v243
    %s245 = sld [smem:[#allocation2 + $0x8c]]
    %v246 = vstv %s245
    %v247 = vmul.f32 %v246, %v240
    %v248 = vadd.f32 %v230, %v247
    %s249 = sld [smem:[#allocation2 + $0x10c]]
    %v250 = vstv %s249
    %v251 = vmul.f32 %v250, %v240
    %v252 = vadd.f32 %v234, %v251
    %s253 = sld [smem:[#allocation2 + $0x18c]]
    %v254 = vstv %s253
    %v255 = vmul.f32 %v254, %v240
    %v256 = vadd.f32 %v238, %v255
    %s257 = scalar_lea.vmem %s1, 21
    %v258 = vld [vmem:[%s257] ss:$8 sm:$0x3]
    %s259 = sld [smem:[#allocation2 + $0xd]]
    %v260 = vstv %s259
    %v261 = vmul.f32 %v260, %v258
    %v262 = vadd.f32 %v244, %v261
    %s263 = sld [smem:[#allocation2 + $0x8d]]
    %v264 = vstv %s263
    %v265 = vmul.f32 %v264, %v258
    %v266 = vadd.f32 %v248, %v265
    %s267 = sld [smem:[#allocation2 + $0x10d]]
    %v268 = vstv %s267
    %v269 = vmul.f32 %v268, %v258
    %v270 = vadd.f32 %v252, %v269
    %s271 = sld [smem:[#allocation2 + $0x18d]]
    %v272 = vstv %s271
    %v273 = vmul.f32 %v272, %v258
    %v274 = vadd.f32 %v256, %v273
    %s275 = scalar_lea.vmem %s1, 22
    %v276 = vld [vmem:[%s275] ss:$8 sm:$0x3]
    %s277 = sld [smem:[#allocation2 + $0xe]]
    %v278 = vstv %s277
    %v279 = vmul.f32 %v278, %v276
    %v280 = vadd.f32 %v262, %v279
    %s281 = sld [smem:[#allocation2 + $0x8e]]
    %v282 = vstv %s281
    %v283 = vmul.f32 %v282, %v276
    %v284 = vadd.f32 %v266, %v283
    %s285 = sld [smem:[#allocation2 + $0x10e]]
    %v286 = vstv %s285
    %v287 = vmul.f32 %v286, %v276
    %v288 = vadd.f32 %v270, %v287
    %s289 = sld [smem:[#allocation2 + $0x18e]]
    %v290 = vstv %s289
    %v291 = vmul.f32 %v290, %v276
    %v292 = vadd.f32 %v274, %v291
    %s293 = scalar_lea.vmem %s1, 23
    %v294 = vld [vmem:[%s293] ss:$8 sm:$0x3]
    %s295 = sld [smem:[#allocation2 + $0xf]]
    %v296 = vstv %s295
    %v297 = vmul.f32 %v296, %v294
    %v298 = vadd.f32 %v280, %v297
    %s299 = sld [smem:[#allocation2 + $0x8f]]
    %v300 = vstv %s299
    %v301 = vmul.f32 %v300, %v294
    %v302 = vadd.f32 %v284, %v301
    %s303 = sld [smem:[#allocation2 + $0x10f]]
    %v304 = vstv %s303
    %v305 = vmul.f32 %v304, %v294
    %v306 = vadd.f32 %v288, %v305
    %s307 = sld [smem:[#allocation2 + $0x18f]]
    %v308 = vstv %s307
    %v309 = vmul.f32 %v308, %v294
    %v310 = vadd.f32 %v292, %v309
    %s311 = scalar_lea.vmem %s1, 32
    %v312 = vld [vmem:[%s311] ss:$8 sm:$0x3]
    %s313 = sld [smem:[#allocation2 + $0x10]]
    %v314 = vstv %s313
    %v315 = vmul.f32 %v314, %v312
    %v316 = vadd.f32 %v298, %v315
    %s317 = sld [smem:[#allocation2 + $0x90]]
    %v318 = vstv %s317
    %v319 = vmul.f32 %v318, %v312
    %v320 = vadd.f32 %v302, %v319
    %s321 = sld [smem:[#allocation2 + $0x110]]
    %v322 = vstv %s321
    %v323 = vmul.f32 %v322, %v312
    %v324 = vadd.f32 %v306, %v323
    %s325 = sld [smem:[#allocation2 + $0x190]]
    %v326 = vstv %s325
    %v327 = vmul.f32 %v326, %v312
    %v328 = vadd.f32 %v310, %v327
    %s329 = scalar_lea.vmem %s1, 33
    %v330 = vld [vmem:[%s329] ss:$8 sm:$0x3]
    %s331 = sld [smem:[#allocation2 + $0x11]]
    %v332 = vstv %s331
    %v333 = vmul.f32 %v332, %v330
    %v334 = vadd.f32 %v316, %v333
    %s335 = sld [smem:[#allocation2 + $0x91]]
    %v336 = vstv %s335
    %v337 = vmul.f32 %v336, %v330
    %v338 = vadd.f32 %v320, %v337
    %s339 = sld [smem:[#allocation2 + $0x111]]
    %v340 = vstv %s339
    %v341 = vmul.f32 %v340, %v330
    %v342 = vadd.f32 %v324, %v341
    %s343 = sld [smem:[#allocation2 + $0x191]]
    %v344 = vstv %s343
    %v345 = vmul.f32 %v344, %v330
    %v346 = vadd.f32 %v328, %v345
    %s347 = scalar_lea.vmem %s1, 34
    %v348 = vld [vmem:[%s347] ss:$8 sm:$0x3]
    %s349 = sld [smem:[#allocation2 + $0x12]]
    %v350 = vstv %s349
    %v351 = vmul.f32 %v350, %v348
    %v352 = vadd.f32 %v334, %v351
    %s353 = sld [smem:[#allocation2 + $0x92]]
    %v354 = vstv %s353
    %v355 = vmul.f32 %v354, %v348
    %v356 = vadd.f32 %v338, %v355
    %s357 = sld [smem:[#allocation2 + $0x112]]
    %v358 = vstv %s357
    %v359 = vmul.f32 %v358, %v348
    %v360 = vadd.f32 %v342, %v359
    %s361 = sld [smem:[#allocation2 + $0x192]]
    %v362 = vstv %s361
    %v363 = vmul.f32 %v362, %v348
    %v364 = vadd.f32 %v346, %v363
    %s365 = scalar_lea.vmem %s1, 35
    %v366 = vld [vmem:[%s365] ss:$8 sm:$0x3]
    %s367 = sld [smem:[#allocation2 + $0x13]]
    %v368 = vstv %s367
    %v369 = vmul.f32 %v368, %v366
    %v370 = vadd.f32 %v352, %v369
    %s371 = sld [smem:[#allocation2 + $0x93]]
    %v372 = vstv %s371
    %v373 = vmul.f32 %v372, %v366
    %v374 = vadd.f32 %v356, %v373
    %s375 = sld [smem:[#allocation2 + $0x113]]
    %v376 = vstv %s375
    %v377 = vmul.f32 %v376, %v366
    %v378 = vadd.f32 %v360, %v377
    %s379 = sld [smem:[#allocation2 + $0x193]]
    %v380 = vstv %s379
    %v381 = vmul.f32 %v380, %v366
    %v382 = vadd.f32 %v364, %v381
    %s383 = scalar_lea.vmem %s1, 36
    %v384 = vld [vmem:[%s383] ss:$8 sm:$0x3]
    %s385 = sld [smem:[#allocation2 + $0x14]]
    %v386 = vstv %s385
    %v387 = vmul.f32 %v386, %v384
    %v388 = vadd.f32 %v370, %v387
    %s389 = sld [smem:[#allocation2 + $0x94]]
    %v390 = vstv %s389
    %v391 = vmul.f32 %v390, %v384
    %v392 = vadd.f32 %v374, %v391
    %s393 = sld [smem:[#allocation2 + $0x114]]
    %v394 = vstv %s393
    %v395 = vmul.f32 %v394, %v384
    %v396 = vadd.f32 %v378, %v395
    %s397 = sld [smem:[#allocation2 + $0x194]]
    %v398 = vstv %s397
    %v399 = vmul.f32 %v398, %v384
    %v400 = vadd.f32 %v382, %v399
    %s401 = scalar_lea.vmem %s1, 37
    %v402 = vld [vmem:[%s401] ss:$8 sm:$0x3]
    %s403 = sld [smem:[#allocation2 + $0x15]]
    %v404 = vstv %s403
    %v405 = vmul.f32 %v404, %v402
    %v406 = vadd.f32 %v388, %v405
    %s407 = sld [smem:[#allocation2 + $0x95]]
    %v408 = vstv %s407
    %v409 = vmul.f32 %v408, %v402
    %v410 = vadd.f32 %v392, %v409
    %s411 = sld [smem:[#allocation2 + $0x115]]
    %v412 = vstv %s411
    %v413 = vmul.f32 %v412, %v402
    %v414 = vadd.f32 %v396, %v413
    %s415 = sld [smem:[#allocation2 + $0x195]]
    %v416 = vstv %s415
    %v417 = vmul.f32 %v416, %v402
    %v418 = vadd.f32 %v400, %v417
    %s419 = scalar_lea.vmem %s1, 38
    %v420 = vld [vmem:[%s419] ss:$8 sm:$0x3]
    %s421 = sld [smem:[#allocation2 + $0x16]]
    %v422 = vstv %s421
    %v423 = vmul.f32 %v422, %v420
    %v424 = vadd.f32 %v406, %v423
    %s425 = sld [smem:[#allocation2 + $0x96]]
    %v426 = vstv %s425
    %v427 = vmul.f32 %v426, %v420
    %v428 = vadd.f32 %v410, %v427
    %s429 = sld [smem:[#allocation2 + $0x116]]
    %v430 = vstv %s429
    %v431 = vmul.f32 %v430, %v420
    %v432 = vadd.f32 %v414, %v431
    %s433 = sld [smem:[#allocation2 + $0x196]]
    %v434 = vstv %s433
    %v435 = vmul.f32 %v434, %v420
    %v436 = vadd.f32 %v418, %v435
    %s437 = scalar_lea.vmem %s1, 39
    %v438 = vld [vmem:[%s437] ss:$8 sm:$0x3]
    %s439 = sld [smem:[#allocation2 + $0x17]]
    %v440 = vstv %s439
    %v441 = vmul.f32 %v440, %v438
    %v442 = vadd.f32 %v424, %v441
    %s443 = sld [smem:[#allocation2 + $0x97]]
    %v444 = vstv %s443
    %v445 = vmul.f32 %v444, %v438
    %v446 = vadd.f32 %v428, %v445
    %s447 = sld [smem:[#allocation2 + $0x117]]
    %v448 = vstv %s447
    %v449 = vmul.f32 %v448, %v438
    %v450 = vadd.f32 %v432, %v449
    %s451 = sld [smem:[#allocation2 + $0x197]]
    %v452 = vstv %s451
    %v453 = vmul.f32 %v452, %v438
    %v454 = vadd.f32 %v436, %v453
    %s455 = scalar_lea.vmem %s1, 48
    %v456 = vld [vmem:[%s455] ss:$8 sm:$0x3]
    %s457 = sld [smem:[#allocation2 + $0x18]]
    %v458 = vstv %s457
    %v459 = vmul.f32 %v458, %v456
    %v460 = vadd.f32 %v442, %v459
    %s461 = sld [smem:[#allocation2 + $0x98]]
    %v462 = vstv %s461
    %v463 = vmul.f32 %v462, %v456
    %v464 = vadd.f32 %v446, %v463
    %s465 = sld [smem:[#allocation2 + $0x118]]
    %v466 = vstv %s465
    %v467 = vmul.f32 %v466, %v456
    %v468 = vadd.f32 %v450, %v467
    %s469 = sld [smem:[#allocation2 + $0x198]]
    %v470 = vstv %s469
    %v471 = vmul.f32 %v470, %v456
    %v472 = vadd.f32 %v454, %v471
    %s473 = scalar_lea.vmem %s1, 49
    %v474 = vld [vmem:[%s473] ss:$8 sm:$0x3]
    %s475 = sld [smem:[#allocation2 + $0x19]]
    %v476 = vstv %s475
    %v477 = vmul.f32 %v476, %v474
    %v478 = vadd.f32 %v460, %v477
    %s479 = sld [smem:[#allocation2 + $0x99]]
    %v480 = vstv %s479
    %v481 = vmul.f32 %v480, %v474
    %v482 = vadd.f32 %v464, %v481
    %s483 = sld [smem:[#allocation2 + $0x119]]
    %v484 = vstv %s483
    %v485 = vmul.f32 %v484, %v474
    %v486 = vadd.f32 %v468, %v485
    %s487 = sld [smem:[#allocation2 + $0x199]]
    %v488 = vstv %s487
    %v489 = vmul.f32 %v488, %v474
    %v490 = vadd.f32 %v472, %v489
    %s491 = scalar_lea.vmem %s1, 50
    %v492 = vld [vmem:[%s491] ss:$8 sm:$0x3]
    %s493 = sld [smem:[#allocation2 + $0x1a]]
    %v494 = vstv %s493
    %v495 = vmul.f32 %v494, %v492
    %v496 = vadd.f32 %v478, %v495
    %s497 = sld [smem:[#allocation2 + $0x9a]]
    %v498 = vstv %s497
    %v499 = vmul.f32 %v498, %v492
    %v500 = vadd.f32 %v482, %v499
    %s501 = sld [smem:[#allocation2 + $0x11a]]
    %v502 = vstv %s501
    %v503 = vmul.f32 %v502, %v492
    %v504 = vadd.f32 %v486, %v503
    %s505 = sld [smem:[#allocation2 + $0x19a]]
    %v506 = vstv %s505
    %v507 = vmul.f32 %v506, %v492
    %v508 = vadd.f32 %v490, %v507
    %s509 = scalar_lea.vmem %s1, 51
    %v510 = vld [vmem:[%s509] ss:$8 sm:$0x3]
    %s511 = sld [smem:[#allocation2 + $0x1b]]
    %v512 = vstv %s511
    %v513 = vmul.f32 %v512, %v510
    %v514 = vadd.f32 %v496, %v513
    %s515 = sld [smem:[#allocation2 + $0x9b]]
    %v516 = vstv %s515
    %v517 = vmul.f32 %v516, %v510
    %v518 = vadd.f32 %v500, %v517
    %s519 = sld [smem:[#allocation2 + $0x11b]]
    %v520 = vstv %s519
    %v521 = vmul.f32 %v520, %v510
    %v522 = vadd.f32 %v504, %v521
    %s523 = sld [smem:[#allocation2 + $0x19b]]
    %v524 = vstv %s523
    %v525 = vmul.f32 %v524, %v510
    %v526 = vadd.f32 %v508, %v525
    %s527 = scalar_lea.vmem %s1, 52
    %v528 = vld [vmem:[%s527] ss:$8 sm:$0x3]
    %s529 = sld [smem:[#allocation2 + $0x1c]]
    %v530 = vstv %s529
    %v531 = vmul.f32 %v530, %v528
    %v532 = vadd.f32 %v514, %v531
    %s533 = sld [smem:[#allocation2 + $0x9c]]
    %v534 = vstv %s533
    %v535 = vmul.f32 %v534, %v528
    %v536 = vadd.f32 %v518, %v535
    %s537 = sld [smem:[#allocation2 + $0x11c]]
    %v538 = vstv %s537
    %v539 = vmul.f32 %v538, %v528
    %v540 = vadd.f32 %v522, %v539
    %s541 = sld [smem:[#allocation2 + $0x19c]]
    %v542 = vstv %s541
    %v543 = vmul.f32 %v542, %v528
    %v544 = vadd.f32 %v526, %v543
    %s545 = scalar_lea.vmem %s1, 53
    %v546 = vld [vmem:[%s545] ss:$8 sm:$0x3]
    %s547 = sld [smem:[#allocation2 + $0x1d]]
    %v548 = vstv %s547
    %v549 = vmul.f32 %v548, %v546
    %v550 = vadd.f32 %v532, %v549
    %s551 = sld [smem:[#allocation2 + $0x9d]]
    %v552 = vstv %s551
    %v553 = vmul.f32 %v552, %v546
    %v554 = vadd.f32 %v536, %v553
    %s555 = sld [smem:[#allocation2 + $0x11d]]
    %v556 = vstv %s555
    %v557 = vmul.f32 %v556, %v546
    %v558 = vadd.f32 %v540, %v557
    %s559 = sld [smem:[#allocation2 + $0x19d]]
    %v560 = vstv %s559
    %v561 = vmul.f32 %v560, %v546
    %v562 = vadd.f32 %v544, %v561
    %s563 = scalar_lea.vmem %s1, 54
    %v564 = vld [vmem:[%s563] ss:$8 sm:$0x3]
    %s565 = sld [smem:[#allocation2 + $0x1e]]
    %v566 = vstv %s565
    %v567 = vmul.f32 %v566, %v564
    %v568 = vadd.f32 %v550, %v567
    %s569 = sld [smem:[#allocation2 + $0x9e]]
    %v570 = vstv %s569
    %v571 = vmul.f32 %v570, %v564
    %v572 = vadd.f32 %v554, %v571
    %s573 = sld [smem:[#allocation2 + $0x11e]]
    %v574 = vstv %s573
    %v575 = vmul.f32 %v574, %v564
    %v576 = vadd.f32 %v558, %v575
    %s577 = sld [smem:[#allocation2 + $0x19e]]
    %v578 = vstv %s577
    %v579 = vmul.f32 %v578, %v564
    %v580 = vadd.f32 %v562, %v579
    %s581 = scalar_lea.vmem %s1, 55
    %v582 = vld [vmem:[%s581] ss:$8 sm:$0x3]
    %s583 = sld [smem:[#allocation2 + $0x1f]]
    %v584 = vstv %s583
    %v585 = vmul.f32 %v584, %v582
    %v586 = vadd.f32 %v568, %v585
    %s587 = sld [smem:[#allocation2 + $0x9f]]
    %v588 = vstv %s587
    %v589 = vmul.f32 %v588, %v582
    %v590 = vadd.f32 %v572, %v589
    %s591 = sld [smem:[#allocation2 + $0x11f]]
    %v592 = vstv %s591
    %v593 = vmul.f32 %v592, %v582
    %v594 = vadd.f32 %v576, %v593
    %s595 = sld [smem:[#allocation2 + $0x19f]]
    %v596 = vstv %s595
    %v597 = vmul.f32 %v596, %v582
    %v598 = vadd.f32 %v580, %v597
    %s599 = scalar_lea.vmem %s1, 64
    %v600 = vld [vmem:[%s599] ss:$8 sm:$0x3]
    %s601 = sld [smem:[#allocation2 + $0x20]]
    %v602 = vstv %s601
    %v603 = vmul.f32 %v602, %v600
    %v604 = vadd.f32 %v586, %v603
    %s605 = sld [smem:[#allocation2 + $0xa0]]
    %v606 = vstv %s605
    %v607 = vmul.f32 %v606, %v600
    %v608 = vadd.f32 %v590, %v607
    %s609 = sld [smem:[#allocation2 + $0x120]]
    %v610 = vstv %s609
    %v611 = vmul.f32 %v610, %v600
    %v612 = vadd.f32 %v594, %v611
    %s613 = sld [smem:[#allocation2 + $0x1a0]]
    %v614 = vstv %s613
    %v615 = vmul.f32 %v614, %v600
    %v616 = vadd.f32 %v598, %v615
    %s617 = scalar_lea.vmem %s1, 65
    %v618 = vld [vmem:[%s617] ss:$8 sm:$0x3]
    %s619 = sld [smem:[#allocation2 + $0x21]]
    %v620 = vstv %s619
    %v621 = vmul.f32 %v620, %v618
    %v622 = vadd.f32 %v604, %v621
    %s623 = sld [smem:[#allocation2 + $0xa1]]
    %v624 = vstv %s623
    %v625 = vmul.f32 %v624, %v618
    %v626 = vadd.f32 %v608, %v625
    %s627 = sld [smem:[#allocation2 + $0x121]]
    %v628 = vstv %s627
    %v629 = vmul.f32 %v628, %v618
    %v630 = vadd.f32 %v612, %v629
    %s631 = sld [smem:[#allocation2 + $0x1a1]]
    %v632 = vstv %s631
    %v633 = vmul.f32 %v632, %v618
    %v634 = vadd.f32 %v616, %v633
    %s635 = scalar_lea.vmem %s1, 66
    %v636 = vld [vmem:[%s635] ss:$8 sm:$0x3]
    %s637 = sld [smem:[#allocation2 + $0x22]]
    %v638 = vstv %s637
    %v639 = vmul.f32 %v638, %v636
    %v640 = vadd.f32 %v622, %v639
    %s641 = sld [smem:[#allocation2 + $0xa2]]
    %v642 = vstv %s641
    %v643 = vmul.f32 %v642, %v636
    %v644 = vadd.f32 %v626, %v643
    %s645 = sld [smem:[#allocation2 + $0x122]]
    %v646 = vstv %s645
    %v647 = vmul.f32 %v646, %v636
    %v648 = vadd.f32 %v630, %v647
    %s649 = sld [smem:[#allocation2 + $0x1a2]]
    %v650 = vstv %s649
    %v651 = vmul.f32 %v650, %v636
    %v652 = vadd.f32 %v634, %v651
    %s653 = scalar_lea.vmem %s1, 67
    %v654 = vld [vmem:[%s653] ss:$8 sm:$0x3]
    %s655 = sld [smem:[#allocation2 + $0x23]]
    %v656 = vstv %s655
    %v657 = vmul.f32 %v656, %v654
    %v658 = vadd.f32 %v640, %v657
    %s659 = sld [smem:[#allocation2 + $0xa3]]
    %v660 = vstv %s659
    %v661 = vmul.f32 %v660, %v654
    %v662 = vadd.f32 %v644, %v661
    %s663 = sld [smem:[#allocation2 + $0x123]]
    %v664 = vstv %s663
    %v665 = vmul.f32 %v664, %v654
    %v666 = vadd.f32 %v648, %v665
    %s667 = sld [smem:[#allocation2 + $0x1a3]]
    %v668 = vstv %s667
    %v669 = vmul.f32 %v668, %v654
    %v670 = vadd.f32 %v652, %v669
    %v671 = vlaneseq
    %vm672 = vcmp.ge.s32.totalorder %v671, 0
    %vm673 = vcmp.lt.s32.totalorder %v671, 256
    %vm674 = vmand %vm672, %vm673
    %675 = vst.msk [vmem:[%s2] ss:$8 sm:$0x3] %vm674, %v658
    %676 = vst.msk [vmem:[%s2] ss:$8 sm:$0x0] %vm674, %v658
    %s677 = scalar_lea.vmem %s2, 1
    %678 = vst.msk [vmem:[%s677] ss:$8 sm:$0x3] %vm674, %v662
    %679 = vst.msk [vmem:[%s677] ss:$8 sm:$0x0] %vm674, %v662
    %s680 = scalar_lea.vmem %s2, 2
    %681 = vst.msk [vmem:[%s680] ss:$8 sm:$0x3] %vm674, %v666
    %682 = vst.msk [vmem:[%s680] ss:$8 sm:$0x0] %vm674, %v666
    %s683 = scalar_lea.vmem %s2, 3
    %684 = vst.msk [vmem:[%s683] ss:$8 sm:$0x3] %vm674, %v670
    %685 = vst.msk [vmem:[%s683] ss:$8 sm:$0x0] %vm674, %v670
    %s686 = scalar_lea.vmem %s1, 68
    %v687 = vld [vmem:[%s686] ss:$8 sm:$0x3]
    %s688 = sld [smem:[#allocation2]]
    %v689 = vstv %s688
    %v690 = vmul.f32 %v689, %v687
    %v691 = vadd.f32 %v690, 0.0
    %s692 = sld [smem:[#allocation2 + $0x80]]
    %v693 = vstv %s692
    %v694 = vmul.f32 %v693, %v687
    %v695 = vadd.f32 %v694, 0.0
    %s696 = sld [smem:[#allocation2 + $0x100]]
    %v697 = vstv %s696
    %v698 = vmul.f32 %v697, %v687
    %v699 = vadd.f32 %v698, 0.0
    %s700 = sld [smem:[#allocation2 + $0x180]]
    %v701 = vstv %s700
    %v702 = vmul.f32 %v701, %v687
    %v703 = vadd.f32 %v702, 0.0
    %s704 = scalar_lea.vmem %s1, 69
    %v705 = vld [vmem:[%s704] ss:$8 sm:$0x3]
    %s706 = sld [smem:[#allocation2 + $0x1]]
    %v707 = vstv %s706
    %v708 = vmul.f32 %v707, %v705
    %v709 = vadd.f32 %v691, %v708
    %s710 = sld [smem:[#allocation2 + $0x81]]
    %v711 = vstv %s710
    %v712 = vmul.f32 %v711, %v705
    %v713 = vadd.f32 %v695, %v712
    %s714 = sld [smem:[#allocation2 + $0x101]]
    %v715 = vstv %s714
    %v716 = vmul.f32 %v715, %v705
    %v717 = vadd.f32 %v699, %v716
    %s718 = sld [smem:[#allocation2 + $0x181]]
    %v719 = vstv %s718
    %v720 = vmul.f32 %v719, %v705
    %v721 = vadd.f32 %v703, %v720
    %s722 = scalar_lea.vmem %s1, 70
    %v723 = vld [vmem:[%s722] ss:$8 sm:$0x3]
    %s724 = sld [smem:[#allocation2 + $0x2]]
    %v725 = vstv %s724
    %v726 = vmul.f32 %v725, %v723
    %v727 = vadd.f32 %v709, %v726
    %s728 = sld [smem:[#allocation2 + $0x82]]
    %v729 = vstv %s728
    %v730 = vmul.f32 %v729, %v723
    %v731 = vadd.f32 %v713, %v730
    %s732 = sld [smem:[#allocation2 + $0x102]]
    %v733 = vstv %s732
    %v734 = vmul.f32 %v733, %v723
    %v735 = vadd.f32 %v717, %v734
    %s736 = sld [smem:[#allocation2 + $0x182]]
    %v737 = vstv %s736
    %v738 = vmul.f32 %v737, %v723
    %v739 = vadd.f32 %v721, %v738
    %s740 = scalar_lea.vmem %s1, 71
    %v741 = vld [vmem:[%s740] ss:$8 sm:$0x3]
    %s742 = sld [smem:[#allocation2 + $0x3]]
    %v743 = vstv %s742
    %v744 = vmul.f32 %v743, %v741
    %v745 = vadd.f32 %v727, %v744
    %s746 = sld [smem:[#allocation2 + $0x83]]
    %v747 = vstv %s746
    %v748 = vmul.f32 %v747, %v741
    %v749 = vadd.f32 %v731, %v748
    %s750 = sld [smem:[#allocation2 + $0x103]]
    %v751 = vstv %s750
    %v752 = vmul.f32 %v751, %v741
    %v753 = vadd.f32 %v735, %v752
    %s754 = sld [smem:[#allocation2 + $0x183]]
    %v755 = vstv %s754
    %v756 = vmul.f32 %v755, %v741
    %v757 = vadd.f32 %v739, %v756
    %s758 = scalar_lea.vmem %s1, 80
    %v759 = vld [vmem:[%s758] ss:$8 sm:$0x3]
    %s760 = sld [smem:[#allocation2 + $0x4]]
    %v761 = vstv %s760
    %v762 = vmul.f32 %v761, %v759
    %v763 = vadd.f32 %v745, %v762
    %s764 = sld [smem:[#allocation2 + $0x84]]
    %v765 = vstv %s764
    %v766 = vmul.f32 %v765, %v759
    %v767 = vadd.f32 %v749, %v766
    %s768 = sld [smem:[#allocation2 + $0x104]]
    %v769 = vstv %s768
    %v770 = vmul.f32 %v769, %v759
    %v771 = vadd.f32 %v753, %v770
    %s772 = sld [smem:[#allocation2 + $0x184]]
    %v773 = vstv %s772
    %v774 = vmul.f32 %v773, %v759
    %v775 = vadd.f32 %v757, %v774
    %s776 = scalar_lea.vmem %s1, 81
    %v777 = vld [vmem:[%s776] ss:$8 sm:$0x3]
    %s778 = sld [smem:[#allocation2 + $0x5]]
    %v779 = vstv %s778
    %v780 = vmul.f32 %v779, %v777
    %v781 = vadd.f32 %v763, %v780
    %s782 = sld [smem:[#allocation2 + $0x85]]
    %v783 = vstv %s782
    %v784 = vmul.f32 %v783, %v777
    %v785 = vadd.f32 %v767, %v784
    %s786 = sld [smem:[#allocation2 + $0x105]]
    %v787 = vstv %s786
    %v788 = vmul.f32 %v787, %v777
    %v789 = vadd.f32 %v771, %v788
    %s790 = sld [smem:[#allocation2 + $0x185]]
    %v791 = vstv %s790
    %v792 = vmul.f32 %v791, %v777
    %v793 = vadd.f32 %v775, %v792
    %s794 = scalar_lea.vmem %s1, 82
    %v795 = vld [vmem:[%s794] ss:$8 sm:$0x3]
    %s796 = sld [smem:[#allocation2 + $0x6]]
    %v797 = vstv %s796
    %v798 = vmul.f32 %v797, %v795
    %v799 = vadd.f32 %v781, %v798
    %s800 = sld [smem:[#allocation2 + $0x86]]
    %v801 = vstv %s800
    %v802 = vmul.f32 %v801, %v795
    %v803 = vadd.f32 %v785, %v802
    %s804 = sld [smem:[#allocation2 + $0x106]]
    %v805 = vstv %s804
    %v806 = vmul.f32 %v805, %v795
    %v807 = vadd.f32 %v789, %v806
    %s808 = sld [smem:[#allocation2 + $0x186]]
    %v809 = vstv %s808
    %v810 = vmul.f32 %v809, %v795
    %v811 = vadd.f32 %v793, %v810
    %s812 = scalar_lea.vmem %s1, 83
    %v813 = vld [vmem:[%s812] ss:$8 sm:$0x3]
    %s814 = sld [smem:[#allocation2 + $0x7]]
    %v815 = vstv %s814
    %v816 = vmul.f32 %v815, %v813
    %v817 = vadd.f32 %v799, %v816
    %s818 = sld [smem:[#allocation2 + $0x87]]
    %v819 = vstv %s818
    %v820 = vmul.f32 %v819, %v813
    %v821 = vadd.f32 %v803, %v820
    %s822 = sld [smem:[#allocation2 + $0x107]]
    %v823 = vstv %s822
    %v824 = vmul.f32 %v823, %v813
    %v825 = vadd.f32 %v807, %v824
    %s826 = sld [smem:[#allocation2 + $0x187]]
    %v827 = vstv %s826
    %v828 = vmul.f32 %v827, %v813
    %v829 = vadd.f32 %v811, %v828
    %s830 = scalar_lea.vmem %s1, 84
    %v831 = vld [vmem:[%s830] ss:$8 sm:$0x3]
    %s832 = sld [smem:[#allocation2 + $0x8]]
    %v833 = vstv %s832
    %v834 = vmul.f32 %v833, %v831
    %v835 = vadd.f32 %v817, %v834
    %s836 = sld [smem:[#allocation2 + $0x88]]
    %v837 = vstv %s836
    %v838 = vmul.f32 %v837, %v831
    %v839 = vadd.f32 %v821, %v838
    %s840 = sld [smem:[#allocation2 + $0x108]]
    %v841 = vstv %s840
    %v842 = vmul.f32 %v841, %v831
    %v843 = vadd.f32 %v825, %v842
    %s844 = sld [smem:[#allocation2 + $0x188]]
    %v845 = vstv %s844
    %v846 = vmul.f32 %v845, %v831
    %v847 = vadd.f32 %v829, %v846
    %s848 = scalar_lea.vmem %s1, 85
    %v849 = vld [vmem:[%s848] ss:$8 sm:$0x3]
    %s850 = sld [smem:[#allocation2 + $0x9]]
    %v851 = vstv %s850
    %v852 = vmul.f32 %v851, %v849
    %v853 = vadd.f32 %v835, %v852
    %s854 = sld [smem:[#allocation2 + $0x89]]
    %v855 = vstv %s854
    %v856 = vmul.f32 %v855, %v849
    %v857 = vadd.f32 %v839, %v856
    %s858 = sld [smem:[#allocation2 + $0x109]]
    %v859 = vstv %s858
    %v860 = vmul.f32 %v859, %v849
    %v861 = vadd.f32 %v843, %v860
    %s862 = sld [smem:[#allocation2 + $0x189]]
    %v863 = vstv %s862
    %v864 = vmul.f32 %v863, %v849
    %v865 = vadd.f32 %v847, %v864
    %s866 = scalar_lea.vmem %s1, 86
    %v867 = vld [vmem:[%s866] ss:$8 sm:$0x3]
    %s868 = sld [smem:[#allocation2 + $0xa]]
    %v869 = vstv %s868
    %v870 = vmul.f32 %v869, %v867
    %v871 = vadd.f32 %v853, %v870
    %s872 = sld [smem:[#allocation2 + $0x8a]]
    %v873 = vstv %s872
    %v874 = vmul.f32 %v873, %v867
    %v875 = vadd.f32 %v857, %v874
    %s876 = sld [smem:[#allocation2 + $0x10a]]
    %v877 = vstv %s876
    %v878 = vmul.f32 %v877, %v867
    %v879 = vadd.f32 %v861, %v878
    %s880 = sld [smem:[#allocation2 + $0x18a]]
    %v881 = vstv %s880
    %v882 = vmul.f32 %v881, %v867
    %v883 = vadd.f32 %v865, %v882
    %s884 = scalar_lea.vmem %s1, 87
    %v885 = vld [vmem:[%s884] ss:$8 sm:$0x3]
    %s886 = sld [smem:[#allocation2 + $0xb]]
    %v887 = vstv %s886
    %v888 = vmul.f32 %v887, %v885
    %v889 = vadd.f32 %v871, %v888
    %s890 = sld [smem:[#allocation2 + $0x8b]]
    %v891 = vstv %s890
    %v892 = vmul.f32 %v891, %v885
    %v893 = vadd.f32 %v875, %v892
    %s894 = sld [smem:[#allocation2 + $0x10b]]
    %v895 = vstv %s894
    %v896 = vmul.f32 %v895, %v885
    %v897 = vadd.f32 %v879, %v896
    %s898 = sld [smem:[#allocation2 + $0x18b]]
    %v899 = vstv %s898
    %v900 = vmul.f32 %v899, %v885
    %v901 = vadd.f32 %v883, %v900
    %s902 = scalar_lea.vmem %s1, 96
    %v903 = vld [vmem:[%s902] ss:$8 sm:$0x3]
    %s904 = sld [smem:[#allocation2 + $0xc]]
    %v905 = vstv %s904
    %v906 = vmul.f32 %v905, %v903
    %v907 = vadd.f32 %v889, %v906
    %s908 = sld [smem:[#allocation2 + $0x8c]]
    %v909 = vstv %s908
    %v910 = vmul.f32 %v909, %v903
    %v911 = vadd.f32 %v893, %v910
    %s912 = sld [smem:[#allocation2 + $0x10c]]
    %v913 = vstv %s912
    %v914 = vmul.f32 %v913, %v903
    %v915 = vadd.f32 %v897, %v914
    %s916 = sld [smem:[#allocation2 + $0x18c]]
    %v917 = vstv %s916
    %v918 = vmul.f32 %v917, %v903
    %v919 = vadd.f32 %v901, %v918
    %s920 = scalar_lea.vmem %s1, 97
    %v921 = vld [vmem:[%s920] ss:$8 sm:$0x3]
    %s922 = sld [smem:[#allocation2 + $0xd]]
    %v923 = vstv %s922
    %v924 = vmul.f32 %v923, %v921
    %v925 = vadd.f32 %v907, %v924
    %s926 = sld [smem:[#allocation2 + $0x8d]]
    %v927 = vstv %s926
    %v928 = vmul.f32 %v927, %v921
    %v929 = vadd.f32 %v911, %v928
    %s930 = sld [smem:[#allocation2 + $0x10d]]
    %v931 = vstv %s930
    %v932 = vmul.f32 %v931, %v921
    %v933 = vadd.f32 %v915, %v932
    %s934 = sld [smem:[#allocation2 + $0x18d]]
    %v935 = vstv %s934
    %v936 = vmul.f32 %v935, %v921
    %v937 = vadd.f32 %v919, %v936
    %s938 = scalar_lea.vmem %s1, 98
    %v939 = vld [vmem:[%s938] ss:$8 sm:$0x3]
    %s940 = sld [smem:[#allocation2 + $0xe]]
    %v941 = vstv %s940
    %v942 = vmul.f32 %v941, %v939
    %v943 = vadd.f32 %v925, %v942
    %s944 = sld [smem:[#allocation2 + $0x8e]]
    %v945 = vstv %s944
    %v946 = vmul.f32 %v945, %v939
    %v947 = vadd.f32 %v929, %v946
    %s948 = sld [smem:[#allocation2 + $0x10e]]
    %v949 = vstv %s948
    %v950 = vmul.f32 %v949, %v939
    %v951 = vadd.f32 %v933, %v950
    %s952 = sld [smem:[#allocation2 + $0x18e]]
    %v953 = vstv %s952
    %v954 = vmul.f32 %v953, %v939
    %v955 = vadd.f32 %v937, %v954
    %s956 = scalar_lea.vmem %s1, 99
    %v957 = vld [vmem:[%s956] ss:$8 sm:$0x3]
    %s958 = sld [smem:[#allocation2 + $0xf]]
    %v959 = vstv %s958
    %v960 = vmul.f32 %v959, %v957
    %v961 = vadd.f32 %v943, %v960
    %s962 = sld [smem:[#allocation2 + $0x8f]]
    %v963 = vstv %s962
    %v964 = vmul.f32 %v963, %v957
    %v965 = vadd.f32 %v947, %v964
    %s966 = sld [smem:[#allocation2 + $0x10f]]
    %v967 = vstv %s966
    %v968 = vmul.f32 %v967, %v957
    %v969 = vadd.f32 %v951, %v968
    %s970 = sld [smem:[#allocation2 + $0x18f]]
    %v971 = vstv %s970
    %v972 = vmul.f32 %v971, %v957
    %v973 = vadd.f32 %v955, %v972
    %s974 = scalar_lea.vmem %s1, 100
    %v975 = vld [vmem:[%s974] ss:$8 sm:$0x3]
    %s976 = sld [smem:[#allocation2 + $0x10]]
    %v977 = vstv %s976
    %v978 = vmul.f32 %v977, %v975
    %v979 = vadd.f32 %v961, %v978
    %s980 = sld [smem:[#allocation2 + $0x90]]
    %v981 = vstv %s980
    %v982 = vmul.f32 %v981, %v975
    %v983 = vadd.f32 %v965, %v982
    %s984 = sld [smem:[#allocation2 + $0x110]]
    %v985 = vstv %s984
    %v986 = vmul.f32 %v985, %v975
    %v987 = vadd.f32 %v969, %v986
    %s988 = sld [smem:[#allocation2 + $0x190]]
    %v989 = vstv %s988
    %v990 = vmul.f32 %v989, %v975
    %v991 = vadd.f32 %v973, %v990
    %s992 = scalar_lea.vmem %s1, 101
    %v993 = vld [vmem:[%s992] ss:$8 sm:$0x3]
    %s994 = sld [smem:[#allocation2 + $0x11]]
    %v995 = vstv %s994
    %v996 = vmul.f32 %v995, %v993
    %v997 = vadd.f32 %v979, %v996
    %s998 = sld [smem:[#allocation2 + $0x91]]
    %v999 = vstv %s998
    %v1000 = vmul.f32 %v999, %v993
    %v1001 = vadd.f32 %v983, %v1000
    %s1002 = sld [smem:[#allocation2 + $0x111]]
    %v1003 = vstv %s1002
    %v1004 = vmul.f32 %v1003, %v993
    %v1005 = vadd.f32 %v987, %v1004
    %s1006 = sld [smem:[#allocation2 + $0x191]]
    %v1007 = vstv %s1006
    %v1008 = vmul.f32 %v1007, %v993
    %v1009 = vadd.f32 %v991, %v1008
    %s1010 = scalar_lea.vmem %s1, 102
    %v1011 = vld [vmem:[%s1010] ss:$8 sm:$0x3]
    %s1012 = sld [smem:[#allocation2 + $0x12]]
    %v1013 = vstv %s1012
    %v1014 = vmul.f32 %v1013, %v1011
    %v1015 = vadd.f32 %v997, %v1014
    %s1016 = sld [smem:[#allocation2 + $0x92]]
    %v1017 = vstv %s1016
    %v1018 = vmul.f32 %v1017, %v1011
    %v1019 = vadd.f32 %v1001, %v1018
    %s1020 = sld [smem:[#allocation2 + $0x112]]
    %v1021 = vstv %s1020
    %v1022 = vmul.f32 %v1021, %v1011
    %v1023 = vadd.f32 %v1005, %v1022
    %s1024 = sld [smem:[#allocation2 + $0x192]]
    %v1025 = vstv %s1024
    %v1026 = vmul.f32 %v1025, %v1011
    %v1027 = vadd.f32 %v1009, %v1026
    %s1028 = scalar_lea.vmem %s1, 103
    %v1029 = vld [vmem:[%s1028] ss:$8 sm:$0x3]
    %s1030 = sld [smem:[#allocation2 + $0x13]]
    %v1031 = vstv %s1030
    %v1032 = vmul.f32 %v1031, %v1029
    %v1033 = vadd.f32 %v1015, %v1032
    %s1034 = sld [smem:[#allocation2 + $0x93]]
    %v1035 = vstv %s1034
    %v1036 = vmul.f32 %v1035, %v1029
    %v1037 = vadd.f32 %v1019, %v1036
    %s1038 = sld [smem:[#allocation2 + $0x113]]
    %v1039 = vstv %s1038
    %v1040 = vmul.f32 %v1039, %v1029
    %v1041 = vadd.f32 %v1023, %v1040
    %s1042 = sld [smem:[#allocation2 + $0x193]]
    %v1043 = vstv %s1042
    %v1044 = vmul.f32 %v1043, %v1029
    %v1045 = vadd.f32 %v1027, %v1044
    %s1046 = scalar_lea.vmem %s1, 112
    %v1047 = vld [vmem:[%s1046] ss:$8 sm:$0x3]
    %s1048 = sld [smem:[#allocation2 + $0x14]]
    %v1049 = vstv %s1048
    %v1050 = vmul.f32 %v1049, %v1047
    %v1051 = vadd.f32 %v1033, %v1050
    %s1052 = sld [smem:[#allocation2 + $0x94]]
    %v1053 = vstv %s1052
    %v1054 = vmul.f32 %v1053, %v1047
    %v1055 = vadd.f32 %v1037, %v1054
    %s1056 = sld [smem:[#allocation2 + $0x114]]
    %v1057 = vstv %s1056
    %v1058 = vmul.f32 %v1057, %v1047
    %v1059 = vadd.f32 %v1041, %v1058
    %s1060 = sld [smem:[#allocation2 + $0x194]]
    %v1061 = vstv %s1060
    %v1062 = vmul.f32 %v1061, %v1047
    %v1063 = vadd.f32 %v1045, %v1062
    %s1064 = scalar_lea.vmem %s1, 113
    %v1065 = vld [vmem:[%s1064] ss:$8 sm:$0x3]
    %s1066 = sld [smem:[#allocation2 + $0x15]]
    %v1067 = vstv %s1066
    %v1068 = vmul.f32 %v1067, %v1065
    %v1069 = vadd.f32 %v1051, %v1068
    %s1070 = sld [smem:[#allocation2 + $0x95]]
    %v1071 = vstv %s1070
    %v1072 = vmul.f32 %v1071, %v1065
    %v1073 = vadd.f32 %v1055, %v1072
    %s1074 = sld [smem:[#allocation2 + $0x115]]
    %v1075 = vstv %s1074
    %v1076 = vmul.f32 %v1075, %v1065
    %v1077 = vadd.f32 %v1059, %v1076
    %s1078 = sld [smem:[#allocation2 + $0x195]]
    %v1079 = vstv %s1078
    %v1080 = vmul.f32 %v1079, %v1065
    %v1081 = vadd.f32 %v1063, %v1080
    %s1082 = scalar_lea.vmem %s1, 114
    %v1083 = vld [vmem:[%s1082] ss:$8 sm:$0x3]
    %s1084 = sld [smem:[#allocation2 + $0x16]]
    %v1085 = vstv %s1084
    %v1086 = vmul.f32 %v1085, %v1083
    %v1087 = vadd.f32 %v1069, %v1086
    %s1088 = sld [smem:[#allocation2 + $0x96]]
    %v1089 = vstv %s1088
    %v1090 = vmul.f32 %v1089, %v1083
    %v1091 = vadd.f32 %v1073, %v1090
    %s1092 = sld [smem:[#allocation2 + $0x116]]
    %v1093 = vstv %s1092
    %v1094 = vmul.f32 %v1093, %v1083
    %v1095 = vadd.f32 %v1077, %v1094
    %s1096 = sld [smem:[#allocation2 + $0x196]]
    %v1097 = vstv %s1096
    %v1098 = vmul.f32 %v1097, %v1083
    %v1099 = vadd.f32 %v1081, %v1098
    %s1100 = scalar_lea.vmem %s1, 115
    %v1101 = vld [vmem:[%s1100] ss:$8 sm:$0x3]
    %s1102 = sld [smem:[#allocation2 + $0x17]]
    %v1103 = vstv %s1102
    %v1104 = vmul.f32 %v1103, %v1101
    %v1105 = vadd.f32 %v1087, %v1104
    %s1106 = sld [smem:[#allocation2 + $0x97]]
    %v1107 = vstv %s1106
    %v1108 = vmul.f32 %v1107, %v1101
    %v1109 = vadd.f32 %v1091, %v1108
    %s1110 = sld [smem:[#allocation2 + $0x117]]
    %v1111 = vstv %s1110
    %v1112 = vmul.f32 %v1111, %v1101
    %v1113 = vadd.f32 %v1095, %v1112
    %s1114 = sld [smem:[#allocation2 + $0x197]]
    %v1115 = vstv %s1114
    %v1116 = vmul.f32 %v1115, %v1101
    %v1117 = vadd.f32 %v1099, %v1116
    %s1118 = scalar_lea.vmem %s1, 116
    %v1119 = vld [vmem:[%s1118] ss:$8 sm:$0x3]
    %s1120 = sld [smem:[#allocation2 + $0x18]]
    %v1121 = vstv %s1120
    %v1122 = vmul.f32 %v1121, %v1119
    %v1123 = vadd.f32 %v1105, %v1122
    %s1124 = sld [smem:[#allocation2 + $0x98]]
    %v1125 = vstv %s1124
    %v1126 = vmul.f32 %v1125, %v1119
    %v1127 = vadd.f32 %v1109, %v1126
    %s1128 = sld [smem:[#allocation2 + $0x118]]
    %v1129 = vstv %s1128
    %v1130 = vmul.f32 %v1129, %v1119
    %v1131 = vadd.f32 %v1113, %v1130
    %s1132 = sld [smem:[#allocation2 + $0x198]]
    %v1133 = vstv %s1132
    %v1134 = vmul.f32 %v1133, %v1119
    %v1135 = vadd.f32 %v1117, %v1134
    %s1136 = scalar_lea.vmem %s1, 117
    %v1137 = vld [vmem:[%s1136] ss:$8 sm:$0x3]
    %s1138 = sld [smem:[#allocation2 + $0x19]]
    %v1139 = vstv %s1138
    %v1140 = vmul.f32 %v1139, %v1137
    %v1141 = vadd.f32 %v1123, %v1140
    %s1142 = sld [smem:[#allocation2 + $0x99]]
    %v1143 = vstv %s1142
    %v1144 = vmul.f32 %v1143, %v1137
    %v1145 = vadd.f32 %v1127, %v1144
    %s1146 = sld [smem:[#allocation2 + $0x119]]
    %v1147 = vstv %s1146
    %v1148 = vmul.f32 %v1147, %v1137
    %v1149 = vadd.f32 %v1131, %v1148
    %s1150 = sld [smem:[#allocation2 + $0x199]]
    %v1151 = vstv %s1150
    %v1152 = vmul.f32 %v1151, %v1137
    %v1153 = vadd.f32 %v1135, %v1152
    %s1154 = scalar_lea.vmem %s1, 118
    %v1155 = vld [vmem:[%s1154] ss:$8 sm:$0x3]
    %s1156 = sld [smem:[#allocation2 + $0x1a]]
    %v1157 = vstv %s1156
    %v1158 = vmul.f32 %v1157, %v1155
    %v1159 = vadd.f32 %v1141, %v1158
    %s1160 = sld [smem:[#allocation2 + $0x9a]]
    %v1161 = vstv %s1160
    %v1162 = vmul.f32 %v1161, %v1155
    %v1163 = vadd.f32 %v1145, %v1162
    %s1164 = sld [smem:[#allocation2 + $0x11a]]
    %v1165 = vstv %s1164
    %v1166 = vmul.f32 %v1165, %v1155
    %v1167 = vadd.f32 %v1149, %v1166
    %s1168 = sld [smem:[#allocation2 + $0x19a]]
    %v1169 = vstv %s1168
    %v1170 = vmul.f32 %v1169, %v1155
    %v1171 = vadd.f32 %v1153, %v1170
    %s1172 = scalar_lea.vmem %s1, 119
    %v1173 = vld [vmem:[%s1172] ss:$8 sm:$0x3]
    %s1174 = sld [smem:[#allocation2 + $0x1b]]
    %v1175 = vstv %s1174
    %v1176 = vmul.f32 %v1175, %v1173
    %v1177 = vadd.f32 %v1159, %v1176
    %s1178 = sld [smem:[#allocation2 + $0x9b]]
    %v1179 = vstv %s1178
    %v1180 = vmul.f32 %v1179, %v1173
    %v1181 = vadd.f32 %v1163, %v1180
    %s1182 = sld [smem:[#allocation2 + $0x11b]]
    %v1183 = vstv %s1182
    %v1184 = vmul.f32 %v1183, %v1173
    %v1185 = vadd.f32 %v1167, %v1184
    %s1186 = sld [smem:[#allocation2 + $0x19b]]
    %v1187 = vstv %s1186
    %v1188 = vmul.f32 %v1187, %v1173
    %v1189 = vadd.f32 %v1171, %v1188
    %s1190 = scalar_lea.vmem %s1, 128
    %v1191 = vld [vmem:[%s1190] ss:$8 sm:$0x3]
    %s1192 = sld [smem:[#allocation2 + $0x1c]]
    %v1193 = vstv %s1192
    %v1194 = vmul.f32 %v1193, %v1191
    %v1195 = vadd.f32 %v1177, %v1194
    %s1196 = sld [smem:[#allocation2 + $0x9c]]
    %v1197 = vstv %s1196
    %v1198 = vmul.f32 %v1197, %v1191
    %v1199 = vadd.f32 %v1181, %v1198
    %s1200 = sld [smem:[#allocation2 + $0x11c]]
    %v1201 = vstv %s1200
    %v1202 = vmul.f32 %v1201, %v1191
    %v1203 = vadd.f32 %v1185, %v1202
    %s1204 = sld [smem:[#allocation2 + $0x19c]]
    %v1205 = vstv %s1204
    %v1206 = vmul.f32 %v1205, %v1191
    %v1207 = vadd.f32 %v1189, %v1206
    %s1208 = scalar_lea.vmem %s1, 129
    %v1209 = vld [vmem:[%s1208] ss:$8 sm:$0x3]
    %s1210 = sld [smem:[#allocation2 + $0x1d]]
    %v1211 = vstv %s1210
    %v1212 = vmul.f32 %v1211, %v1209
    %v1213 = vadd.f32 %v1195, %v1212
    %s1214 = sld [smem:[#allocation2 + $0x9d]]
    %v1215 = vstv %s1214
    %v1216 = vmul.f32 %v1215, %v1209
    %v1217 = vadd.f32 %v1199, %v1216
    %s1218 = sld [smem:[#allocation2 + $0x11d]]
    %v1219 = vstv %s1218
    %v1220 = vmul.f32 %v1219, %v1209
    %v1221 = vadd.f32 %v1203, %v1220
    %s1222 = sld [smem:[#allocation2 + $0x19d]]
    %v1223 = vstv %s1222
    %v1224 = vmul.f32 %v1223, %v1209
    %v1225 = vadd.f32 %v1207, %v1224
    %s1226 = scalar_lea.vmem %s1, 130
    %v1227 = vld [vmem:[%s1226] ss:$8 sm:$0x3]
    %s1228 = sld [smem:[#allocation2 + $0x1e]]
    %v1229 = vstv %s1228
    %v1230 = vmul.f32 %v1229, %v1227
    %v1231 = vadd.f32 %v1213, %v1230
    %s1232 = sld [smem:[#allocation2 + $0x9e]]
    %v1233 = vstv %s1232
    %v1234 = vmul.f32 %v1233, %v1227
    %v1235 = vadd.f32 %v1217, %v1234
    %s1236 = sld [smem:[#allocation2 + $0x11e]]
    %v1237 = vstv %s1236
    %v1238 = vmul.f32 %v1237, %v1227
    %v1239 = vadd.f32 %v1221, %v1238
    %s1240 = sld [smem:[#allocation2 + $0x19e]]
    %v1241 = vstv %s1240
    %v1242 = vmul.f32 %v1241, %v1227
    %v1243 = vadd.f32 %v1225, %v1242
    %s1244 = scalar_lea.vmem %s1, 131
    %v1245 = vld [vmem:[%s1244] ss:$8 sm:$0x3]
    %s1246 = sld [smem:[#allocation2 + $0x1f]]
    %v1247 = vstv %s1246
    %v1248 = vmul.f32 %v1247, %v1245
    %v1249 = vadd.f32 %v1231, %v1248
    %s1250 = sld [smem:[#allocation2 + $0x9f]]
    %v1251 = vstv %s1250
    %v1252 = vmul.f32 %v1251, %v1245
    %v1253 = vadd.f32 %v1235, %v1252
    %s1254 = sld [smem:[#allocation2 + $0x11f]]
    %v1255 = vstv %s1254
    %v1256 = vmul.f32 %v1255, %v1245
    %v1257 = vadd.f32 %v1239, %v1256
    %s1258 = sld [smem:[#allocation2 + $0x19f]]
    %v1259 = vstv %s1258
    %v1260 = vmul.f32 %v1259, %v1245
    %v1261 = vadd.f32 %v1243, %v1260
    %s1262 = scalar_lea.vmem %s1, 132
    %v1263 = vld [vmem:[%s1262] ss:$8 sm:$0x3]
    %s1264 = sld [smem:[#allocation2 + $0x20]]
    %v1265 = vstv %s1264
    %v1266 = vmul.f32 %v1265, %v1263
    %v1267 = vadd.f32 %v1249, %v1266
    %s1268 = sld [smem:[#allocation2 + $0xa0]]
    %v1269 = vstv %s1268
    %v1270 = vmul.f32 %v1269, %v1263
    %v1271 = vadd.f32 %v1253, %v1270
    %s1272 = sld [smem:[#allocation2 + $0x120]]
    %v1273 = vstv %s1272
    %v1274 = vmul.f32 %v1273, %v1263
    %v1275 = vadd.f32 %v1257, %v1274
    %s1276 = sld [smem:[#allocation2 + $0x1a0]]
    %v1277 = vstv %s1276
    %v1278 = vmul.f32 %v1277, %v1263
    %v1279 = vadd.f32 %v1261, %v1278
    %s1280 = scalar_lea.vmem %s1, 133
    %v1281 = vld [vmem:[%s1280] ss:$8 sm:$0x3]
    %s1282 = sld [smem:[#allocation2 + $0x21]]
    %v1283 = vstv %s1282
    %v1284 = vmul.f32 %v1283, %v1281
    %v1285 = vadd.f32 %v1267, %v1284
    %s1286 = sld [smem:[#allocation2 + $0xa1]]
    %v1287 = vstv %s1286
    %v1288 = vmul.f32 %v1287, %v1281
    %v1289 = vadd.f32 %v1271, %v1288
    %s1290 = sld [smem:[#allocation2 + $0x121]]
    %v1291 = vstv %s1290
    %v1292 = vmul.f32 %v1291, %v1281
    %v1293 = vadd.f32 %v1275, %v1292
    %s1294 = sld [smem:[#allocation2 + $0x1a1]]
    %v1295 = vstv %s1294
    %v1296 = vmul.f32 %v1295, %v1281
    %v1297 = vadd.f32 %v1279, %v1296
    %s1298 = scalar_lea.vmem %s1, 134
    %v1299 = vld [vmem:[%s1298] ss:$8 sm:$0x3]
    %s1300 = sld [smem:[#allocation2 + $0x22]]
    %v1301 = vstv %s1300
    %v1302 = vmul.f32 %v1301, %v1299
    %v1303 = vadd.f32 %v1285, %v1302
    %s1304 = sld [smem:[#allocation2 + $0xa2]]
    %v1305 = vstv %s1304
    %v1306 = vmul.f32 %v1305, %v1299
    %v1307 = vadd.f32 %v1289, %v1306
    %s1308 = sld [smem:[#allocation2 + $0x122]]
    %v1309 = vstv %s1308
    %v1310 = vmul.f32 %v1309, %v1299
    %v1311 = vadd.f32 %v1293, %v1310
    %s1312 = sld [smem:[#allocation2 + $0x1a2]]
    %v1313 = vstv %s1312
    %v1314 = vmul.f32 %v1313, %v1299
    %v1315 = vadd.f32 %v1297, %v1314
    %s1316 = scalar_lea.vmem %s1, 135
    %v1317 = vld [vmem:[%s1316] ss:$8 sm:$0x3]
    %s1318 = sld [smem:[#allocation2 + $0x23]]
    %v1319 = vstv %s1318
    %v1320 = vmul.f32 %v1319, %v1317
    %v1321 = vadd.f32 %v1303, %v1320
    %s1322 = sld [smem:[#allocation2 + $0xa3]]
    %v1323 = vstv %s1322
    %v1324 = vmul.f32 %v1323, %v1317
    %v1325 = vadd.f32 %v1307, %v1324
    %s1326 = sld [smem:[#allocation2 + $0x123]]
    %v1327 = vstv %s1326
    %v1328 = vmul.f32 %v1327, %v1317
    %v1329 = vadd.f32 %v1311, %v1328
    %s1330 = sld [smem:[#allocation2 + $0x1a3]]
    %v1331 = vstv %s1330
    %v1332 = vmul.f32 %v1331, %v1317
    %v1333 = vadd.f32 %v1315, %v1332
    %s1334 = scalar_lea.vmem %s2, 4
    %1335 = vst.msk [vmem:[%s1334] ss:$8 sm:$0x3] %vm674, %v1321
    %1336 = vst.msk [vmem:[%s1334] ss:$8 sm:$0x0] %vm674, %v1321
    %s1337 = scalar_lea.vmem %s2, 5
    %1338 = vst.msk [vmem:[%s1337] ss:$8 sm:$0x3] %vm674, %v1325
    %1339 = vst.msk [vmem:[%s1337] ss:$8 sm:$0x0] %vm674, %v1325
    %s1340 = scalar_lea.vmem %s2, 6
    %1341 = vst.msk [vmem:[%s1340] ss:$8 sm:$0x3] %vm674, %v1329
    %1342 = vst.msk [vmem:[%s1340] ss:$8 sm:$0x0] %vm674, %v1329
    %s1343 = scalar_lea.vmem %s2, 7
    %1344 = vst.msk [vmem:[%s1343] ss:$8 sm:$0x3] %vm674, %v1333
    %1345 = vst.msk [vmem:[%s1343] ss:$8 sm:$0x0] %vm674, %v1333
    // Predicated region
    $region14: #{conv3x3_forward.1} parent=1 // pred_check
      _
    $region15: #{conv3x3_forward.1} parent=1 // pred_check_branch
      %1347 = sbr.rel (0) target = $region17
    $region16: #{conv3x3_forward.1} parent=1 // pred_region
      _
    $region17: #{conv3x3_forward.1} parent=1 // pred_fallthru
      _
    // Predicated region
    $region18: #{conv3x3_forward.1} parent=1 // pred_check
      _
    $region19: #{conv3x3_forward.1} parent=1 // pred_check_branch
      %1349 = sbr.rel (0) target = $region21
    $region20: #{conv3x3_forward.1} parent=1 // pred_region
      _
    $region21: #{conv3x3_forward.1} parent=1 // pred_fallthru
      _
    %1350 = vsyncpa [#allocation3], 1

</llo_original>
